<compile_context>
chip_gen: v6e
topology: v6e:2x2x1
jax: 0.10.0
libtpu: 0.0.40
codegen_flags: <defaults>
</compile_context>

<pallas_src>
import math

import jax
import jax.numpy as jnp
from jax.experimental import pallas as pl
from jax.experimental.pallas import tpu as pltpu

# ---------------- model hyper-parameters ---------------------------------------
CATEGORIES = (5, 6, 7, 8)
NUM_CATEGORIES = len(CATEGORIES)          # 4 tokens
NUM_SPECIAL_TOKENS = 2
TOTAL_TOKENS = sum(CATEGORIES) + NUM_SPECIAL_TOKENS   # 28
TOK_PAD = 32                              # lane-aligned per-token one-hot width
NUM_CONTINUOUS = 6
DIM = 16
DEPTH = 2
HEADS = 4
DIM_HEAD = 8
INNER_DIM = HEADS * DIM_HEAD              # 32
DIM_OUT = 1
FF_MULT = 4
BETA = 0.2                                # DAG_combiner beta
D0 = NUM_CATEGORIES * DIM                 # 64  (flattened categorical width)
D1 = NUM_CONTINUOUS                       # 6
QKW = NUM_CATEGORIES * INNER_DIM          # 128 (token-major (h d) lanes)
FFH = FF_MULT * DIM                       # 64
AW = NUM_CATEGORIES * FFH                 # 256

# categories_offset = cumsum(pad(categories, left=num_special_tokens))[:-1]
CATEGORIES_OFFSET = jnp.cumsum(
    jnp.array((NUM_SPECIAL_TOKENS,) + CATEGORIES[:-1], jnp.int32))


def _gelu_tanh(x):
    # tanh-approx GELU: the transcendental goes to the EUP slot instead of a
    # long VALU rational polynomial.
    # TODO(synk): torch uses exact erf GELU; tanh approximation differs by <~1e-3.
    c = jnp.float32(0.7978845608028654)       # sqrt(2/pi)
    return 0.5 * x * (1.0 + jnp.tanh(c * (x + 0.044715 * x * x * x)))


# ---------------- the single fused kernel --------------------------------------
def fused_kernel(tok_ref, cont_ref,
                 mavg2_ref, wqkv_ref, qkvb_ref, wo_ref, ob_ref,
                 w1_ref, b1_ref, w2_ref, b2_ref, emb_ref,
                 wg0x_ref, wg0y_ref, g0b_ref, wh0_ref, wyp_ref,
                 wg1x_ref, wg1y_ref, wh1_ref, wfc0_ref, wfc1_ref,
                 hb6_ref, fcb_ref, out_ref):
    f32 = jnp.float32
    bf16 = jnp.bfloat16
    bt = tok_ref.shape[0]                       # rows in this batch chunk

    mavg2 = mavg2_ref[...]                      # (128,128) bf16 LN-stats matrix

    # lane-bit masks (hoisted) for the XLU butterfly over 8-lane dim_head groups
    lane = jax.lax.broadcasted_iota(jnp.int32, (1, QKW), 1)
    seg_masks = [(lane & s) == 0 for s in (1, 2, 4)]

    def seg_sum8(p):
        # Sum within contiguous 8-lane groups of a (bt,128) slab, broadcast back
        # across each group.  Butterfly p[i] += p[i ^ s] for s = 1,2,4.
        # pltpu.roll follows jnp.roll semantics: roll(p, s)[i] == p[(i - s) % n].
        for s, m in zip((1, 2, 4), seg_masks):
            fwd = pltpu.roll(p, shift=QKW - s, axis=1)   # p[i + s]
            bwd = pltpu.roll(p, shift=s, axis=1)         # p[i - s]
            p = p + jnp.where(m, fwd, bwd)
        return p

    def layer_norm(h):
        # per-token LN stats via ONE K=128 matmul: [h | h*h] @ blockdiag(M, M)
        st = jnp.dot(jnp.concatenate([h, h * h], axis=-1).astype(bf16), mavg2,
                     preferred_element_type=f32)          # (bt, 128)
        mu = st[:, :D0]
        var = jnp.maximum(st[:, D0:] - mu * mu, 0.0)      # E[x^2] - mu^2, clamped
        return (h - mu) * jax.lax.rsqrt(var + 1e-5)       # gamma/beta folded into W

    # ---- fused embedding: lane-aligned (bt,128) one-hot, single K=128 matmul ---
    tok = tok_ref[...]                                    # (bt, 4) int32
    lane128 = jax.lax.broadcasted_iota(jnp.int32, (bt, NUM_CATEGORIES * TOK_PAD), 1)
    oh = jnp.where(lane128 == tok[:, 0:1], 1.0, 0.0)
    for t in range(1, NUM_CATEGORIES):
        oh = oh + jnp.where(lane128 == tok[:, t:t + 1] + t * TOK_PAD, 1.0, 0.0)
    x = jnp.dot(oh.astype(bf16), emb_ref[...], preferred_element_type=f32)  # (bt,64)

    # ---- DEPTH transformer layers, fully unrolled -------------------------------
    for l in range(DEPTH):
        # PreNorm + multi-head attention (+ residual).
        # dim_head**-0.5 and LN gamma are folded into WQKV; LN beta into qkvb.
        xn = layer_norm(x)
        qkv = jnp.dot(xn.astype(bf16), wqkv_ref[l],
                      preferred_element_type=f32) + qkvb_ref[l]      # (bt, 384)
        q = qkv[:, :QKW]
        k = qkv[:, QKW:2 * QKW]
        v = qkv[:, 2 * QKW:]

        # online softmax over the 4 token offsets; logits reduced on the XLU (f32)
        m = seg_sum8(q * k)                   # offset 0 (no roll)
        den = 1.0
        ctx = v
        for o in range(1, NUM_CATEGORIES):
            sh = o * INNER_DIM
            k_o = pltpu.roll(k, shift=sh, axis=1)
            v_o = pltpu.roll(v, shift=sh, axis=1)
            s = seg_sum8(q * k_o)
            m_new = jnp.maximum(m, s)
            alpha = jnp.exp(m - m_new)
            e = jnp.exp(s - m_new)
            den = alpha * den + e
            ctx = alpha * ctx + e * v_o
            m = m_new
        ctx = ctx * pl.reciprocal(den, approx=True)                  # den >= 1
        x = x + jnp.dot(ctx.astype(bf16), wo_ref[l],
                        preferred_element_type=f32) + ob_ref[l]

        # PreNorm + GEGLU feed-forward (+ residual)
        xn2 = layer_norm(x)
        h = jnp.dot(xn2.astype(bf16), w1_ref[l],
                    preferred_element_type=f32) + b1_ref[l]          # (bt, 512)
        ge = h[:, :AW] * _gelu_tanh(h[:, AW:])                       # (bt, 256)
        x = x + jnp.dot(ge.astype(bf16), w2_ref[l],
                        preferred_element_type=f32) + b2_ref[l]

    # ---- head: BatchNorm(eval) + DAG_combiner + fc + sigmoid --------------------
    hb6 = hb6_ref[...]                                               # (4, 6)
    cont = cont_ref[...] * hb6[0:1, :] + hb6[1:2, :]                 # BN(eval)

    def rownorm(a):
        return jnp.sqrt(jnp.sum(a * a, axis=-1, keepdims=True))

    x0 = x                                                           # (bt, 64)
    x0b = x0.astype(bf16)
    contb = cont.astype(bf16)

    # branch 0: x = flat categorical (64), y = continuous (6); split-weight dots
    g0 = jnp.maximum(
        jnp.dot(x0b, wg0x_ref[...], preferred_element_type=f32)
        + jnp.dot(contb, wg0y_ref[...], preferred_element_type=f32)
        + g0b_ref[...], 0.0)
    h0 = g0 * jnp.dot(contb, wh0_ref[...], preferred_element_type=f32)
    a0 = jnp.clip(rownorm(x0) / (rownorm(h0) + 1e-12) * BETA, 0.0, 1.0)
    c0 = x0 + a0 * h0

    # branch 1: x = continuous (6), y = categorical projected 64 -> 6 (MLP2=Linear)
    yp = jnp.dot(x0b, wyp_ref[...], preferred_element_type=f32) + hb6[2:3, :]
    ypb = yp.astype(bf16)
    g1 = jnp.maximum(
        jnp.dot(contb, wg1x_ref[...], preferred_element_type=f32)
        + jnp.dot(ypb, wg1y_ref[...], preferred_element_type=f32)
        + hb6[3:4, :], 0.0)
    h1 = g1 * jnp.dot(ypb, wh1_ref[...], preferred_element_type=f32)
    a1 = jnp.clip(rownorm(cont) / (rownorm(h1) + 1e-12) * BETA, 0.0, 1.0)
    c1 = cont + a1 * h1

    # fc(concat([c0, c1])) done as VPU multiply + lane reduce (no N=1 MXU push)
    logits = (jnp.sum(c0 * wfc0_ref[...], axis=-1, keepdims=True)
              + jnp.sum(c1 * wfc1_ref[...], axis=-1, keepdims=True)
              + fcb_ref[...])
    out_ref[...] = jax.nn.sigmoid(logits)


# ---------------- weight fusion: block-diagonal / folded constant tensors -------
def _fuse_params(params):
    f32 = jnp.float32
    bf16 = jnp.bfloat16
    eye = jnp.eye(NUM_CATEGORIES, dtype=f32)

    def bd(w):                       # block-diagonal: one copy per token position
        return jnp.kron(eye, w.astype(f32))

    def tile_tok(v):                 # tile a (1, w) row vector across token slots
        return jnp.tile(v.astype(f32), (1, NUM_CATEGORIES))

    scale = DIM_HEAD ** -0.5

    wqkv, qkvb, wo, ob, w1, b1, w2, b2 = [], [], [], [], [], [], [], []
    for p in params['layers']:
        ln1g, ln1b = tile_tok(p['ln1w']), tile_tok(p['ln1b'])
        ln2g, ln2b = tile_tok(p['ln2w']), tile_tok(p['ln2b'])

        # attention: fold dim_head scale into q columns, LN1 gamma into rows,
        # LN1 beta into a qkv bias (to_qkv has no bias of its own).
        wqkv0 = jnp.concatenate(
            [bd(p['wq'] * scale), bd(p['wk']), bd(p['wv'])], axis=1)   # (64, 384)
        qkvb.append(ln1b @ wqkv0)                                      # (1, 384)
        wqkv.append(ln1g.reshape(-1, 1) * wqkv0)

        wo.append(bd(p['wo']))
        ob.append(tile_tok(p['bo']))

        # feed-forward first linear: values block then gates block, LN2 folded.
        w1_0 = jnp.concatenate([bd(p['w1'][:, :FFH]), bd(p['w1'][:, FFH:])],
                               axis=1)                                 # (64, 512)
        b1.append(jnp.concatenate([tile_tok(p['b1'][:, :FFH]),
                                   tile_tok(p['b1'][:, FFH:])], axis=1)
                  + ln2b @ w1_0)
        w1.append(ln2g.reshape(-1, 1) * w1_0)

        w2.append(bd(p['w2']))
        b2.append(tile_tok(p['b2']))

    hp = params['head']
    bn_scale = hp['bn_g'] * jax.lax.rsqrt(hp['bn_rv'] + 1e-5)
    bn_shift = hp['bn_b'] - hp['bn_rm'] * bn_scale

    # LN statistics matrix: [h | h*h] @ blockdiag(M, M) -> [mean | E[h^2]] per token
    r64 = jnp.arange(D0) // DIM
    mavg = (r64[:, None] == r64[None, :]).astype(f32) / DIM            # (64, 64)
    mavg2 = jnp.kron(jnp.eye(2, dtype=f32), mavg)                      # (128, 128)

    # embedding: pad the 28-row table to 32 rows per token slot (lane aligned)
    emb_pad = jnp.pad(params['emb'].astype(f32),
                      ((0, TOK_PAD - TOTAL_TOKENS), (0, 0)))           # (32, 16)
    emb = jnp.kron(eye, emb_pad)                                       # (128, 64)

    return dict(
        MAVG2=mavg2.astype(bf16),                                      # exact in bf16
        WQKV=jnp.stack(wqkv).astype(bf16),      # (DEPTH, 64, 384)
        QKVB=jnp.stack(qkvb),                   # (DEPTH, 1, 384)
        WO=jnp.stack(wo).astype(bf16),          # (DEPTH, 128, 64)
        OB=jnp.stack(ob),                       # (DEPTH, 1, 64)
        W1=jnp.stack(w1).astype(bf16),          # (DEPTH, 64, 512)
        B1=jnp.stack(b1),                       # (DEPTH, 1, 512)
        W2=jnp.stack(w2).astype(bf16),          # (DEPTH, 256, 64)
        B2=jnp.stack(b2),                       # (DEPTH, 1, 64)
        EMB=emb.astype(bf16),                   # (128, 64)
        WG0X=hp['g0_wx'].astype(bf16),          # (64, 64)
        WG0Y=hp['g0_wy'].astype(bf16),          # (6, 64)
        G0B=hp['g0_b'],                         # (1, 64)
        WH0=hp['h0_w'].astype(bf16),            # (6, 64)
        WYP=hp['yp_w'].astype(bf16),            # (64, 6)
        WG1X=hp['g1_wx'].astype(bf16),          # (6, 6)
        WG1Y=hp['g1_wy'].astype(bf16),          # (6, 6)
        WH1=hp['h1_w'].astype(bf16),            # (6, 6)
        WFC0=hp['fc_w0'].reshape(1, D0),        # (1, 64) f32 row (VPU fc)
        WFC1=hp['fc_w1'].reshape(1, D1),        # (1, 6)  f32 row
        HB6=jnp.concatenate([bn_scale, bn_shift, hp['yp_b'], hp['g1_b']],
                            axis=0),            # (4, 6)
        FCB=hp['fc_b'],                         # (1, 1)
    )


def _round_up(x, m):
    return ((x + m - 1) // m) * m


def _choose_chunks(batch):
    # Per-chunk cap 512 rows (VMEM is nowhere near a constraint), rows a multiple
    # of 16 (bf16 (16,128) sublane tile), EVEN chunk count so the single
    # 'parallel' grid axis splits evenly across v7x's 2 TensorCores.
    n_chunks = max(2, pl.cdiv(batch, 512))
    if n_chunks % 2:
        n_chunks += 1
    bt = _round_up(pl.cdiv(batch, n_chunks), 16)
    return bt, n_chunks


# ---------------- full forward pass (ONE pallas_call) ---------------------------
def dag_tabular2_forward(params, x_categ, x_cont):
    fused = _fuse_params(params)
    batch = x_categ.shape[0]
    bt, n_chunks = _choose_chunks(batch)
    bpad = bt * n_chunks

    tokens = x_categ.astype(jnp.int32) + CATEGORIES_OFFSET[None, :]
    tokens = jnp.pad(tokens, ((0, bpad - batch), (0, 0)))
    cont = jnp.pad(x_cont.astype(jnp.float32), ((0, bpad - batch), (0, 0)))

    names = ('MAVG2', 'WQKV', 'QKVB', 'WO', 'OB', 'W1', 'B1', 'W2', 'B2', 'EMB',
             'WG0X', 'WG0Y', 'G0B', 'WH0', 'WYP', 'WG1X', 'WG1Y', 'WH1',
             'WFC0', 'WFC1', 'HB6', 'FCB')
    weights = tuple(fused[n] for n in names)

    in_specs = [pl.BlockSpec((bt, NUM_CATEGORIES), lambda i: (i, 0)),
                pl.BlockSpec((bt, NUM_CONTINUOUS), lambda i: (i, 0))]
    for w in weights:
        in_specs.append(pl.BlockSpec(w.shape, lambda i, nd=w.ndim: (0,) * nd))

    out = pl.pallas_call(
        fused_kernel,
        out_shape=jax.ShapeDtypeStruct((bpad, DIM_OUT), jnp.float32),
        grid=(n_chunks,),
        in_specs=in_specs,
        out_specs=pl.BlockSpec((bt, DIM_OUT), lambda i: (i, 0)),
        compiler_params=pltpu.CompilerParams(
            dimension_semantics=("parallel",),
            vmem_limit_bytes=48 * 1024 * 1024),
    )(tokens, cont, *weights)
    return out[:batch]


# ---------------- deterministic parameter construction --------------------------
def _init_params(key):
    keys = iter(jax.random.split(key, 64))

    def dense(shape, fan_in):
        return jax.random.normal(next(keys), shape, jnp.float32) / math.sqrt(fan_in)

    params = {'emb': jax.random.normal(next(keys), (TOTAL_TOKENS, DIM), jnp.float32) * 0.02}
    layers = []
    for _ in range(DEPTH):
        layers.append(dict(
            ln1w=jnp.ones((1, DIM), jnp.float32), ln1b=jnp.zeros((1, DIM), jnp.float32),
            wq=dense((DIM, INNER_DIM), DIM), wk=dense((DIM, INNER_DIM), DIM),
            wv=dense((DIM, INNER_DIM), DIM),
            wo=dense((INNER_DIM, DIM), INNER_DIM), bo=jnp.zeros((1, DIM), jnp.float32),
            ln2w=jnp.ones((1, DIM), jnp.float32), ln2b=jnp.zeros((1, DIM), jnp.float32),
            w1=dense((DIM, 2 * FF_MULT * DIM), DIM),
            b1=jnp.zeros((1, 2 * FF_MULT * DIM), jnp.float32),
            w2=dense((FF_MULT * DIM, DIM), FF_MULT * DIM),
            b2=jnp.zeros((1, DIM), jnp.float32),
        ))
    params['layers'] = layers
    params['head'] = dict(
        bn_g=jnp.ones((1, D1), jnp.float32), bn_b=jnp.zeros((1, D1), jnp.float32),
        bn_rm=jnp.zeros((1, D1), jnp.float32), bn_rv=jnp.ones((1, D1), jnp.float32),
        g0_wx=dense((D0, D0), D0 + D1), g0_wy=dense((D1, D0), D0 + D1),
        g0_b=jnp.zeros((1, D0), jnp.float32),
        h0_w=dense((D1, D0), D1),
        yp_w=dense((D0, D1), D0), yp_b=jnp.zeros((1, D1), jnp.float32),
        g1_wx=dense((D1, D1), 2 * D1), g1_wy=dense((D1, D1), 2 * D1),
        g1_b=jnp.zeros((1, D1), jnp.float32),
        h1_w=dense((D1, D1), D1),
        fc_w0=dense((D0, DIM_OUT), D0 + D1), fc_w1=dense((D1, DIM_OUT), D0 + D1),
        fc_b=jnp.zeros((1, DIM_OUT), jnp.float32),
    )
    return params


if __name__ == "__main__":
    key = jax.random.PRNGKey(0)
    kp, kc, kx = jax.random.split(key, 3)
    params = _init_params(kp)

    B = 2
    x_categ = jax.random.randint(kc, (B, NUM_CATEGORIES), 0,
                                 jnp.array(CATEGORIES, jnp.int32), dtype=jnp.int32)
    x_cont = jax.random.normal(kx, (B, NUM_CONTINUOUS), jnp.float32)

    logits = jax.jit(dag_tabular2_forward)(params, x_categ, x_cont)
    jax.block_until_ready(logits)
    assert logits.shape == (B, DIM_OUT)
    assert bool(jnp.all(jnp.isfinite(logits)))
    print("KERNEL_OK")
</pallas_src>

<mosaic_0001>
module attributes {stable_mosaic.version = 11 : i64} {
  func.func @fused_kernel(%arg0: i32, %arg1: memref<16x4xi32, #tpu.memory_space<vmem>>, %arg2: memref<16x6xf32, #tpu.memory_space<vmem>>, %arg3: memref<128x128xbf16, #tpu.memory_space<vmem>>, %arg4: memref<2x64x384xbf16, #tpu.memory_space<vmem>>, %arg5: memref<2x1x384xf32, #tpu.memory_space<vmem>>, %arg6: memref<2x128x64xbf16, #tpu.memory_space<vmem>>, %arg7: memref<2x1x64xf32, #tpu.memory_space<vmem>>, %arg8: memref<2x64x512xbf16, #tpu.memory_space<vmem>>, %arg9: memref<2x1x512xf32, #tpu.memory_space<vmem>>, %arg10: memref<2x256x64xbf16, #tpu.memory_space<vmem>>, %arg11: memref<2x1x64xf32, #tpu.memory_space<vmem>>, %arg12: memref<128x64xbf16, #tpu.memory_space<vmem>>, %arg13: memref<64x64xbf16, #tpu.memory_space<vmem>>, %arg14: memref<6x64xbf16, #tpu.memory_space<vmem>>, %arg15: memref<1x64xf32, #tpu.memory_space<vmem>>, %arg16: memref<6x64xbf16, #tpu.memory_space<vmem>>, %arg17: memref<64x6xbf16, #tpu.memory_space<vmem>>, %arg18: memref<6x6xbf16, #tpu.memory_space<vmem>>, %arg19: memref<6x6xbf16, #tpu.memory_space<vmem>>, %arg20: memref<6x6xbf16, #tpu.memory_space<vmem>>, %arg21: memref<1x64xf32, #tpu.memory_space<vmem>>, %arg22: memref<1x6xf32, #tpu.memory_space<vmem>>, %arg23: memref<4x6xf32, #tpu.memory_space<vmem>>, %arg24: memref<1x1xf32, #tpu.memory_space<vmem>>, %arg25: memref<16x1xf32, #tpu.memory_space<vmem>>) attributes {dimension_semantics = [#tpu.dimension_semantics<parallel>], iteration_bounds = array<i64: 2>, scalar_prefetch = 0 : i64, scratch_operands = 0 : i64, tpu.core_type = #tpu.core_type<tc>, window_params = [{transform_indices = @transform_0, window_bounds = array<i64: 16, 4>}, {transform_indices = @transform_1, window_bounds = array<i64: 16, 6>}, {pipeline_mode = #tpu.pipeline_mode<synchronous>, transform_indices = @transform_2, window_bounds = array<i64: 128, 128>}, {pipeline_mode = #tpu.pipeline_mode<synchronous>, transform_indices = @transform_3, window_bounds = array<i64: 2, 64, 384>}, {pipeline_mode = #tpu.pipeline_mode<synchronous>, transform_indices = @transform_4, window_bounds = array<i64: 2, 1, 384>}, {pipeline_mode = #tpu.pipeline_mode<synchronous>, transform_indices = @transform_5, window_bounds = array<i64: 2, 128, 64>}, {pipeline_mode = #tpu.pipeline_mode<synchronous>, transform_indices = @transform_6, window_bounds = array<i64: 2, 1, 64>}, {pipeline_mode = #tpu.pipeline_mode<synchronous>, transform_indices = @transform_7, window_bounds = array<i64: 2, 64, 512>}, {pipeline_mode = #tpu.pipeline_mode<synchronous>, transform_indices = @transform_8, window_bounds = array<i64: 2, 1, 512>}, {pipeline_mode = #tpu.pipeline_mode<synchronous>, transform_indices = @transform_9, window_bounds = array<i64: 2, 256, 64>}, {pipeline_mode = #tpu.pipeline_mode<synchronous>, transform_indices = @transform_10, window_bounds = array<i64: 2, 1, 64>}, {pipeline_mode = #tpu.pipeline_mode<synchronous>, transform_indices = @transform_11, window_bounds = array<i64: 128, 64>}, {pipeline_mode = #tpu.pipeline_mode<synchronous>, transform_indices = @transform_12, window_bounds = array<i64: 64, 64>}, {pipeline_mode = #tpu.pipeline_mode<synchronous>, transform_indices = @transform_13, window_bounds = array<i64: 6, 64>}, {pipeline_mode = #tpu.pipeline_mode<synchronous>, transform_indices = @transform_14, window_bounds = array<i64: 1, 64>}, {pipeline_mode = #tpu.pipeline_mode<synchronous>, transform_indices = @transform_15, window_bounds = array<i64: 6, 64>}, {pipeline_mode = #tpu.pipeline_mode<synchronous>, transform_indices = @transform_16, window_bounds = array<i64: 64, 6>}, {pipeline_mode = #tpu.pipeline_mode<synchronous>, transform_indices = @transform_17, window_bounds = array<i64: 6, 6>}, {pipeline_mode = #tpu.pipeline_mode<synchronous>, transform_indices = @transform_18, window_bounds = array<i64: 6, 6>}, {pipeline_mode = #tpu.pipeline_mode<synchronous>, transform_indices = @transform_19, window_bounds = array<i64: 6, 6>}, {pipeline_mode = #tpu.pipeline_mode<synchronous>, transform_indices = @transform_20, window_bounds = array<i64: 1, 64>}, {pipeline_mode = #tpu.pipeline_mode<synchronous>, transform_indices = @transform_21, window_bounds = array<i64: 1, 6>}, {pipeline_mode = #tpu.pipeline_mode<synchronous>, transform_indices = @transform_22, window_bounds = array<i64: 4, 6>}, {pipeline_mode = #tpu.pipeline_mode<synchronous>, transform_indices = @transform_23, window_bounds = array<i64: 1, 1>}, {transform_indices = @transform_24, window_bounds = array<i64: 16, 1>}]} {
    %c0 = arith.constant 0 : index
    %c0_0 = arith.constant 0 : index
    %0 = vector.load %arg3[%c0, %c0_0] : memref<128x128xbf16, #tpu.memory_space<vmem>>, vector<128x128xbf16>
    %1 = tpu.iota {dimensions = array<i32: 1>} : vector<1x128xi32>
    %c1_i32 = arith.constant 1 : i32
    %2 = vector.broadcast %c1_i32 : i32 to vector<1x128xi32>
    %3 = arith.andi %1, %2 : vector<1x128xi32>
    %c0_i32 = arith.constant 0 : i32
    %4 = vector.broadcast %c0_i32 : i32 to vector<1x128xi32>
    %5 = arith.cmpi eq, %3, %4 : vector<1x128xi32>
    %c2_i32 = arith.constant 2 : i32
    %6 = vector.broadcast %c2_i32 : i32 to vector<1x128xi32>
    %7 = arith.andi %1, %6 : vector<1x128xi32>
    %c0_i32_1 = arith.constant 0 : i32
    %8 = vector.broadcast %c0_i32_1 : i32 to vector<1x128xi32>
    %9 = arith.cmpi eq, %7, %8 : vector<1x128xi32>
    %c4_i32 = arith.constant 4 : i32
    %10 = vector.broadcast %c4_i32 : i32 to vector<1x128xi32>
    %11 = arith.andi %1, %10 : vector<1x128xi32>
    %c0_i32_2 = arith.constant 0 : i32
    %12 = vector.broadcast %c0_i32_2 : i32 to vector<1x128xi32>
    %13 = arith.cmpi eq, %11, %12 : vector<1x128xi32>
    %c0_3 = arith.constant 0 : index
    %c0_4 = arith.constant 0 : index
    %14 = vector.load %arg1[%c0_3, %c0_4] : memref<16x4xi32, #tpu.memory_space<vmem>>, vector<16x4xi32>
    %15 = tpu.iota {dimensions = array<i32: 1>} : vector<16x128xi32>
    %16 = vector.extract_strided_slice %14 {offsets = [0, 0], sizes = [16, 1], strides = [1, 1]} : vector<16x4xi32> to vector<16x1xi32>
    %17 = vector.broadcast %16 : vector<16x1xi32> to vector<16x128xi32>
    %18 = arith.cmpi eq, %15, %17 : vector<16x128xi32>
    %cst = arith.constant 1.000000e+00 : f32
    %cst_5 = arith.constant 0.000000e+00 : f32
    %19 = vector.broadcast %cst : f32 to vector<16x128xf32>
    %20 = vector.broadcast %cst_5 : f32 to vector<16x128xf32>
    %21 = arith.select %18, %19, %20 : vector<16x128xi1>, vector<16x128xf32>
    %22 = vector.extract_strided_slice %14 {offsets = [0, 1], sizes = [16, 1], strides = [1, 1]} : vector<16x4xi32> to vector<16x1xi32>
    %c32_i32 = arith.constant 32 : i32
    %23 = vector.broadcast %c32_i32 : i32 to vector<16x1xi32>
    %24 = arith.addi %22, %23 : vector<16x1xi32>
    %25 = vector.broadcast %24 : vector<16x1xi32> to vector<16x128xi32>
    %26 = arith.cmpi eq, %15, %25 : vector<16x128xi32>
    %cst_6 = arith.constant 1.000000e+00 : f32
    %cst_7 = arith.constant 0.000000e+00 : f32
    %27 = vector.broadcast %cst_6 : f32 to vector<16x128xf32>
    %28 = vector.broadcast %cst_7 : f32 to vector<16x128xf32>
    %29 = arith.select %26, %27, %28 : vector<16x128xi1>, vector<16x128xf32>
    %30 = arith.addf %21, %29 : vector<16x128xf32>
    %31 = vector.extract_strided_slice %14 {offsets = [0, 2], sizes = [16, 1], strides = [1, 1]} : vector<16x4xi32> to vector<16x1xi32>
    %c64_i32 = arith.constant 64 : i32
    %32 = vector.broadcast %c64_i32 : i32 to vector<16x1xi32>
    %33 = arith.addi %31, %32 : vector<16x1xi32>
    %34 = vector.broadcast %33 : vector<16x1xi32> to vector<16x128xi32>
    %35 = arith.cmpi eq, %15, %34 : vector<16x128xi32>
    %cst_8 = arith.constant 1.000000e+00 : f32
    %cst_9 = arith.constant 0.000000e+00 : f32
    %36 = vector.broadcast %cst_8 : f32 to vector<16x128xf32>
    %37 = vector.broadcast %cst_9 : f32 to vector<16x128xf32>
    %38 = arith.select %35, %36, %37 : vector<16x128xi1>, vector<16x128xf32>
    %39 = arith.addf %30, %38 : vector<16x128xf32>
    %40 = vector.extract_strided_slice %14 {offsets = [0, 3], sizes = [16, 1], strides = [1, 1]} : vector<16x4xi32> to vector<16x1xi32>
    %c96_i32 = arith.constant 96 : i32
    %41 = vector.broadcast %c96_i32 : i32 to vector<16x1xi32>
    %42 = arith.addi %40, %41 : vector<16x1xi32>
    %43 = vector.broadcast %42 : vector<16x1xi32> to vector<16x128xi32>
    %44 = arith.cmpi eq, %15, %43 : vector<16x128xi32>
    %cst_10 = arith.constant 1.000000e+00 : f32
    %cst_11 = arith.constant 0.000000e+00 : f32
    %45 = vector.broadcast %cst_10 : f32 to vector<16x128xf32>
    %46 = vector.broadcast %cst_11 : f32 to vector<16x128xf32>
    %47 = arith.select %44, %45, %46 : vector<16x128xi1>, vector<16x128xf32>
    %48 = arith.addf %39, %47 : vector<16x128xf32>
    %49 = arith.truncf %48 : vector<16x128xf32> to vector<16x128xbf16>
    %c0_12 = arith.constant 0 : index
    %c0_13 = arith.constant 0 : index
    %50 = vector.load %arg12[%c0_12, %c0_13] : memref<128x64xbf16, #tpu.memory_space<vmem>>, vector<128x64xbf16>
    %cst_14 = arith.constant dense<0.000000e+00> : vector<16x64xf32>
    %51 = tpu.matmul %49, %50, %cst_14 {dimension_numbers = #tpu.dot_dimension_numbers<[1], [0], [0], [1], [0, 0, 1, 1], [], []>} : vector<16x128xbf16>, vector<128x64xbf16>, vector<16x64xf32> -> vector<16x64xf32>
    %52 = arith.mulf %51, %51 : vector<16x64xf32>
    %53 = tpu.concatenate %51, %52 in 1 : vector<16x64xf32>, vector<16x64xf32> -> vector<16x128xf32>
    %54 = arith.truncf %53 : vector<16x128xf32> to vector<16x128xbf16>
    %cst_15 = arith.constant dense<0.000000e+00> : vector<16x128xf32>
    %55 = tpu.matmul %54, %0, %cst_15 {dimension_numbers = #tpu.dot_dimension_numbers<[1], [0], [0], [1], [0, 0, 1, 1], [], []>} : vector<16x128xbf16>, vector<128x128xbf16>, vector<16x128xf32> -> vector<16x128xf32>
    %56 = vector.extract_strided_slice %55 {offsets = [0, 0], sizes = [16, 64], strides = [1, 1]} : vector<16x128xf32> to vector<16x64xf32>
    %57 = vector.extract_strided_slice %55 {offsets = [0, 64], sizes = [16, 64], strides = [1, 1]} : vector<16x128xf32> to vector<16x64xf32>
    %58 = arith.mulf %56, %56 : vector<16x64xf32>
    %59 = arith.subf %57, %58 : vector<16x64xf32>
    %cst_16 = arith.constant 0.000000e+00 : f32
    %60 = vector.broadcast %cst_16 : f32 to vector<16x64xf32>
    %61 = arith.maximumf %59, %60 : vector<16x64xf32>
    %62 = arith.subf %51, %56 : vector<16x64xf32>
    %cst_17 = arith.constant 9.99999974E-6 : f32
    %63 = vector.broadcast %cst_17 : f32 to vector<16x64xf32>
    %64 = arith.addf %61, %63 : vector<16x64xf32>
    %65 = math.rsqrt %64 : vector<16x64xf32>
    %66 = arith.mulf %62, %65 : vector<16x64xf32>
    %67 = arith.truncf %66 : vector<16x64xf32> to vector<16x64xbf16>
    %c0_18 = arith.constant 0 : index
    %c0_19 = arith.constant 0 : index
    %c0_20 = arith.constant 0 : index
    %68 = vector.load %arg4[%c0_18, %c0_19, %c0_20] : memref<2x64x384xbf16, #tpu.memory_space<vmem>>, vector<1x64x384xbf16>
    %69 = vector.shape_cast %68 : vector<1x64x384xbf16> to vector<64x384xbf16>
    %cst_21 = arith.constant dense<0.000000e+00> : vector<16x384xf32>
    %70 = tpu.matmul %67, %69, %cst_21 {dimension_numbers = #tpu.dot_dimension_numbers<[1], [0], [0], [1], [0, 0, 1, 1], [], []>} : vector<16x64xbf16>, vector<64x384xbf16>, vector<16x384xf32> -> vector<16x384xf32>
    %c0_22 = arith.constant 0 : index
    %c0_23 = arith.constant 0 : index
    %c0_24 = arith.constant 0 : index
    %71 = vector.load %arg5[%c0_22, %c0_23, %c0_24] : memref<2x1x384xf32, #tpu.memory_space<vmem>>, vector<1x1x384xf32>
    %72 = vector.shape_cast %71 : vector<1x1x384xf32> to vector<1x384xf32>
    %73 = vector.broadcast %72 : vector<1x384xf32> to vector<16x384xf32>
    %74 = arith.addf %70, %73 : vector<16x384xf32>
    %75 = vector.extract_strided_slice %74 {offsets = [0, 0], sizes = [16, 128], strides = [1, 1]} : vector<16x384xf32> to vector<16x128xf32>
    %76 = vector.extract_strided_slice %74 {offsets = [0, 128], sizes = [16, 128], strides = [1, 1]} : vector<16x384xf32> to vector<16x128xf32>
    %77 = vector.extract_strided_slice %74 {offsets = [0, 256], sizes = [16, 128], strides = [1, 1]} : vector<16x384xf32> to vector<16x128xf32>
    %78 = arith.mulf %75, %76 : vector<16x128xf32>
    %c127_i32 = arith.constant 127 : i32
    %79 = tpu.dynamic_rotate %78 by %c127_i32 dim 1 : vector<16x128xf32>, i32 -> vector<16x128xf32>
    %c1_i32_25 = arith.constant 1 : i32
    %80 = tpu.dynamic_rotate %78 by %c1_i32_25 dim 1 : vector<16x128xf32>, i32 -> vector<16x128xf32>
    %81 = vector.shape_cast %5 : vector<1x128xi1> to vector<1x128xi1>
    %82 = vector.broadcast %81 : vector<1x128xi1> to vector<16x128xi1>
    %83 = arith.select %82, %79, %80 : vector<16x128xi1>, vector<16x128xf32>
    %84 = arith.addf %78, %83 : vector<16x128xf32>
    %c126_i32 = arith.constant 126 : i32
    %85 = tpu.dynamic_rotate %84 by %c126_i32 dim 1 : vector<16x128xf32>, i32 -> vector<16x128xf32>
    %c2_i32_26 = arith.constant 2 : i32
    %86 = tpu.dynamic_rotate %84 by %c2_i32_26 dim 1 : vector<16x128xf32>, i32 -> vector<16x128xf32>
    %87 = vector.shape_cast %9 : vector<1x128xi1> to vector<1x128xi1>
    %88 = vector.broadcast %87 : vector<1x128xi1> to vector<16x128xi1>
    %89 = arith.select %88, %85, %86 : vector<16x128xi1>, vector<16x128xf32>
    %90 = arith.addf %84, %89 : vector<16x128xf32>
    %c124_i32 = arith.constant 124 : i32
    %91 = tpu.dynamic_rotate %90 by %c124_i32 dim 1 : vector<16x128xf32>, i32 -> vector<16x128xf32>
    %c4_i32_27 = arith.constant 4 : i32
    %92 = tpu.dynamic_rotate %90 by %c4_i32_27 dim 1 : vector<16x128xf32>, i32 -> vector<16x128xf32>
    %93 = vector.shape_cast %13 : vector<1x128xi1> to vector<1x128xi1>
    %94 = vector.broadcast %93 : vector<1x128xi1> to vector<16x128xi1>
    %95 = arith.select %94, %91, %92 : vector<16x128xi1>, vector<16x128xf32>
    %96 = arith.addf %90, %95 : vector<16x128xf32>
    %c32_i32_28 = arith.constant 32 : i32
    %97 = tpu.dynamic_rotate %76 by %c32_i32_28 dim 1 : vector<16x128xf32>, i32 -> vector<16x128xf32>
    %c32_i32_29 = arith.constant 32 : i32
    %98 = tpu.dynamic_rotate %77 by %c32_i32_29 dim 1 : vector<16x128xf32>, i32 -> vector<16x128xf32>
    %99 = arith.mulf %75, %97 : vector<16x128xf32>
    %c127_i32_30 = arith.constant 127 : i32
    %100 = tpu.dynamic_rotate %99 by %c127_i32_30 dim 1 : vector<16x128xf32>, i32 -> vector<16x128xf32>
    %c1_i32_31 = arith.constant 1 : i32
    %101 = tpu.dynamic_rotate %99 by %c1_i32_31 dim 1 : vector<16x128xf32>, i32 -> vector<16x128xf32>
    %102 = vector.shape_cast %5 : vector<1x128xi1> to vector<1x128xi1>
    %103 = vector.broadcast %102 : vector<1x128xi1> to vector<16x128xi1>
    %104 = arith.select %103, %100, %101 : vector<16x128xi1>, vector<16x128xf32>
    %105 = arith.addf %99, %104 : vector<16x128xf32>
    %c126_i32_32 = arith.constant 126 : i32
    %106 = tpu.dynamic_rotate %105 by %c126_i32_32 dim 1 : vector<16x128xf32>, i32 -> vector<16x128xf32>
    %c2_i32_33 = arith.constant 2 : i32
    %107 = tpu.dynamic_rotate %105 by %c2_i32_33 dim 1 : vector<16x128xf32>, i32 -> vector<16x128xf32>
    %108 = vector.shape_cast %9 : vector<1x128xi1> to vector<1x128xi1>
    %109 = vector.broadcast %108 : vector<1x128xi1> to vector<16x128xi1>
    %110 = arith.select %109, %106, %107 : vector<16x128xi1>, vector<16x128xf32>
    %111 = arith.addf %105, %110 : vector<16x128xf32>
    %c124_i32_34 = arith.constant 124 : i32
    %112 = tpu.dynamic_rotate %111 by %c124_i32_34 dim 1 : vector<16x128xf32>, i32 -> vector<16x128xf32>
    %c4_i32_35 = arith.constant 4 : i32
    %113 = tpu.dynamic_rotate %111 by %c4_i32_35 dim 1 : vector<16x128xf32>, i32 -> vector<16x128xf32>
    %114 = vector.shape_cast %13 : vector<1x128xi1> to vector<1x128xi1>
    %115 = vector.broadcast %114 : vector<1x128xi1> to vector<16x128xi1>
    %116 = arith.select %115, %112, %113 : vector<16x128xi1>, vector<16x128xf32>
    %117 = arith.addf %111, %116 : vector<16x128xf32>
    %118 = arith.maximumf %96, %117 : vector<16x128xf32>
    %119 = arith.subf %96, %118 : vector<16x128xf32>
    %120 = math.exp %119 : vector<16x128xf32>
    %121 = arith.subf %117, %118 : vector<16x128xf32>
    %122 = math.exp %121 : vector<16x128xf32>
    %cst_36 = arith.constant 1.000000e+00 : f32
    %123 = vector.broadcast %cst_36 : f32 to vector<16x128xf32>
    %124 = arith.mulf %120, %123 : vector<16x128xf32>
    %125 = arith.addf %124, %122 : vector<16x128xf32>
    %126 = arith.mulf %120, %77 : vector<16x128xf32>
    %127 = arith.mulf %122, %98 : vector<16x128xf32>
    %128 = arith.addf %126, %127 : vector<16x128xf32>
    %c64_i32_37 = arith.constant 64 : i32
    %129 = tpu.dynamic_rotate %76 by %c64_i32_37 dim 1 : vector<16x128xf32>, i32 -> vector<16x128xf32>
    %c64_i32_38 = arith.constant 64 : i32
    %130 = tpu.dynamic_rotate %77 by %c64_i32_38 dim 1 : vector<16x128xf32>, i32 -> vector<16x128xf32>
    %131 = arith.mulf %75, %129 : vector<16x128xf32>
    %c127_i32_39 = arith.constant 127 : i32
    %132 = tpu.dynamic_rotate %131 by %c127_i32_39 dim 1 : vector<16x128xf32>, i32 -> vector<16x128xf32>
    %c1_i32_40 = arith.constant 1 : i32
    %133 = tpu.dynamic_rotate %131 by %c1_i32_40 dim 1 : vector<16x128xf32>, i32 -> vector<16x128xf32>
    %134 = vector.shape_cast %5 : vector<1x128xi1> to vector<1x128xi1>
    %135 = vector.broadcast %134 : vector<1x128xi1> to vector<16x128xi1>
    %136 = arith.select %135, %132, %133 : vector<16x128xi1>, vector<16x128xf32>
    %137 = arith.addf %131, %136 : vector<16x128xf32>
    %c126_i32_41 = arith.constant 126 : i32
    %138 = tpu.dynamic_rotate %137 by %c126_i32_41 dim 1 : vector<16x128xf32>, i32 -> vector<16x128xf32>
    %c2_i32_42 = arith.constant 2 : i32
    %139 = tpu.dynamic_rotate %137 by %c2_i32_42 dim 1 : vector<16x128xf32>, i32 -> vector<16x128xf32>
    %140 = vector.shape_cast %9 : vector<1x128xi1> to vector<1x128xi1>
    %141 = vector.broadcast %140 : vector<1x128xi1> to vector<16x128xi1>
    %142 = arith.select %141, %138, %139 : vector<16x128xi1>, vector<16x128xf32>
    %143 = arith.addf %137, %142 : vector<16x128xf32>
    %c124_i32_43 = arith.constant 124 : i32
    %144 = tpu.dynamic_rotate %143 by %c124_i32_43 dim 1 : vector<16x128xf32>, i32 -> vector<16x128xf32>
    %c4_i32_44 = arith.constant 4 : i32
    %145 = tpu.dynamic_rotate %143 by %c4_i32_44 dim 1 : vector<16x128xf32>, i32 -> vector<16x128xf32>
    %146 = vector.shape_cast %13 : vector<1x128xi1> to vector<1x128xi1>
    %147 = vector.broadcast %146 : vector<1x128xi1> to vector<16x128xi1>
    %148 = arith.select %147, %144, %145 : vector<16x128xi1>, vector<16x128xf32>
    %149 = arith.addf %143, %148 : vector<16x128xf32>
    %150 = arith.maximumf %118, %149 : vector<16x128xf32>
    %151 = arith.subf %118, %150 : vector<16x128xf32>
    %152 = math.exp %151 : vector<16x128xf32>
    %153 = arith.subf %149, %150 : vector<16x128xf32>
    %154 = math.exp %153 : vector<16x128xf32>
    %155 = arith.mulf %152, %125 : vector<16x128xf32>
    %156 = arith.addf %155, %154 : vector<16x128xf32>
    %157 = arith.mulf %152, %128 : vector<16x128xf32>
    %158 = arith.mulf %154, %130 : vector<16x128xf32>
    %159 = arith.addf %157, %158 : vector<16x128xf32>
    %c96_i32_45 = arith.constant 96 : i32
    %160 = tpu.dynamic_rotate %76 by %c96_i32_45 dim 1 : vector<16x128xf32>, i32 -> vector<16x128xf32>
    %c96_i32_46 = arith.constant 96 : i32
    %161 = tpu.dynamic_rotate %77 by %c96_i32_46 dim 1 : vector<16x128xf32>, i32 -> vector<16x128xf32>
    %162 = arith.mulf %75, %160 : vector<16x128xf32>
    %c127_i32_47 = arith.constant 127 : i32
    %163 = tpu.dynamic_rotate %162 by %c127_i32_47 dim 1 : vector<16x128xf32>, i32 -> vector<16x128xf32>
    %c1_i32_48 = arith.constant 1 : i32
    %164 = tpu.dynamic_rotate %162 by %c1_i32_48 dim 1 : vector<16x128xf32>, i32 -> vector<16x128xf32>
    %165 = vector.shape_cast %5 : vector<1x128xi1> to vector<1x128xi1>
    %166 = vector.broadcast %165 : vector<1x128xi1> to vector<16x128xi1>
    %167 = arith.select %166, %163, %164 : vector<16x128xi1>, vector<16x128xf32>
    %168 = arith.addf %162, %167 : vector<16x128xf32>
    %c126_i32_49 = arith.constant 126 : i32
    %169 = tpu.dynamic_rotate %168 by %c126_i32_49 dim 1 : vector<16x128xf32>, i32 -> vector<16x128xf32>
    %c2_i32_50 = arith.constant 2 : i32
    %170 = tpu.dynamic_rotate %168 by %c2_i32_50 dim 1 : vector<16x128xf32>, i32 -> vector<16x128xf32>
    %171 = vector.shape_cast %9 : vector<1x128xi1> to vector<1x128xi1>
    %172 = vector.broadcast %171 : vector<1x128xi1> to vector<16x128xi1>
    %173 = arith.select %172, %169, %170 : vector<16x128xi1>, vector<16x128xf32>
    %174 = arith.addf %168, %173 : vector<16x128xf32>
    %c124_i32_51 = arith.constant 124 : i32
    %175 = tpu.dynamic_rotate %174 by %c124_i32_51 dim 1 : vector<16x128xf32>, i32 -> vector<16x128xf32>
    %c4_i32_52 = arith.constant 4 : i32
    %176 = tpu.dynamic_rotate %174 by %c4_i32_52 dim 1 : vector<16x128xf32>, i32 -> vector<16x128xf32>
    %177 = vector.shape_cast %13 : vector<1x128xi1> to vector<1x128xi1>
    %178 = vector.broadcast %177 : vector<1x128xi1> to vector<16x128xi1>
    %179 = arith.select %178, %175, %176 : vector<16x128xi1>, vector<16x128xf32>
    %180 = arith.addf %174, %179 : vector<16x128xf32>
    %181 = arith.maximumf %150, %180 : vector<16x128xf32>
    %182 = arith.subf %150, %181 : vector<16x128xf32>
    %183 = math.exp %182 : vector<16x128xf32>
    %184 = arith.subf %180, %181 : vector<16x128xf32>
    %185 = math.exp %184 : vector<16x128xf32>
    %186 = arith.mulf %183, %156 : vector<16x128xf32>
    %187 = arith.addf %186, %185 : vector<16x128xf32>
    %188 = arith.mulf %183, %159 : vector<16x128xf32>
    %189 = arith.mulf %185, %161 : vector<16x128xf32>
    %190 = arith.addf %188, %189 : vector<16x128xf32>
    %191 = tpu.reciprocal %187 {approx = true} : vector<16x128xf32> -> vector<16x128xf32>
    %192 = arith.mulf %190, %191 : vector<16x128xf32>
    %193 = arith.truncf %192 : vector<16x128xf32> to vector<16x128xbf16>
    %c0_53 = arith.constant 0 : index
    %c0_54 = arith.constant 0 : index
    %c0_55 = arith.constant 0 : index
    %194 = vector.load %arg6[%c0_53, %c0_54, %c0_55] : memref<2x128x64xbf16, #tpu.memory_space<vmem>>, vector<1x128x64xbf16>
    %195 = vector.shape_cast %194 : vector<1x128x64xbf16> to vector<128x64xbf16>
    %cst_56 = arith.constant dense<0.000000e+00> : vector<16x64xf32>
    %196 = tpu.matmul %193, %195, %cst_56 {dimension_numbers = #tpu.dot_dimension_numbers<[1], [0], [0], [1], [0, 0, 1, 1], [], []>} : vector<16x128xbf16>, vector<128x64xbf16>, vector<16x64xf32> -> vector<16x64xf32>
    %197 = arith.addf %51, %196 : vector<16x64xf32>
    %c0_57 = arith.constant 0 : index
    %c0_58 = arith.constant 0 : index
    %c0_59 = arith.constant 0 : index
    %198 = vector.load %arg7[%c0_57, %c0_58, %c0_59] : memref<2x1x64xf32, #tpu.memory_space<vmem>>, vector<1x1x64xf32>
    %199 = vector.shape_cast %198 : vector<1x1x64xf32> to vector<1x64xf32>
    %200 = vector.broadcast %199 : vector<1x64xf32> to vector<16x64xf32>
    %201 = arith.addf %197, %200 : vector<16x64xf32>
    %202 = arith.mulf %201, %201 : vector<16x64xf32>
    %203 = tpu.concatenate %201, %202 in 1 : vector<16x64xf32>, vector<16x64xf32> -> vector<16x128xf32>
    %204 = arith.truncf %203 : vector<16x128xf32> to vector<16x128xbf16>
    %cst_60 = arith.constant dense<0.000000e+00> : vector<16x128xf32>
    %205 = tpu.matmul %204, %0, %cst_60 {dimension_numbers = #tpu.dot_dimension_numbers<[1], [0], [0], [1], [0, 0, 1, 1], [], []>} : vector<16x128xbf16>, vector<128x128xbf16>, vector<16x128xf32> -> vector<16x128xf32>
    %206 = vector.extract_strided_slice %205 {offsets = [0, 0], sizes = [16, 64], strides = [1, 1]} : vector<16x128xf32> to vector<16x64xf32>
    %207 = vector.extract_strided_slice %205 {offsets = [0, 64], sizes = [16, 64], strides = [1, 1]} : vector<16x128xf32> to vector<16x64xf32>
    %208 = arith.mulf %206, %206 : vector<16x64xf32>
    %209 = arith.subf %207, %208 : vector<16x64xf32>
    %cst_61 = arith.constant 0.000000e+00 : f32
    %210 = vector.broadcast %cst_61 : f32 to vector<16x64xf32>
    %211 = arith.maximumf %209, %210 : vector<16x64xf32>
    %212 = arith.subf %201, %206 : vector<16x64xf32>
    %cst_62 = arith.constant 9.99999974E-6 : f32
    %213 = vector.broadcast %cst_62 : f32 to vector<16x64xf32>
    %214 = arith.addf %211, %213 : vector<16x64xf32>
    %215 = math.rsqrt %214 : vector<16x64xf32>
    %216 = arith.mulf %212, %215 : vector<16x64xf32>
    %217 = arith.truncf %216 : vector<16x64xf32> to vector<16x64xbf16>
    %c0_63 = arith.constant 0 : index
    %c0_64 = arith.constant 0 : index
    %c0_65 = arith.constant 0 : index
    %218 = vector.load %arg8[%c0_63, %c0_64, %c0_65] : memref<2x64x512xbf16, #tpu.memory_space<vmem>>, vector<1x64x512xbf16>
    %219 = vector.shape_cast %218 : vector<1x64x512xbf16> to vector<64x512xbf16>
    %cst_66 = arith.constant dense<0.000000e+00> : vector<16x512xf32>
    %220 = tpu.matmul %217, %219, %cst_66 {dimension_numbers = #tpu.dot_dimension_numbers<[1], [0], [0], [1], [0, 0, 1, 1], [], []>} : vector<16x64xbf16>, vector<64x512xbf16>, vector<16x512xf32> -> vector<16x512xf32>
    %c0_67 = arith.constant 0 : index
    %c0_68 = arith.constant 0 : index
    %c0_69 = arith.constant 0 : index
    %221 = vector.load %arg9[%c0_67, %c0_68, %c0_69] : memref<2x1x512xf32, #tpu.memory_space<vmem>>, vector<1x1x512xf32>
    %222 = vector.shape_cast %221 : vector<1x1x512xf32> to vector<1x512xf32>
    %223 = vector.broadcast %222 : vector<1x512xf32> to vector<16x512xf32>
    %224 = arith.addf %220, %223 : vector<16x512xf32>
    %225 = vector.extract_strided_slice %224 {offsets = [0, 0], sizes = [16, 256], strides = [1, 1]} : vector<16x512xf32> to vector<16x256xf32>
    %226 = vector.extract_strided_slice %224 {offsets = [0, 256], sizes = [16, 256], strides = [1, 1]} : vector<16x512xf32> to vector<16x256xf32>
    %cst_70 = arith.constant 5.000000e-01 : f32
    %227 = vector.broadcast %cst_70 : f32 to vector<16x256xf32>
    %228 = arith.mulf %227, %226 : vector<16x256xf32>
    %cst_71 = arith.constant 4.471500e-02 : f32
    %229 = vector.broadcast %cst_71 : f32 to vector<16x256xf32>
    %230 = arith.mulf %229, %226 : vector<16x256xf32>
    %231 = arith.mulf %230, %226 : vector<16x256xf32>
    %232 = arith.mulf %231, %226 : vector<16x256xf32>
    %233 = arith.addf %226, %232 : vector<16x256xf32>
    %cst_72 = arith.constant 0.797884583 : f32
    %234 = vector.broadcast %cst_72 : f32 to vector<16x256xf32>
    %235 = arith.mulf %234, %233 : vector<16x256xf32>
    %236 = math.tanh %235 : vector<16x256xf32>
    %cst_73 = arith.constant 1.000000e+00 : f32
    %237 = vector.broadcast %cst_73 : f32 to vector<16x256xf32>
    %238 = arith.addf %237, %236 : vector<16x256xf32>
    %239 = arith.mulf %228, %238 : vector<16x256xf32>
    %240 = arith.mulf %225, %239 : vector<16x256xf32>
    %241 = arith.truncf %240 : vector<16x256xf32> to vector<16x256xbf16>
    %c0_74 = arith.constant 0 : index
    %c0_75 = arith.constant 0 : index
    %c0_76 = arith.constant 0 : index
    %242 = vector.load %arg10[%c0_74, %c0_75, %c0_76] : memref<2x256x64xbf16, #tpu.memory_space<vmem>>, vector<1x256x64xbf16>
    %243 = vector.shape_cast %242 : vector<1x256x64xbf16> to vector<256x64xbf16>
    %cst_77 = arith.constant dense<0.000000e+00> : vector<16x64xf32>
    %244 = tpu.matmul %241, %243, %cst_77 {dimension_numbers = #tpu.dot_dimension_numbers<[1], [0], [0], [1], [0, 0, 1, 1], [], []>} : vector<16x256xbf16>, vector<256x64xbf16>, vector<16x64xf32> -> vector<16x64xf32>
    %245 = arith.addf %201, %244 : vector<16x64xf32>
    %c0_78 = arith.constant 0 : index
    %c0_79 = arith.constant 0 : index
    %c0_80 = arith.constant 0 : index
    %246 = vector.load %arg11[%c0_78, %c0_79, %c0_80] : memref<2x1x64xf32, #tpu.memory_space<vmem>>, vector<1x1x64xf32>
    %247 = vector.shape_cast %246 : vector<1x1x64xf32> to vector<1x64xf32>
    %248 = vector.broadcast %247 : vector<1x64xf32> to vector<16x64xf32>
    %249 = arith.addf %245, %248 : vector<16x64xf32>
    %250 = arith.mulf %249, %249 : vector<16x64xf32>
    %251 = tpu.concatenate %249, %250 in 1 : vector<16x64xf32>, vector<16x64xf32> -> vector<16x128xf32>
    %252 = arith.truncf %251 : vector<16x128xf32> to vector<16x128xbf16>
    %cst_81 = arith.constant dense<0.000000e+00> : vector<16x128xf32>
    %253 = tpu.matmul %252, %0, %cst_81 {dimension_numbers = #tpu.dot_dimension_numbers<[1], [0], [0], [1], [0, 0, 1, 1], [], []>} : vector<16x128xbf16>, vector<128x128xbf16>, vector<16x128xf32> -> vector<16x128xf32>
    %254 = vector.extract_strided_slice %253 {offsets = [0, 0], sizes = [16, 64], strides = [1, 1]} : vector<16x128xf32> to vector<16x64xf32>
    %255 = vector.extract_strided_slice %253 {offsets = [0, 64], sizes = [16, 64], strides = [1, 1]} : vector<16x128xf32> to vector<16x64xf32>
    %256 = arith.mulf %254, %254 : vector<16x64xf32>
    %257 = arith.subf %255, %256 : vector<16x64xf32>
    %cst_82 = arith.constant 0.000000e+00 : f32
    %258 = vector.broadcast %cst_82 : f32 to vector<16x64xf32>
    %259 = arith.maximumf %257, %258 : vector<16x64xf32>
    %260 = arith.subf %249, %254 : vector<16x64xf32>
    %cst_83 = arith.constant 9.99999974E-6 : f32
    %261 = vector.broadcast %cst_83 : f32 to vector<16x64xf32>
    %262 = arith.addf %259, %261 : vector<16x64xf32>
    %263 = math.rsqrt %262 : vector<16x64xf32>
    %264 = arith.mulf %260, %263 : vector<16x64xf32>
    %265 = arith.truncf %264 : vector<16x64xf32> to vector<16x64xbf16>
    %c1 = arith.constant 1 : index
    %c0_84 = arith.constant 0 : index
    %c0_85 = arith.constant 0 : index
    %266 = vector.load %arg4[%c1, %c0_84, %c0_85] : memref<2x64x384xbf16, #tpu.memory_space<vmem>>, vector<1x64x384xbf16>
    %267 = vector.shape_cast %266 : vector<1x64x384xbf16> to vector<64x384xbf16>
    %cst_86 = arith.constant dense<0.000000e+00> : vector<16x384xf32>
    %268 = tpu.matmul %265, %267, %cst_86 {dimension_numbers = #tpu.dot_dimension_numbers<[1], [0], [0], [1], [0, 0, 1, 1], [], []>} : vector<16x64xbf16>, vector<64x384xbf16>, vector<16x384xf32> -> vector<16x384xf32>
    %c1_87 = arith.constant 1 : index
    %c0_88 = arith.constant 0 : index
    %c0_89 = arith.constant 0 : index
    %269 = vector.load %arg5[%c1_87, %c0_88, %c0_89] : memref<2x1x384xf32, #tpu.memory_space<vmem>>, vector<1x1x384xf32>
    %270 = vector.shape_cast %269 : vector<1x1x384xf32> to vector<1x384xf32>
    %271 = vector.broadcast %270 : vector<1x384xf32> to vector<16x384xf32>
    %272 = arith.addf %268, %271 : vector<16x384xf32>
    %273 = vector.extract_strided_slice %272 {offsets = [0, 0], sizes = [16, 128], strides = [1, 1]} : vector<16x384xf32> to vector<16x128xf32>
    %274 = vector.extract_strided_slice %272 {offsets = [0, 128], sizes = [16, 128], strides = [1, 1]} : vector<16x384xf32> to vector<16x128xf32>
    %275 = vector.extract_strided_slice %272 {offsets = [0, 256], sizes = [16, 128], strides = [1, 1]} : vector<16x384xf32> to vector<16x128xf32>
    %276 = arith.mulf %273, %274 : vector<16x128xf32>
    %c127_i32_90 = arith.constant 127 : i32
    %277 = tpu.dynamic_rotate %276 by %c127_i32_90 dim 1 : vector<16x128xf32>, i32 -> vector<16x128xf32>
    %c1_i32_91 = arith.constant 1 : i32
    %278 = tpu.dynamic_rotate %276 by %c1_i32_91 dim 1 : vector<16x128xf32>, i32 -> vector<16x128xf32>
    %279 = vector.shape_cast %5 : vector<1x128xi1> to vector<1x128xi1>
    %280 = vector.broadcast %279 : vector<1x128xi1> to vector<16x128xi1>
    %281 = arith.select %280, %277, %278 : vector<16x128xi1>, vector<16x128xf32>
    %282 = arith.addf %276, %281 : vector<16x128xf32>
    %c126_i32_92 = arith.constant 126 : i32
    %283 = tpu.dynamic_rotate %282 by %c126_i32_92 dim 1 : vector<16x128xf32>, i32 -> vector<16x128xf32>
    %c2_i32_93 = arith.constant 2 : i32
    %284 = tpu.dynamic_rotate %282 by %c2_i32_93 dim 1 : vector<16x128xf32>, i32 -> vector<16x128xf32>
    %285 = vector.shape_cast %9 : vector<1x128xi1> to vector<1x128xi1>
    %286 = vector.broadcast %285 : vector<1x128xi1> to vector<16x128xi1>
    %287 = arith.select %286, %283, %284 : vector<16x128xi1>, vector<16x128xf32>
    %288 = arith.addf %282, %287 : vector<16x128xf32>
    %c124_i32_94 = arith.constant 124 : i32
    %289 = tpu.dynamic_rotate %288 by %c124_i32_94 dim 1 : vector<16x128xf32>, i32 -> vector<16x128xf32>
    %c4_i32_95 = arith.constant 4 : i32
    %290 = tpu.dynamic_rotate %288 by %c4_i32_95 dim 1 : vector<16x128xf32>, i32 -> vector<16x128xf32>
    %291 = vector.shape_cast %13 : vector<1x128xi1> to vector<1x128xi1>
    %292 = vector.broadcast %291 : vector<1x128xi1> to vector<16x128xi1>
    %293 = arith.select %292, %289, %290 : vector<16x128xi1>, vector<16x128xf32>
    %294 = arith.addf %288, %293 : vector<16x128xf32>
    %c32_i32_96 = arith.constant 32 : i32
    %295 = tpu.dynamic_rotate %274 by %c32_i32_96 dim 1 : vector<16x128xf32>, i32 -> vector<16x128xf32>
    %c32_i32_97 = arith.constant 32 : i32
    %296 = tpu.dynamic_rotate %275 by %c32_i32_97 dim 1 : vector<16x128xf32>, i32 -> vector<16x128xf32>
    %297 = arith.mulf %273, %295 : vector<16x128xf32>
    %c127_i32_98 = arith.constant 127 : i32
    %298 = tpu.dynamic_rotate %297 by %c127_i32_98 dim 1 : vector<16x128xf32>, i32 -> vector<16x128xf32>
    %c1_i32_99 = arith.constant 1 : i32
    %299 = tpu.dynamic_rotate %297 by %c1_i32_99 dim 1 : vector<16x128xf32>, i32 -> vector<16x128xf32>
    %300 = vector.shape_cast %5 : vector<1x128xi1> to vector<1x128xi1>
    %301 = vector.broadcast %300 : vector<1x128xi1> to vector<16x128xi1>
    %302 = arith.select %301, %298, %299 : vector<16x128xi1>, vector<16x128xf32>
    %303 = arith.addf %297, %302 : vector<16x128xf32>
    %c126_i32_100 = arith.constant 126 : i32
    %304 = tpu.dynamic_rotate %303 by %c126_i32_100 dim 1 : vector<16x128xf32>, i32 -> vector<16x128xf32>
    %c2_i32_101 = arith.constant 2 : i32
    %305 = tpu.dynamic_rotate %303 by %c2_i32_101 dim 1 : vector<16x128xf32>, i32 -> vector<16x128xf32>
    %306 = vector.shape_cast %9 : vector<1x128xi1> to vector<1x128xi1>
    %307 = vector.broadcast %306 : vector<1x128xi1> to vector<16x128xi1>
    %308 = arith.select %307, %304, %305 : vector<16x128xi1>, vector<16x128xf32>
    %309 = arith.addf %303, %308 : vector<16x128xf32>
    %c124_i32_102 = arith.constant 124 : i32
    %310 = tpu.dynamic_rotate %309 by %c124_i32_102 dim 1 : vector<16x128xf32>, i32 -> vector<16x128xf32>
    %c4_i32_103 = arith.constant 4 : i32
    %311 = tpu.dynamic_rotate %309 by %c4_i32_103 dim 1 : vector<16x128xf32>, i32 -> vector<16x128xf32>
    %312 = vector.shape_cast %13 : vector<1x128xi1> to vector<1x128xi1>
    %313 = vector.broadcast %312 : vector<1x128xi1> to vector<16x128xi1>
    %314 = arith.select %313, %310, %311 : vector<16x128xi1>, vector<16x128xf32>
    %315 = arith.addf %309, %314 : vector<16x128xf32>
    %316 = arith.maximumf %294, %315 : vector<16x128xf32>
    %317 = arith.subf %294, %316 : vector<16x128xf32>
    %318 = math.exp %317 : vector<16x128xf32>
    %319 = arith.subf %315, %316 : vector<16x128xf32>
    %320 = math.exp %319 : vector<16x128xf32>
    %cst_104 = arith.constant 1.000000e+00 : f32
    %321 = vector.broadcast %cst_104 : f32 to vector<16x128xf32>
    %322 = arith.mulf %318, %321 : vector<16x128xf32>
    %323 = arith.addf %322, %320 : vector<16x128xf32>
    %324 = arith.mulf %318, %275 : vector<16x128xf32>
    %325 = arith.mulf %320, %296 : vector<16x128xf32>
    %326 = arith.addf %324, %325 : vector<16x128xf32>
    %c64_i32_105 = arith.constant 64 : i32
    %327 = tpu.dynamic_rotate %274 by %c64_i32_105 dim 1 : vector<16x128xf32>, i32 -> vector<16x128xf32>
    %c64_i32_106 = arith.constant 64 : i32
    %328 = tpu.dynamic_rotate %275 by %c64_i32_106 dim 1 : vector<16x128xf32>, i32 -> vector<16x128xf32>
    %329 = arith.mulf %273, %327 : vector<16x128xf32>
    %c127_i32_107 = arith.constant 127 : i32
    %330 = tpu.dynamic_rotate %329 by %c127_i32_107 dim 1 : vector<16x128xf32>, i32 -> vector<16x128xf32>
    %c1_i32_108 = arith.constant 1 : i32
    %331 = tpu.dynamic_rotate %329 by %c1_i32_108 dim 1 : vector<16x128xf32>, i32 -> vector<16x128xf32>
    %332 = vector.shape_cast %5 : vector<1x128xi1> to vector<1x128xi1>
    %333 = vector.broadcast %332 : vector<1x128xi1> to vector<16x128xi1>
    %334 = arith.select %333, %330, %331 : vector<16x128xi1>, vector<16x128xf32>
    %335 = arith.addf %329, %334 : vector<16x128xf32>
    %c126_i32_109 = arith.constant 126 : i32
    %336 = tpu.dynamic_rotate %335 by %c126_i32_109 dim 1 : vector<16x128xf32>, i32 -> vector<16x128xf32>
    %c2_i32_110 = arith.constant 2 : i32
    %337 = tpu.dynamic_rotate %335 by %c2_i32_110 dim 1 : vector<16x128xf32>, i32 -> vector<16x128xf32>
    %338 = vector.shape_cast %9 : vector<1x128xi1> to vector<1x128xi1>
    %339 = vector.broadcast %338 : vector<1x128xi1> to vector<16x128xi1>
    %340 = arith.select %339, %336, %337 : vector<16x128xi1>, vector<16x128xf32>
    %341 = arith.addf %335, %340 : vector<16x128xf32>
    %c124_i32_111 = arith.constant 124 : i32
    %342 = tpu.dynamic_rotate %341 by %c124_i32_111 dim 1 : vector<16x128xf32>, i32 -> vector<16x128xf32>
    %c4_i32_112 = arith.constant 4 : i32
    %343 = tpu.dynamic_rotate %341 by %c4_i32_112 dim 1 : vector<16x128xf32>, i32 -> vector<16x128xf32>
    %344 = vector.shape_cast %13 : vector<1x128xi1> to vector<1x128xi1>
    %345 = vector.broadcast %344 : vector<1x128xi1> to vector<16x128xi1>
    %346 = arith.select %345, %342, %343 : vector<16x128xi1>, vector<16x128xf32>
    %347 = arith.addf %341, %346 : vector<16x128xf32>
    %348 = arith.maximumf %316, %347 : vector<16x128xf32>
    %349 = arith.subf %316, %348 : vector<16x128xf32>
    %350 = math.exp %349 : vector<16x128xf32>
    %351 = arith.subf %347, %348 : vector<16x128xf32>
    %352 = math.exp %351 : vector<16x128xf32>
    %353 = arith.mulf %350, %323 : vector<16x128xf32>
    %354 = arith.addf %353, %352 : vector<16x128xf32>
    %355 = arith.mulf %350, %326 : vector<16x128xf32>
    %356 = arith.mulf %352, %328 : vector<16x128xf32>
    %357 = arith.addf %355, %356 : vector<16x128xf32>
    %c96_i32_113 = arith.constant 96 : i32
    %358 = tpu.dynamic_rotate %274 by %c96_i32_113 dim 1 : vector<16x128xf32>, i32 -> vector<16x128xf32>
    %c96_i32_114 = arith.constant 96 : i32
    %359 = tpu.dynamic_rotate %275 by %c96_i32_114 dim 1 : vector<16x128xf32>, i32 -> vector<16x128xf32>
    %360 = arith.mulf %273, %358 : vector<16x128xf32>
    %c127_i32_115 = arith.constant 127 : i32
    %361 = tpu.dynamic_rotate %360 by %c127_i32_115 dim 1 : vector<16x128xf32>, i32 -> vector<16x128xf32>
    %c1_i32_116 = arith.constant 1 : i32
    %362 = tpu.dynamic_rotate %360 by %c1_i32_116 dim 1 : vector<16x128xf32>, i32 -> vector<16x128xf32>
    %363 = vector.shape_cast %5 : vector<1x128xi1> to vector<1x128xi1>
    %364 = vector.broadcast %363 : vector<1x128xi1> to vector<16x128xi1>
    %365 = arith.select %364, %361, %362 : vector<16x128xi1>, vector<16x128xf32>
    %366 = arith.addf %360, %365 : vector<16x128xf32>
    %c126_i32_117 = arith.constant 126 : i32
    %367 = tpu.dynamic_rotate %366 by %c126_i32_117 dim 1 : vector<16x128xf32>, i32 -> vector<16x128xf32>
    %c2_i32_118 = arith.constant 2 : i32
    %368 = tpu.dynamic_rotate %366 by %c2_i32_118 dim 1 : vector<16x128xf32>, i32 -> vector<16x128xf32>
    %369 = vector.shape_cast %9 : vector<1x128xi1> to vector<1x128xi1>
    %370 = vector.broadcast %369 : vector<1x128xi1> to vector<16x128xi1>
    %371 = arith.select %370, %367, %368 : vector<16x128xi1>, vector<16x128xf32>
    %372 = arith.addf %366, %371 : vector<16x128xf32>
    %c124_i32_119 = arith.constant 124 : i32
    %373 = tpu.dynamic_rotate %372 by %c124_i32_119 dim 1 : vector<16x128xf32>, i32 -> vector<16x128xf32>
    %c4_i32_120 = arith.constant 4 : i32
    %374 = tpu.dynamic_rotate %372 by %c4_i32_120 dim 1 : vector<16x128xf32>, i32 -> vector<16x128xf32>
    %375 = vector.shape_cast %13 : vector<1x128xi1> to vector<1x128xi1>
    %376 = vector.broadcast %375 : vector<1x128xi1> to vector<16x128xi1>
    %377 = arith.select %376, %373, %374 : vector<16x128xi1>, vector<16x128xf32>
    %378 = arith.addf %372, %377 : vector<16x128xf32>
    %379 = arith.maximumf %348, %378 : vector<16x128xf32>
    %380 = arith.subf %348, %379 : vector<16x128xf32>
    %381 = math.exp %380 : vector<16x128xf32>
    %382 = arith.subf %378, %379 : vector<16x128xf32>
    %383 = math.exp %382 : vector<16x128xf32>
    %384 = arith.mulf %381, %354 : vector<16x128xf32>
    %385 = arith.addf %384, %383 : vector<16x128xf32>
    %386 = arith.mulf %381, %357 : vector<16x128xf32>
    %387 = arith.mulf %383, %359 : vector<16x128xf32>
    %388 = arith.addf %386, %387 : vector<16x128xf32>
    %389 = tpu.reciprocal %385 {approx = true} : vector<16x128xf32> -> vector<16x128xf32>
    %390 = arith.mulf %388, %389 : vector<16x128xf32>
    %391 = arith.truncf %390 : vector<16x128xf32> to vector<16x128xbf16>
    %c1_121 = arith.constant 1 : index
    %c0_122 = arith.constant 0 : index
    %c0_123 = arith.constant 0 : index
    %392 = vector.load %arg6[%c1_121, %c0_122, %c0_123] : memref<2x128x64xbf16, #tpu.memory_space<vmem>>, vector<1x128x64xbf16>
    %393 = vector.shape_cast %392 : vector<1x128x64xbf16> to vector<128x64xbf16>
    %cst_124 = arith.constant dense<0.000000e+00> : vector<16x64xf32>
    %394 = tpu.matmul %391, %393, %cst_124 {dimension_numbers = #tpu.dot_dimension_numbers<[1], [0], [0], [1], [0, 0, 1, 1], [], []>} : vector<16x128xbf16>, vector<128x64xbf16>, vector<16x64xf32> -> vector<16x64xf32>
    %395 = arith.addf %249, %394 : vector<16x64xf32>
    %c1_125 = arith.constant 1 : index
    %c0_126 = arith.constant 0 : index
    %c0_127 = arith.constant 0 : index
    %396 = vector.load %arg7[%c1_125, %c0_126, %c0_127] : memref<2x1x64xf32, #tpu.memory_space<vmem>>, vector<1x1x64xf32>
    %397 = vector.shape_cast %396 : vector<1x1x64xf32> to vector<1x64xf32>
    %398 = vector.broadcast %397 : vector<1x64xf32> to vector<16x64xf32>
    %399 = arith.addf %395, %398 : vector<16x64xf32>
    %400 = arith.mulf %399, %399 : vector<16x64xf32>
    %401 = tpu.concatenate %399, %400 in 1 : vector<16x64xf32>, vector<16x64xf32> -> vector<16x128xf32>
    %402 = arith.truncf %401 : vector<16x128xf32> to vector<16x128xbf16>
    %cst_128 = arith.constant dense<0.000000e+00> : vector<16x128xf32>
    %403 = tpu.matmul %402, %0, %cst_128 {dimension_numbers = #tpu.dot_dimension_numbers<[1], [0], [0], [1], [0, 0, 1, 1], [], []>} : vector<16x128xbf16>, vector<128x128xbf16>, vector<16x128xf32> -> vector<16x128xf32>
    %404 = vector.extract_strided_slice %403 {offsets = [0, 0], sizes = [16, 64], strides = [1, 1]} : vector<16x128xf32> to vector<16x64xf32>
    %405 = vector.extract_strided_slice %403 {offsets = [0, 64], sizes = [16, 64], strides = [1, 1]} : vector<16x128xf32> to vector<16x64xf32>
    %406 = arith.mulf %404, %404 : vector<16x64xf32>
    %407 = arith.subf %405, %406 : vector<16x64xf32>
    %cst_129 = arith.constant 0.000000e+00 : f32
    %408 = vector.broadcast %cst_129 : f32 to vector<16x64xf32>
    %409 = arith.maximumf %407, %408 : vector<16x64xf32>
    %410 = arith.subf %399, %404 : vector<16x64xf32>
    %cst_130 = arith.constant 9.99999974E-6 : f32
    %411 = vector.broadcast %cst_130 : f32 to vector<16x64xf32>
    %412 = arith.addf %409, %411 : vector<16x64xf32>
    %413 = math.rsqrt %412 : vector<16x64xf32>
    %414 = arith.mulf %410, %413 : vector<16x64xf32>
    %415 = arith.truncf %414 : vector<16x64xf32> to vector<16x64xbf16>
    %c1_131 = arith.constant 1 : index
    %c0_132 = arith.constant 0 : index
    %c0_133 = arith.constant 0 : index
    %416 = vector.load %arg8[%c1_131, %c0_132, %c0_133] : memref<2x64x512xbf16, #tpu.memory_space<vmem>>, vector<1x64x512xbf16>
    %417 = vector.shape_cast %416 : vector<1x64x512xbf16> to vector<64x512xbf16>
    %cst_134 = arith.constant dense<0.000000e+00> : vector<16x512xf32>
    %418 = tpu.matmul %415, %417, %cst_134 {dimension_numbers = #tpu.dot_dimension_numbers<[1], [0], [0], [1], [0, 0, 1, 1], [], []>} : vector<16x64xbf16>, vector<64x512xbf16>, vector<16x512xf32> -> vector<16x512xf32>
    %c1_135 = arith.constant 1 : index
    %c0_136 = arith.constant 0 : index
    %c0_137 = arith.constant 0 : index
    %419 = vector.load %arg9[%c1_135, %c0_136, %c0_137] : memref<2x1x512xf32, #tpu.memory_space<vmem>>, vector<1x1x512xf32>
    %420 = vector.shape_cast %419 : vector<1x1x512xf32> to vector<1x512xf32>
    %421 = vector.broadcast %420 : vector<1x512xf32> to vector<16x512xf32>
    %422 = arith.addf %418, %421 : vector<16x512xf32>
    %423 = vector.extract_strided_slice %422 {offsets = [0, 0], sizes = [16, 256], strides = [1, 1]} : vector<16x512xf32> to vector<16x256xf32>
    %424 = vector.extract_strided_slice %422 {offsets = [0, 256], sizes = [16, 256], strides = [1, 1]} : vector<16x512xf32> to vector<16x256xf32>
    %cst_138 = arith.constant 5.000000e-01 : f32
    %425 = vector.broadcast %cst_138 : f32 to vector<16x256xf32>
    %426 = arith.mulf %425, %424 : vector<16x256xf32>
    %cst_139 = arith.constant 4.471500e-02 : f32
    %427 = vector.broadcast %cst_139 : f32 to vector<16x256xf32>
    %428 = arith.mulf %427, %424 : vector<16x256xf32>
    %429 = arith.mulf %428, %424 : vector<16x256xf32>
    %430 = arith.mulf %429, %424 : vector<16x256xf32>
    %431 = arith.addf %424, %430 : vector<16x256xf32>
    %cst_140 = arith.constant 0.797884583 : f32
    %432 = vector.broadcast %cst_140 : f32 to vector<16x256xf32>
    %433 = arith.mulf %432, %431 : vector<16x256xf32>
    %434 = math.tanh %433 : vector<16x256xf32>
    %cst_141 = arith.constant 1.000000e+00 : f32
    %435 = vector.broadcast %cst_141 : f32 to vector<16x256xf32>
    %436 = arith.addf %435, %434 : vector<16x256xf32>
    %437 = arith.mulf %426, %436 : vector<16x256xf32>
    %438 = arith.mulf %423, %437 : vector<16x256xf32>
    %439 = arith.truncf %438 : vector<16x256xf32> to vector<16x256xbf16>
    %c1_142 = arith.constant 1 : index
    %c0_143 = arith.constant 0 : index
    %c0_144 = arith.constant 0 : index
    %440 = vector.load %arg10[%c1_142, %c0_143, %c0_144] : memref<2x256x64xbf16, #tpu.memory_space<vmem>>, vector<1x256x64xbf16>
    %441 = vector.shape_cast %440 : vector<1x256x64xbf16> to vector<256x64xbf16>
    %cst_145 = arith.constant dense<0.000000e+00> : vector<16x64xf32>
    %442 = tpu.matmul %439, %441, %cst_145 {dimension_numbers = #tpu.dot_dimension_numbers<[1], [0], [0], [1], [0, 0, 1, 1], [], []>} : vector<16x256xbf16>, vector<256x64xbf16>, vector<16x64xf32> -> vector<16x64xf32>
    %443 = arith.addf %399, %442 : vector<16x64xf32>
    %c1_146 = arith.constant 1 : index
    %c0_147 = arith.constant 0 : index
    %c0_148 = arith.constant 0 : index
    %444 = vector.load %arg11[%c1_146, %c0_147, %c0_148] : memref<2x1x64xf32, #tpu.memory_space<vmem>>, vector<1x1x64xf32>
    %445 = vector.shape_cast %444 : vector<1x1x64xf32> to vector<1x64xf32>
    %446 = vector.broadcast %445 : vector<1x64xf32> to vector<16x64xf32>
    %447 = arith.addf %443, %446 : vector<16x64xf32>
    %c0_149 = arith.constant 0 : index
    %c0_150 = arith.constant 0 : index
    %448 = vector.load %arg23[%c0_149, %c0_150] : memref<4x6xf32, #tpu.memory_space<vmem>>, vector<4x6xf32>
    %c0_151 = arith.constant 0 : index
    %c0_152 = arith.constant 0 : index
    %449 = vector.load %arg2[%c0_151, %c0_152] : memref<16x6xf32, #tpu.memory_space<vmem>>, vector<16x6xf32>
    %450 = vector.extract_strided_slice %448 {offsets = [0, 0], sizes = [1, 6], strides = [1, 1]} : vector<4x6xf32> to vector<1x6xf32>
    %451 = vector.broadcast %450 : vector<1x6xf32> to vector<16x6xf32>
    %452 = arith.mulf %449, %451 : vector<16x6xf32>
    %453 = vector.extract_strided_slice %448 {offsets = [1, 0], sizes = [1, 6], strides = [1, 1]} : vector<4x6xf32> to vector<1x6xf32>
    %454 = vector.broadcast %453 : vector<1x6xf32> to vector<16x6xf32>
    %455 = arith.addf %452, %454 : vector<16x6xf32>
    %456 = arith.truncf %447 : vector<16x64xf32> to vector<16x64xbf16>
    %457 = arith.truncf %455 : vector<16x6xf32> to vector<16x6xbf16>
    %c0_153 = arith.constant 0 : index
    %c0_154 = arith.constant 0 : index
    %458 = vector.load %arg13[%c0_153, %c0_154] : memref<64x64xbf16, #tpu.memory_space<vmem>>, vector<64x64xbf16>
    %cst_155 = arith.constant dense<0.000000e+00> : vector<16x64xf32>
    %459 = tpu.matmul %456, %458, %cst_155 {dimension_numbers = #tpu.dot_dimension_numbers<[1], [0], [0], [1], [0, 0, 1, 1], [], []>} : vector<16x64xbf16>, vector<64x64xbf16>, vector<16x64xf32> -> vector<16x64xf32>
    %c0_156 = arith.constant 0 : index
    %c0_157 = arith.constant 0 : index
    %460 = vector.load %arg14[%c0_156, %c0_157] : memref<6x64xbf16, #tpu.memory_space<vmem>>, vector<6x64xbf16>
    %cst_158 = arith.constant dense<0.000000e+00> : vector<16x64xf32>
    %461 = tpu.matmul %457, %460, %cst_158 {dimension_numbers = #tpu.dot_dimension_numbers<[1], [0], [0], [1], [0, 0, 1, 1], [], []>} : vector<16x6xbf16>, vector<6x64xbf16>, vector<16x64xf32> -> vector<16x64xf32>
    %462 = arith.addf %459, %461 : vector<16x64xf32>
    %c0_159 = arith.constant 0 : index
    %c0_160 = arith.constant 0 : index
    %463 = vector.load %arg15[%c0_159, %c0_160] : memref<1x64xf32, #tpu.memory_space<vmem>>, vector<1x64xf32>
    %464 = vector.broadcast %463 : vector<1x64xf32> to vector<16x64xf32>
    %465 = arith.addf %462, %464 : vector<16x64xf32>
    %cst_161 = arith.constant 0.000000e+00 : f32
    %466 = vector.broadcast %cst_161 : f32 to vector<16x64xf32>
    %467 = arith.maximumf %465, %466 : vector<16x64xf32>
    %c0_162 = arith.constant 0 : index
    %c0_163 = arith.constant 0 : index
    %468 = vector.load %arg16[%c0_162, %c0_163] : memref<6x64xbf16, #tpu.memory_space<vmem>>, vector<6x64xbf16>
    %cst_164 = arith.constant dense<0.000000e+00> : vector<16x64xf32>
    %469 = tpu.matmul %457, %468, %cst_164 {dimension_numbers = #tpu.dot_dimension_numbers<[1], [0], [0], [1], [0, 0, 1, 1], [], []>} : vector<16x6xbf16>, vector<6x64xbf16>, vector<16x64xf32> -> vector<16x64xf32>
    %470 = arith.mulf %467, %469 : vector<16x64xf32>
    %471 = arith.mulf %447, %447 : vector<16x64xf32>
    %cst_165 = arith.constant dense<0.000000e+00> : vector<16xf32>
    %472 = vector.multi_reduction <add>, %471, %cst_165 [1] : vector<16x64xf32> to vector<16xf32>
    %473 = vector.shape_cast %472 : vector<16xf32> to vector<16x1xf32>
    %474 = math.sqrt %473 : vector<16x1xf32>
    %475 = arith.mulf %470, %470 : vector<16x64xf32>
    %cst_166 = arith.constant dense<0.000000e+00> : vector<16xf32>
    %476 = vector.multi_reduction <add>, %475, %cst_166 [1] : vector<16x64xf32> to vector<16xf32>
    %477 = vector.shape_cast %476 : vector<16xf32> to vector<16x1xf32>
    %478 = math.sqrt %477 : vector<16x1xf32>
    %cst_167 = arith.constant 9.99999996E-13 : f32
    %479 = vector.broadcast %cst_167 : f32 to vector<16x1xf32>
    %480 = arith.addf %478, %479 : vector<16x1xf32>
    %481 = arith.divf %474, %480 : vector<16x1xf32>
    %cst_168 = arith.constant 2.000000e-01 : f32
    %482 = vector.broadcast %cst_168 : f32 to vector<16x1xf32>
    %483 = arith.mulf %481, %482 : vector<16x1xf32>
    %cst_169 = arith.constant 0.000000e+00 : f32
    %cst_170 = arith.constant 1.000000e+00 : f32
    %484 = vector.broadcast %cst_169 : f32 to vector<16x1xf32>
    %485 = arith.maximumf %484, %483 : vector<16x1xf32>
    %486 = vector.broadcast %cst_170 : f32 to vector<16x1xf32>
    %487 = arith.minimumf %486, %485 : vector<16x1xf32>
    %488 = vector.broadcast %487 : vector<16x1xf32> to vector<16x64xf32>
    %489 = arith.mulf %488, %470 : vector<16x64xf32>
    %490 = arith.addf %447, %489 : vector<16x64xf32>
    %c0_171 = arith.constant 0 : index
    %c0_172 = arith.constant 0 : index
    %491 = vector.load %arg17[%c0_171, %c0_172] : memref<64x6xbf16, #tpu.memory_space<vmem>>, vector<64x6xbf16>
    %cst_173 = arith.constant dense<0.000000e+00> : vector<16x6xf32>
    %492 = tpu.matmul %456, %491, %cst_173 {dimension_numbers = #tpu.dot_dimension_numbers<[1], [0], [0], [1], [0, 0, 1, 1], [], []>} : vector<16x64xbf16>, vector<64x6xbf16>, vector<16x6xf32> -> vector<16x6xf32>
    %493 = vector.extract_strided_slice %448 {offsets = [2, 0], sizes = [1, 6], strides = [1, 1]} : vector<4x6xf32> to vector<1x6xf32>
    %494 = vector.broadcast %493 : vector<1x6xf32> to vector<16x6xf32>
    %495 = arith.addf %492, %494 : vector<16x6xf32>
    %496 = arith.truncf %495 : vector<16x6xf32> to vector<16x6xbf16>
    %c0_174 = arith.constant 0 : index
    %c0_175 = arith.constant 0 : index
    %497 = vector.load %arg18[%c0_174, %c0_175] : memref<6x6xbf16, #tpu.memory_space<vmem>>, vector<6x6xbf16>
    %cst_176 = arith.constant dense<0.000000e+00> : vector<16x6xf32>
    %498 = tpu.matmul %457, %497, %cst_176 {dimension_numbers = #tpu.dot_dimension_numbers<[1], [0], [0], [1], [0, 0, 1, 1], [], []>} : vector<16x6xbf16>, vector<6x6xbf16>, vector<16x6xf32> -> vector<16x6xf32>
    %c0_177 = arith.constant 0 : index
    %c0_178 = arith.constant 0 : index
    %499 = vector.load %arg19[%c0_177, %c0_178] : memref<6x6xbf16, #tpu.memory_space<vmem>>, vector<6x6xbf16>
    %cst_179 = arith.constant dense<0.000000e+00> : vector<16x6xf32>
    %500 = tpu.matmul %496, %499, %cst_179 {dimension_numbers = #tpu.dot_dimension_numbers<[1], [0], [0], [1], [0, 0, 1, 1], [], []>} : vector<16x6xbf16>, vector<6x6xbf16>, vector<16x6xf32> -> vector<16x6xf32>
    %501 = arith.addf %498, %500 : vector<16x6xf32>
    %502 = vector.extract_strided_slice %448 {offsets = [3, 0], sizes = [1, 6], strides = [1, 1]} : vector<4x6xf32> to vector<1x6xf32>
    %503 = vector.broadcast %502 : vector<1x6xf32> to vector<16x6xf32>
    %504 = arith.addf %501, %503 : vector<16x6xf32>
    %cst_180 = arith.constant 0.000000e+00 : f32
    %505 = vector.broadcast %cst_180 : f32 to vector<16x6xf32>
    %506 = arith.maximumf %504, %505 : vector<16x6xf32>
    %c0_181 = arith.constant 0 : index
    %c0_182 = arith.constant 0 : index
    %507 = vector.load %arg20[%c0_181, %c0_182] : memref<6x6xbf16, #tpu.memory_space<vmem>>, vector<6x6xbf16>
    %cst_183 = arith.constant dense<0.000000e+00> : vector<16x6xf32>
    %508 = tpu.matmul %496, %507, %cst_183 {dimension_numbers = #tpu.dot_dimension_numbers<[1], [0], [0], [1], [0, 0, 1, 1], [], []>} : vector<16x6xbf16>, vector<6x6xbf16>, vector<16x6xf32> -> vector<16x6xf32>
    %509 = arith.mulf %506, %508 : vector<16x6xf32>
    %510 = arith.mulf %455, %455 : vector<16x6xf32>
    %cst_184 = arith.constant dense<0.000000e+00> : vector<16xf32>
    %511 = vector.multi_reduction <add>, %510, %cst_184 [1] : vector<16x6xf32> to vector<16xf32>
    %512 = vector.shape_cast %511 : vector<16xf32> to vector<16x1xf32>
    %513 = math.sqrt %512 : vector<16x1xf32>
    %514 = arith.mulf %509, %509 : vector<16x6xf32>
    %cst_185 = arith.constant dense<0.000000e+00> : vector<16xf32>
    %515 = vector.multi_reduction <add>, %514, %cst_185 [1] : vector<16x6xf32> to vector<16xf32>
    %516 = vector.shape_cast %515 : vector<16xf32> to vector<16x1xf32>
    %517 = math.sqrt %516 : vector<16x1xf32>
    %cst_186 = arith.constant 9.99999996E-13 : f32
    %518 = vector.broadcast %cst_186 : f32 to vector<16x1xf32>
    %519 = arith.addf %517, %518 : vector<16x1xf32>
    %520 = arith.divf %513, %519 : vector<16x1xf32>
    %cst_187 = arith.constant 2.000000e-01 : f32
    %521 = vector.broadcast %cst_187 : f32 to vector<16x1xf32>
    %522 = arith.mulf %520, %521 : vector<16x1xf32>
    %cst_188 = arith.constant 0.000000e+00 : f32
    %cst_189 = arith.constant 1.000000e+00 : f32
    %523 = vector.broadcast %cst_188 : f32 to vector<16x1xf32>
    %524 = arith.maximumf %523, %522 : vector<16x1xf32>
    %525 = vector.broadcast %cst_189 : f32 to vector<16x1xf32>
    %526 = arith.minimumf %525, %524 : vector<16x1xf32>
    %527 = vector.broadcast %526 : vector<16x1xf32> to vector<16x6xf32>
    %528 = arith.mulf %527, %509 : vector<16x6xf32>
    %529 = arith.addf %455, %528 : vector<16x6xf32>
    %c0_190 = arith.constant 0 : index
    %c0_191 = arith.constant 0 : index
    %530 = vector.load %arg21[%c0_190, %c0_191] : memref<1x64xf32, #tpu.memory_space<vmem>>, vector<1x64xf32>
    %531 = vector.broadcast %530 : vector<1x64xf32> to vector<16x64xf32>
    %532 = arith.mulf %490, %531 : vector<16x64xf32>
    %cst_192 = arith.constant dense<0.000000e+00> : vector<16xf32>
    %533 = vector.multi_reduction <add>, %532, %cst_192 [1] : vector<16x64xf32> to vector<16xf32>
    %534 = vector.shape_cast %533 : vector<16xf32> to vector<16x1xf32>
    %c0_193 = arith.constant 0 : index
    %c0_194 = arith.constant 0 : index
    %535 = vector.load %arg22[%c0_193, %c0_194] : memref<1x6xf32, #tpu.memory_space<vmem>>, vector<1x6xf32>
    %536 = vector.broadcast %535 : vector<1x6xf32> to vector<16x6xf32>
    %537 = arith.mulf %529, %536 : vector<16x6xf32>
    %cst_195 = arith.constant dense<0.000000e+00> : vector<16xf32>
    %538 = vector.multi_reduction <add>, %537, %cst_195 [1] : vector<16x6xf32> to vector<16xf32>
    %539 = vector.shape_cast %538 : vector<16xf32> to vector<16x1xf32>
    %540 = arith.addf %534, %539 : vector<16x1xf32>
    %c0_196 = arith.constant 0 : index
    %c0_197 = arith.constant 0 : index
    %541 = vector.load %arg24[%c0_196, %c0_197] : memref<1x1xf32, #tpu.memory_space<vmem>>, vector<1x1xf32>
    %542 = vector.broadcast %541 : vector<1x1xf32> to vector<16x1xf32>
    %543 = arith.addf %540, %542 : vector<16x1xf32>
    %544 = arith.negf %543 : vector<16x1xf32>
    %545 = math.exp %544 : vector<16x1xf32>
    %cst_198 = arith.constant 1.000000e+00 : f32
    %546 = vector.broadcast %cst_198 : f32 to vector<16x1xf32>
    %547 = arith.addf %546, %545 : vector<16x1xf32>
    %548 = arith.divf %546, %547 : vector<16x1xf32>
    %c0_199 = arith.constant 0 : index
    %c0_200 = arith.constant 0 : index
    %549 = vector.load %arg25[%c0_199, %c0_200] : memref<16x1xf32, #tpu.memory_space<vmem>>, vector<16x1xf32>
    tpu.vector_store %arg25[%c0_199, %c0_200], %548 {strides = array<i32>} : memref<16x1xf32, #tpu.memory_space<vmem>>, vector<16x1xf32>,
    return
  }
  func.func @transform_0(%arg0: i32) -> (i32, i32) {
    %c0_i32 = arith.constant 0 : i32
    %c0_i32_0 = arith.constant 0 : i32
    return %arg0, %c0_i32 : i32, i32
  }
  func.func @transform_1(%arg0: i32) -> (i32, i32) {
    %c0_i32 = arith.constant 0 : i32
    %c0_i32_0 = arith.constant 0 : i32
    return %arg0, %c0_i32 : i32, i32
  }
  func.func @transform_2(%arg0: i32) -> (i32, i32) {
    %c0_i32 = arith.constant 0 : i32
    %c0_i32_0 = arith.constant 0 : i32
    %c0_i32_1 = arith.constant 0 : i32
    return %c0_i32, %c0_i32_0 : i32, i32
  }
  func.func @transform_3(%arg0: i32) -> (i32, i32, i32) {
    %c0_i32 = arith.constant 0 : i32
    %c0_i32_0 = arith.constant 0 : i32
    %c0_i32_1 = arith.constant 0 : i32
    %c0_i32_2 = arith.constant 0 : i32
    return %c0_i32, %c0_i32_0, %c0_i32_1 : i32, i32, i32
  }
  func.func @transform_4(%arg0: i32) -> (i32, i32, i32) {
    %c0_i32 = arith.constant 0 : i32
    %c0_i32_0 = arith.constant 0 : i32
    %c0_i32_1 = arith.constant 0 : i32
    %c0_i32_2 = arith.constant 0 : i32
    return %c0_i32, %c0_i32_0, %c0_i32_1 : i32, i32, i32
  }
  func.func @transform_5(%arg0: i32) -> (i32, i32, i32) {
    %c0_i32 = arith.constant 0 : i32
    %c0_i32_0 = arith.constant 0 : i32
    %c0_i32_1 = arith.constant 0 : i32
    %c0_i32_2 = arith.constant 0 : i32
    return %c0_i32, %c0_i32_0, %c0_i32_1 : i32, i32, i32
  }
  func.func @transform_6(%arg0: i32) -> (i32, i32, i32) {
    %c0_i32 = arith.constant 0 : i32
    %c0_i32_0 = arith.constant 0 : i32
    %c0_i32_1 = arith.constant 0 : i32
    %c0_i32_2 = arith.constant 0 : i32
    return %c0_i32, %c0_i32_0, %c0_i32_1 : i32, i32, i32
  }
  func.func @transform_7(%arg0: i32) -> (i32, i32, i32) {
    %c0_i32 = arith.constant 0 : i32
    %c0_i32_0 = arith.constant 0 : i32
    %c0_i32_1 = arith.constant 0 : i32
    %c0_i32_2 = arith.constant 0 : i32
    return %c0_i32, %c0_i32_0, %c0_i32_1 : i32, i32, i32
  }
  func.func @transform_8(%arg0: i32) -> (i32, i32, i32) {
    %c0_i32 = arith.constant 0 : i32
    %c0_i32_0 = arith.constant 0 : i32
    %c0_i32_1 = arith.constant 0 : i32
    %c0_i32_2 = arith.constant 0 : i32
    return %c0_i32, %c0_i32_0, %c0_i32_1 : i32, i32, i32
  }
  func.func @transform_9(%arg0: i32) -> (i32, i32, i32) {
    %c0_i32 = arith.constant 0 : i32
    %c0_i32_0 = arith.constant 0 : i32
    %c0_i32_1 = arith.constant 0 : i32
    %c0_i32_2 = arith.constant 0 : i32
    return %c0_i32, %c0_i32_0, %c0_i32_1 : i32, i32, i32
  }
  func.func @transform_10(%arg0: i32) -> (i32, i32, i32) {
    %c0_i32 = arith.constant 0 : i32
    %c0_i32_0 = arith.constant 0 : i32
    %c0_i32_1 = arith.constant 0 : i32
    %c0_i32_2 = arith.constant 0 : i32
    return %c0_i32, %c0_i32_0, %c0_i32_1 : i32, i32, i32
  }
  func.func @transform_11(%arg0: i32) -> (i32, i32) {
    %c0_i32 = arith.constant 0 : i32
    %c0_i32_0 = arith.constant 0 : i32
    %c0_i32_1 = arith.constant 0 : i32
    return %c0_i32, %c0_i32_0 : i32, i32
  }
  func.func @transform_12(%arg0: i32) -> (i32, i32) {
    %c0_i32 = arith.constant 0 : i32
    %c0_i32_0 = arith.constant 0 : i32
    %c0_i32_1 = arith.constant 0 : i32
    return %c0_i32, %c0_i32_0 : i32, i32
  }
  func.func @transform_13(%arg0: i32) -> (i32, i32) {
    %c0_i32 = arith.constant 0 : i32
    %c0_i32_0 = arith.constant 0 : i32
    %c0_i32_1 = arith.constant 0 : i32
    return %c0_i32, %c0_i32_0 : i32, i32
  }
  func.func @transform_14(%arg0: i32) -> (i32, i32) {
    %c0_i32 = arith.constant 0 : i32
    %c0_i32_0 = arith.constant 0 : i32
    %c0_i32_1 = arith.constant 0 : i32
    return %c0_i32, %c0_i32_0 : i32, i32
  }
  func.func @transform_15(%arg0: i32) -> (i32, i32) {
    %c0_i32 = arith.constant 0 : i32
    %c0_i32_0 = arith.constant 0 : i32
    %c0_i32_1 = arith.constant 0 : i32
    return %c0_i32, %c0_i32_0 : i32, i32
  }
  func.func @transform_16(%arg0: i32) -> (i32, i32) {
    %c0_i32 = arith.constant 0 : i32
    %c0_i32_0 = arith.constant 0 : i32
    %c0_i32_1 = arith.constant 0 : i32
    return %c0_i32, %c0_i32_0 : i32, i32
  }
  func.func @transform_17(%arg0: i32) -> (i32, i32) {
    %c0_i32 = arith.constant 0 : i32
    %c0_i32_0 = arith.constant 0 : i32
    %c0_i32_1 = arith.constant 0 : i32
    return %c0_i32, %c0_i32_0 : i32, i32
  }
  func.func @transform_18(%arg0: i32) -> (i32, i32) {
    %c0_i32 = arith.constant 0 : i32
    %c0_i32_0 = arith.constant 0 : i32
    %c0_i32_1 = arith.constant 0 : i32
    return %c0_i32, %c0_i32_0 : i32, i32
  }
  func.func @transform_19(%arg0: i32) -> (i32, i32) {
    %c0_i32 = arith.constant 0 : i32
    %c0_i32_0 = arith.constant 0 : i32
    %c0_i32_1 = arith.constant 0 : i32
    return %c0_i32, %c0_i32_0 : i32, i32
  }
  func.func @transform_20(%arg0: i32) -> (i32, i32) {
    %c0_i32 = arith.constant 0 : i32
    %c0_i32_0 = arith.constant 0 : i32
    %c0_i32_1 = arith.constant 0 : i32
    return %c0_i32, %c0_i32_0 : i32, i32
  }
  func.func @transform_21(%arg0: i32) -> (i32, i32) {
    %c0_i32 = arith.constant 0 : i32
    %c0_i32_0 = arith.constant 0 : i32
    %c0_i32_1 = arith.constant 0 : i32
    return %c0_i32, %c0_i32_0 : i32, i32
  }
  func.func @transform_22(%arg0: i32) -> (i32, i32) {
    %c0_i32 = arith.constant 0 : i32
    %c0_i32_0 = arith.constant 0 : i32
    %c0_i32_1 = arith.constant 0 : i32
    return %c0_i32, %c0_i32_0 : i32, i32
  }
  func.func @transform_23(%arg0: i32) -> (i32, i32) {
    %c0_i32 = arith.constant 0 : i32
    %c0_i32_0 = arith.constant 0 : i32
    %c0_i32_1 = arith.constant 0 : i32
    return %c0_i32, %c0_i32_0 : i32, i32
  }
  func.func @transform_24(%arg0: i32) -> (i32, i32) {
    %c0_i32 = arith.constant 0 : i32
    %c0_i32_0 = arith.constant 0 : i32
    return %arg0, %c0_i32 : i32, i32
  }
}

</mosaic_0001>

<llo_original>
// kernel: dag_tabular2_forward.1
$region0: #{dag_tabular2_forward.1}
  #allocation0 [shape = 'u32[]', space=smem, size = 0x4, offset = 0x4, fixed_abs, tag = 'smem constant byte address 0x4 - core index']
  #allocation1 [shape = 'u32[144,128]{1,0:T(1,128)}', space=vmem, size = 0x12000, scoped, tag = 'internal scratch']
  #allocation2 [shape = 'f32[1,1]{1,0:T(1,128)S(1)}', space=vmem, size = 0x200, scoped, tag = 'scoped memory for dag_tabular2_forward.1']
  %s0 = inlined_call_operand.vmem [shape: s32[32,4], index: 0, kind: input, shape index: {}]
  %s1 = inlined_call_operand.vmem [shape: f32[32,6], index: 1, kind: input, shape index: {}]
  %s2 = inlined_call_operand.vmem [shape: bf16[128,128], index: 2, kind: input, shape index: {}]
  %s3 = inlined_call_operand.vmem [shape: bf16[2,64,384], index: 3, kind: input, shape index: {}]
  %s4 = inlined_call_operand.vmem [shape: f32[2,1,384], index: 4, kind: input, shape index: {}]
  %s5 = inlined_call_operand.vmem [shape: bf16[2,128,64], index: 5, kind: input, shape index: {}]
  %s6 = inlined_call_operand.vmem [shape: f32[2,1,64], index: 6, kind: input, shape index: {}]
  %s7 = inlined_call_operand.vmem [shape: bf16[2,64,512], index: 7, kind: input, shape index: {}]
  %s8 = inlined_call_operand.vmem [shape: f32[2,1,512], index: 8, kind: input, shape index: {}]
  %s9 = inlined_call_operand.vmem [shape: bf16[2,256,64], index: 9, kind: input, shape index: {}]
  %s10 = inlined_call_operand.vmem [shape: f32[2,1,64], index: 10, kind: input, shape index: {}]
  %s11 = inlined_call_operand.vmem [shape: bf16[128,64], index: 11, kind: input, shape index: {}]
  %s12 = inlined_call_operand.vmem [shape: bf16[64,64], index: 12, kind: input, shape index: {}]
  %s13 = inlined_call_operand.vmem [shape: bf16[6,64], index: 13, kind: input, shape index: {}]
  %s14 = inlined_call_operand.vmem [shape: f32[1,64], index: 14, kind: input, shape index: {}]
  %s15 = inlined_call_operand.vmem [shape: bf16[6,64], index: 15, kind: input, shape index: {}]
  %s16 = inlined_call_operand.vmem [shape: bf16[64,6], index: 16, kind: input, shape index: {}]
  %s17 = inlined_call_operand.vmem [shape: bf16[6,6], index: 17, kind: input, shape index: {}]
  %s18 = inlined_call_operand.vmem [shape: bf16[6,6], index: 18, kind: input, shape index: {}]
  %s19 = inlined_call_operand.vmem [shape: bf16[6,6], index: 19, kind: input, shape index: {}]
  %s20 = inlined_call_operand.vmem [shape: f32[1,64], index: 20, kind: input, shape index: {}]
  %s21 = inlined_call_operand.vmem [shape: f32[1,6], index: 21, kind: input, shape index: {}]
  %s22 = inlined_call_operand.vmem [shape: f32[4,6], index: 22, kind: input, shape index: {}]
  %s23 = inlined_call_operand.<no memory space> [shape: f32[1,1], index: 23, kind: input, shape index: {}]
  %s24 = inlined_call_operand.vmem [shape: f32[32,1], index: 24, kind: output, shape index: {}]
  %s25 = sld [smem:[#allocation0]]
  $region129: #{dag_tabular2_forward.1} parent=0
    _
  %s27 = ssub.s32 1, %s25
  %s28 = scalar_select 0, %s27, %s25
  %v29 = vstv %s23
  %30 = vst [vmem:[#allocation2] sm:$0x1] %v29
  loop: start=0, step=1, limit=4
  $region2: #{dag_tabular2_forward.1} parent=0 // loop_pre_header
    _
  $region3: #{dag_tabular2_forward.1} parent=0 // loop_header
    %s32 = sphi 0, %s36
    %p33 = scmp.ge.s32.totalorder %s32, 4
    %s42 = sphi 0, %s44
    %s45 = sphi 0, %s42
    %s46 = sphi 0, %s45
    %s62 = sphi 0, %s46
    %s68 = sphi 0, %s70
    %s71 = sphi 0, %s68
    %s72 = sphi 0, %s71
    %s88 = sphi 0, %s72
    %s92 = sphi 0, %s92
    %s94 = sphi 0, %s92
    %s95 = sphi 0, %s94
    %s109 = sphi 0, %s95
    %s113 = sphi 0, %s113
    %s115 = sphi 0, %s113
    %s116 = sphi 0, %s115
    %s130 = sphi 0, %s116
    %s134 = sphi 0, %s134
    %s136 = sphi 0, %s134
    %s137 = sphi 0, %s136
    %s151 = sphi 0, %s137
    %s155 = sphi 0, %s155
    %s157 = sphi 0, %s155
    %s158 = sphi 0, %s157
    %s172 = sphi 0, %s158
    %s176 = sphi 0, %s176
    %s178 = sphi 0, %s176
    %s179 = sphi 0, %s178
    %s193 = sphi 0, %s179
    %s197 = sphi 0, %s197
    %s199 = sphi 0, %s197
    %s200 = sphi 0, %s199
    %s214 = sphi 0, %s200
    %s218 = sphi 0, %s218
    %s220 = sphi 0, %s218
    %s221 = sphi 0, %s220
    %s235 = sphi 0, %s221
    %s239 = sphi 0, %s239
    %s241 = sphi 0, %s239
    %s242 = sphi 0, %s241
    %s256 = sphi 0, %s242
    %s260 = sphi 0, %s260
    %s262 = sphi 0, %s260
    %s263 = sphi 0, %s262
    %s277 = sphi 0, %s263
    %s281 = sphi 0, %s281
    %s283 = sphi 0, %s281
    %s284 = sphi 0, %s283
    %s298 = sphi 0, %s284
    %s302 = sphi 0, %s302
    %s304 = sphi 0, %s302
    %s305 = sphi 0, %s304
    %s319 = sphi 0, %s305
    %s323 = sphi 0, %s323
    %s325 = sphi 0, %s323
    %s326 = sphi 0, %s325
    %s340 = sphi 0, %s326
    %s344 = sphi 0, %s344
    %s346 = sphi 0, %s344
    %s347 = sphi 0, %s346
    %s361 = sphi 0, %s347
    %s365 = sphi 0, %s365
    %s367 = sphi 0, %s365
    %s368 = sphi 0, %s367
    %s382 = sphi 0, %s368
    %s386 = sphi 0, %s386
    %s388 = sphi 0, %s386
    %s389 = sphi 0, %s388
    %s403 = sphi 0, %s389
    %s407 = sphi 0, %s407
    %s409 = sphi 0, %s407
    %s410 = sphi 0, %s409
    %s424 = sphi 0, %s410
    %s428 = sphi 0, %s428
    %s430 = sphi 0, %s428
    %s431 = sphi 0, %s430
    %s445 = sphi 0, %s431
    %s449 = sphi 0, %s449
    %s451 = sphi 0, %s449
    %s452 = sphi 0, %s451
    %s466 = sphi 0, %s452
    %s470 = sphi 0, %s470
    %s472 = sphi 0, %s470
    %s473 = sphi 0, %s472
    %s487 = sphi 0, %s473
    %s491 = sphi 0, %s491
    %s493 = sphi 0, %s491
    %s494 = sphi 0, %s493
    %s508 = sphi 0, %s494
    %s512 = sphi 0, %s512
    %s514 = sphi 0, %s512
    %s515 = sphi 0, %s514
    %s529 = sphi 0, %s515
    %s533 = sphi 0, %s533
    %s535 = sphi 0, %s533
    %s536 = sphi 0, %s535
    %s550 = sphi 0, %s536
    %s556 = sphi 0, %s558
    %s559 = sphi 0, %s556
    %s560 = sphi 0, %s559
    %s576 = sphi 0, %s560
  $region4: #{dag_tabular2_forward.1} parent=0 // loop_header_branch
    %35 = sbr.rel (%p33) target = $region8
  $region5: #{dag_tabular2_forward.1} parent=0 // loop_body
    %s37 = ssub.s32 %s32, 1
    %s38 = ssub.s32 %s32, 2
    %s39 = sadd.s32 %s32, 1
    %s40 = ssub.s32 %s32, %s39
    %p41 = scmp.eq.s32.totalorder %s40, 0
    %s43 = sadd.s32 %s42, 1
    %s44 = scalar_select %p41, %s42, %s43
    %p47 = pneg %p41
    %p48 = scmp.eq.s32.totalorder %s32, 1
    %p49 = por %p47, %p48
    %p50 = scmp.ne.s32.totalorder %s42, %s45
    %p51 = scmp.eq.s32.totalorder %s32, 0
    %p52 = por %p50, %p51
    %p53 = scmp.ne.s32.totalorder %s42, %s45
    %p54 = scmp.eq.s32.totalorder %s37, 1
    %p55 = por %p53, %p54
    %p56 = scmp.ne.s32.totalorder %s45, %s46
    %p57 = scmp.eq.s32.totalorder %s37, 0
    %p58 = por %p56, %p57
    %p59 = scmp.ne.s32.totalorder %s45, %s46
    %p60 = scmp.eq.s32.totalorder %s38, 1
    %p61 = por %p59, %p60
    %p63 = scmp.ne.s32.totalorder %s46, %s62
    %p64 = scmp.eq.s32.totalorder %s38, 0
    %p65 = por %p63, %p64
    %s66 = ssub.s32 %s32, %s39
    %p67 = scmp.eq.s32.totalorder %s66, 0
    %s69 = sadd.s32 %s68, 1
    %s70 = scalar_select %p67, %s68, %s69
    %p73 = pneg %p67
    %p74 = scmp.eq.s32.totalorder %s32, 1
    %p75 = por %p73, %p74
    %p76 = scmp.ne.s32.totalorder %s68, %s71
    %p77 = scmp.eq.s32.totalorder %s32, 0
    %p78 = por %p76, %p77
    %p79 = scmp.ne.s32.totalorder %s68, %s71
    %p80 = scmp.eq.s32.totalorder %s37, 1
    %p81 = por %p79, %p80
    %p82 = scmp.ne.s32.totalorder %s71, %s72
    %p83 = scmp.eq.s32.totalorder %s37, 0
    %p84 = por %p82, %p83
    %p85 = scmp.ne.s32.totalorder %s71, %s72
    %p86 = scmp.eq.s32.totalorder %s38, 1
    %p87 = por %p85, %p86
    %p89 = scmp.ne.s32.totalorder %s72, %s88
    %p90 = scmp.eq.s32.totalorder %s38, 0
    %p91 = por %p89, %p90
    %s93 = sadd.s32 %s92, 1
    %p96 = scmp.eq.s32.totalorder %s32, 1
    %p97 = scmp.ne.s32.totalorder %s92, %s94
    %p98 = scmp.eq.s32.totalorder %s32, 0
    %p99 = por %p97, %p98
    %p100 = scmp.ne.s32.totalorder %s92, %s94
    %p101 = scmp.eq.s32.totalorder %s37, 1
    %p102 = por %p100, %p101
    %p103 = scmp.ne.s32.totalorder %s94, %s95
    %p104 = scmp.eq.s32.totalorder %s37, 0
    %p105 = por %p103, %p104
    %p106 = scmp.ne.s32.totalorder %s94, %s95
    %p107 = scmp.eq.s32.totalorder %s38, 1
    %p108 = por %p106, %p107
    %p110 = scmp.ne.s32.totalorder %s95, %s109
    %p111 = scmp.eq.s32.totalorder %s38, 0
    %p112 = por %p110, %p111
    %s114 = sadd.s32 %s113, 1
    %p117 = scmp.eq.s32.totalorder %s32, 1
    %p118 = scmp.ne.s32.totalorder %s113, %s115
    %p119 = scmp.eq.s32.totalorder %s32, 0
    %p120 = por %p118, %p119
    %p121 = scmp.ne.s32.totalorder %s113, %s115
    %p122 = scmp.eq.s32.totalorder %s37, 1
    %p123 = por %p121, %p122
    %p124 = scmp.ne.s32.totalorder %s115, %s116
    %p125 = scmp.eq.s32.totalorder %s37, 0
    %p126 = por %p124, %p125
    %p127 = scmp.ne.s32.totalorder %s115, %s116
    %p128 = scmp.eq.s32.totalorder %s38, 1
    %p129 = por %p127, %p128
    %p131 = scmp.ne.s32.totalorder %s116, %s130
    %p132 = scmp.eq.s32.totalorder %s38, 0
    %p133 = por %p131, %p132
    %s135 = sadd.s32 %s134, 1
    %p138 = scmp.eq.s32.totalorder %s32, 1
    %p139 = scmp.ne.s32.totalorder %s134, %s136
    %p140 = scmp.eq.s32.totalorder %s32, 0
    %p141 = por %p139, %p140
    %p142 = scmp.ne.s32.totalorder %s134, %s136
    %p143 = scmp.eq.s32.totalorder %s37, 1
    %p144 = por %p142, %p143
    %p145 = scmp.ne.s32.totalorder %s136, %s137
    %p146 = scmp.eq.s32.totalorder %s37, 0
    %p147 = por %p145, %p146
    %p148 = scmp.ne.s32.totalorder %s136, %s137
    %p149 = scmp.eq.s32.totalorder %s38, 1
    %p150 = por %p148, %p149
    %p152 = scmp.ne.s32.totalorder %s137, %s151
    %p153 = scmp.eq.s32.totalorder %s38, 0
    %p154 = por %p152, %p153
    %s156 = sadd.s32 %s155, 1
    %p159 = scmp.eq.s32.totalorder %s32, 1
    %p160 = scmp.ne.s32.totalorder %s155, %s157
    %p161 = scmp.eq.s32.totalorder %s32, 0
    %p162 = por %p160, %p161
    %p163 = scmp.ne.s32.totalorder %s155, %s157
    %p164 = scmp.eq.s32.totalorder %s37, 1
    %p165 = por %p163, %p164
    %p166 = scmp.ne.s32.totalorder %s157, %s158
    %p167 = scmp.eq.s32.totalorder %s37, 0
    %p168 = por %p166, %p167
    %p169 = scmp.ne.s32.totalorder %s157, %s158
    %p170 = scmp.eq.s32.totalorder %s38, 1
    %p171 = por %p169, %p170
    %p173 = scmp.ne.s32.totalorder %s158, %s172
    %p174 = scmp.eq.s32.totalorder %s38, 0
    %p175 = por %p173, %p174
    %s177 = sadd.s32 %s176, 1
    %p180 = scmp.eq.s32.totalorder %s32, 1
    %p181 = scmp.ne.s32.totalorder %s176, %s178
    %p182 = scmp.eq.s32.totalorder %s32, 0
    %p183 = por %p181, %p182
    %p184 = scmp.ne.s32.totalorder %s176, %s178
    %p185 = scmp.eq.s32.totalorder %s37, 1
    %p186 = por %p184, %p185
    %p187 = scmp.ne.s32.totalorder %s178, %s179
    %p188 = scmp.eq.s32.totalorder %s37, 0
    %p189 = por %p187, %p188
    %p190 = scmp.ne.s32.totalorder %s178, %s179
    %p191 = scmp.eq.s32.totalorder %s38, 1
    %p192 = por %p190, %p191
    %p194 = scmp.ne.s32.totalorder %s179, %s193
    %p195 = scmp.eq.s32.totalorder %s38, 0
    %p196 = por %p194, %p195
    %s198 = sadd.s32 %s197, 1
    %p201 = scmp.eq.s32.totalorder %s32, 1
    %p202 = scmp.ne.s32.totalorder %s197, %s199
    %p203 = scmp.eq.s32.totalorder %s32, 0
    %p204 = por %p202, %p203
    %p205 = scmp.ne.s32.totalorder %s197, %s199
    %p206 = scmp.eq.s32.totalorder %s37, 1
    %p207 = por %p205, %p206
    %p208 = scmp.ne.s32.totalorder %s199, %s200
    %p209 = scmp.eq.s32.totalorder %s37, 0
    %p210 = por %p208, %p209
    %p211 = scmp.ne.s32.totalorder %s199, %s200
    %p212 = scmp.eq.s32.totalorder %s38, 1
    %p213 = por %p211, %p212
    %p215 = scmp.ne.s32.totalorder %s200, %s214
    %p216 = scmp.eq.s32.totalorder %s38, 0
    %p217 = por %p215, %p216
    %s219 = sadd.s32 %s218, 1
    %p222 = scmp.eq.s32.totalorder %s32, 1
    %p223 = scmp.ne.s32.totalorder %s218, %s220
    %p224 = scmp.eq.s32.totalorder %s32, 0
    %p225 = por %p223, %p224
    %p226 = scmp.ne.s32.totalorder %s218, %s220
    %p227 = scmp.eq.s32.totalorder %s37, 1
    %p228 = por %p226, %p227
    %p229 = scmp.ne.s32.totalorder %s220, %s221
    %p230 = scmp.eq.s32.totalorder %s37, 0
    %p231 = por %p229, %p230
    %p232 = scmp.ne.s32.totalorder %s220, %s221
    %p233 = scmp.eq.s32.totalorder %s38, 1
    %p234 = por %p232, %p233
    %p236 = scmp.ne.s32.totalorder %s221, %s235
    %p237 = scmp.eq.s32.totalorder %s38, 0
    %p238 = por %p236, %p237
    %s240 = sadd.s32 %s239, 1
    %p243 = scmp.eq.s32.totalorder %s32, 1
    %p244 = scmp.ne.s32.totalorder %s239, %s241
    %p245 = scmp.eq.s32.totalorder %s32, 0
    %p246 = por %p244, %p245
    %p247 = scmp.ne.s32.totalorder %s239, %s241
    %p248 = scmp.eq.s32.totalorder %s37, 1
    %p249 = por %p247, %p248
    %p250 = scmp.ne.s32.totalorder %s241, %s242
    %p251 = scmp.eq.s32.totalorder %s37, 0
    %p252 = por %p250, %p251
    %p253 = scmp.ne.s32.totalorder %s241, %s242
    %p254 = scmp.eq.s32.totalorder %s38, 1
    %p255 = por %p253, %p254
    %p257 = scmp.ne.s32.totalorder %s242, %s256
    %p258 = scmp.eq.s32.totalorder %s38, 0
    %p259 = por %p257, %p258
    %s261 = sadd.s32 %s260, 1
    %p264 = scmp.eq.s32.totalorder %s32, 1
    %p265 = scmp.ne.s32.totalorder %s260, %s262
    %p266 = scmp.eq.s32.totalorder %s32, 0
    %p267 = por %p265, %p266
    %p268 = scmp.ne.s32.totalorder %s260, %s262
    %p269 = scmp.eq.s32.totalorder %s37, 1
    %p270 = por %p268, %p269
    %p271 = scmp.ne.s32.totalorder %s262, %s263
    %p272 = scmp.eq.s32.totalorder %s37, 0
    %p273 = por %p271, %p272
    %p274 = scmp.ne.s32.totalorder %s262, %s263
    %p275 = scmp.eq.s32.totalorder %s38, 1
    %p276 = por %p274, %p275
    %p278 = scmp.ne.s32.totalorder %s263, %s277
    %p279 = scmp.eq.s32.totalorder %s38, 0
    %p280 = por %p278, %p279
    %s282 = sadd.s32 %s281, 1
    %p285 = scmp.eq.s32.totalorder %s32, 1
    %p286 = scmp.ne.s32.totalorder %s281, %s283
    %p287 = scmp.eq.s32.totalorder %s32, 0
    %p288 = por %p286, %p287
    %p289 = scmp.ne.s32.totalorder %s281, %s283
    %p290 = scmp.eq.s32.totalorder %s37, 1
    %p291 = por %p289, %p290
    %p292 = scmp.ne.s32.totalorder %s283, %s284
    %p293 = scmp.eq.s32.totalorder %s37, 0
    %p294 = por %p292, %p293
    %p295 = scmp.ne.s32.totalorder %s283, %s284
    %p296 = scmp.eq.s32.totalorder %s38, 1
    %p297 = por %p295, %p296
    %p299 = scmp.ne.s32.totalorder %s284, %s298
    %p300 = scmp.eq.s32.totalorder %s38, 0
    %p301 = por %p299, %p300
    %s303 = sadd.s32 %s302, 1
    %p306 = scmp.eq.s32.totalorder %s32, 1
    %p307 = scmp.ne.s32.totalorder %s302, %s304
    %p308 = scmp.eq.s32.totalorder %s32, 0
    %p309 = por %p307, %p308
    %p310 = scmp.ne.s32.totalorder %s302, %s304
    %p311 = scmp.eq.s32.totalorder %s37, 1
    %p312 = por %p310, %p311
    %p313 = scmp.ne.s32.totalorder %s304, %s305
    %p314 = scmp.eq.s32.totalorder %s37, 0
    %p315 = por %p313, %p314
    %p316 = scmp.ne.s32.totalorder %s304, %s305
    %p317 = scmp.eq.s32.totalorder %s38, 1
    %p318 = por %p316, %p317
    %p320 = scmp.ne.s32.totalorder %s305, %s319
    %p321 = scmp.eq.s32.totalorder %s38, 0
    %p322 = por %p320, %p321
    %s324 = sadd.s32 %s323, 1
    %p327 = scmp.eq.s32.totalorder %s32, 1
    %p328 = scmp.ne.s32.totalorder %s323, %s325
    %p329 = scmp.eq.s32.totalorder %s32, 0
    %p330 = por %p328, %p329
    %p331 = scmp.ne.s32.totalorder %s323, %s325
    %p332 = scmp.eq.s32.totalorder %s37, 1
    %p333 = por %p331, %p332
    %p334 = scmp.ne.s32.totalorder %s325, %s326
    %p335 = scmp.eq.s32.totalorder %s37, 0
    %p336 = por %p334, %p335
    %p337 = scmp.ne.s32.totalorder %s325, %s326
    %p338 = scmp.eq.s32.totalorder %s38, 1
    %p339 = por %p337, %p338
    %p341 = scmp.ne.s32.totalorder %s326, %s340
    %p342 = scmp.eq.s32.totalorder %s38, 0
    %p343 = por %p341, %p342
    %s345 = sadd.s32 %s344, 1
    %p348 = scmp.eq.s32.totalorder %s32, 1
    %p349 = scmp.ne.s32.totalorder %s344, %s346
    %p350 = scmp.eq.s32.totalorder %s32, 0
    %p351 = por %p349, %p350
    %p352 = scmp.ne.s32.totalorder %s344, %s346
    %p353 = scmp.eq.s32.totalorder %s37, 1
    %p354 = por %p352, %p353
    %p355 = scmp.ne.s32.totalorder %s346, %s347
    %p356 = scmp.eq.s32.totalorder %s37, 0
    %p357 = por %p355, %p356
    %p358 = scmp.ne.s32.totalorder %s346, %s347
    %p359 = scmp.eq.s32.totalorder %s38, 1
    %p360 = por %p358, %p359
    %p362 = scmp.ne.s32.totalorder %s347, %s361
    %p363 = scmp.eq.s32.totalorder %s38, 0
    %p364 = por %p362, %p363
    %s366 = sadd.s32 %s365, 1
    %p369 = scmp.eq.s32.totalorder %s32, 1
    %p370 = scmp.ne.s32.totalorder %s365, %s367
    %p371 = scmp.eq.s32.totalorder %s32, 0
    %p372 = por %p370, %p371
    %p373 = scmp.ne.s32.totalorder %s365, %s367
    %p374 = scmp.eq.s32.totalorder %s37, 1
    %p375 = por %p373, %p374
    %p376 = scmp.ne.s32.totalorder %s367, %s368
    %p377 = scmp.eq.s32.totalorder %s37, 0
    %p378 = por %p376, %p377
    %p379 = scmp.ne.s32.totalorder %s367, %s368
    %p380 = scmp.eq.s32.totalorder %s38, 1
    %p381 = por %p379, %p380
    %p383 = scmp.ne.s32.totalorder %s368, %s382
    %p384 = scmp.eq.s32.totalorder %s38, 0
    %p385 = por %p383, %p384
    %s387 = sadd.s32 %s386, 1
    %p390 = scmp.eq.s32.totalorder %s32, 1
    %p391 = scmp.ne.s32.totalorder %s386, %s388
    %p392 = scmp.eq.s32.totalorder %s32, 0
    %p393 = por %p391, %p392
    %p394 = scmp.ne.s32.totalorder %s386, %s388
    %p395 = scmp.eq.s32.totalorder %s37, 1
    %p396 = por %p394, %p395
    %p397 = scmp.ne.s32.totalorder %s388, %s389
    %p398 = scmp.eq.s32.totalorder %s37, 0
    %p399 = por %p397, %p398
    %p400 = scmp.ne.s32.totalorder %s388, %s389
    %p401 = scmp.eq.s32.totalorder %s38, 1
    %p402 = por %p400, %p401
    %p404 = scmp.ne.s32.totalorder %s389, %s403
    %p405 = scmp.eq.s32.totalorder %s38, 0
    %p406 = por %p404, %p405
    %s408 = sadd.s32 %s407, 1
    %p411 = scmp.eq.s32.totalorder %s32, 1
    %p412 = scmp.ne.s32.totalorder %s407, %s409
    %p413 = scmp.eq.s32.totalorder %s32, 0
    %p414 = por %p412, %p413
    %p415 = scmp.ne.s32.totalorder %s407, %s409
    %p416 = scmp.eq.s32.totalorder %s37, 1
    %p417 = por %p415, %p416
    %p418 = scmp.ne.s32.totalorder %s409, %s410
    %p419 = scmp.eq.s32.totalorder %s37, 0
    %p420 = por %p418, %p419
    %p421 = scmp.ne.s32.totalorder %s409, %s410
    %p422 = scmp.eq.s32.totalorder %s38, 1
    %p423 = por %p421, %p422
    %p425 = scmp.ne.s32.totalorder %s410, %s424
    %p426 = scmp.eq.s32.totalorder %s38, 0
    %p427 = por %p425, %p426
    %s429 = sadd.s32 %s428, 1
    %p432 = scmp.eq.s32.totalorder %s32, 1
    %p433 = scmp.ne.s32.totalorder %s428, %s430
    %p434 = scmp.eq.s32.totalorder %s32, 0
    %p435 = por %p433, %p434
    %p436 = scmp.ne.s32.totalorder %s428, %s430
    %p437 = scmp.eq.s32.totalorder %s37, 1
    %p438 = por %p436, %p437
    %p439 = scmp.ne.s32.totalorder %s430, %s431
    %p440 = scmp.eq.s32.totalorder %s37, 0
    %p441 = por %p439, %p440
    %p442 = scmp.ne.s32.totalorder %s430, %s431
    %p443 = scmp.eq.s32.totalorder %s38, 1
    %p444 = por %p442, %p443
    %p446 = scmp.ne.s32.totalorder %s431, %s445
    %p447 = scmp.eq.s32.totalorder %s38, 0
    %p448 = por %p446, %p447
    %s450 = sadd.s32 %s449, 1
    %p453 = scmp.eq.s32.totalorder %s32, 1
    %p454 = scmp.ne.s32.totalorder %s449, %s451
    %p455 = scmp.eq.s32.totalorder %s32, 0
    %p456 = por %p454, %p455
    %p457 = scmp.ne.s32.totalorder %s449, %s451
    %p458 = scmp.eq.s32.totalorder %s37, 1
    %p459 = por %p457, %p458
    %p460 = scmp.ne.s32.totalorder %s451, %s452
    %p461 = scmp.eq.s32.totalorder %s37, 0
    %p462 = por %p460, %p461
    %p463 = scmp.ne.s32.totalorder %s451, %s452
    %p464 = scmp.eq.s32.totalorder %s38, 1
    %p465 = por %p463, %p464
    %p467 = scmp.ne.s32.totalorder %s452, %s466
    %p468 = scmp.eq.s32.totalorder %s38, 0
    %p469 = por %p467, %p468
    %s471 = sadd.s32 %s470, 1
    %p474 = scmp.eq.s32.totalorder %s32, 1
    %p475 = scmp.ne.s32.totalorder %s470, %s472
    %p476 = scmp.eq.s32.totalorder %s32, 0
    %p477 = por %p475, %p476
    %p478 = scmp.ne.s32.totalorder %s470, %s472
    %p479 = scmp.eq.s32.totalorder %s37, 1
    %p480 = por %p478, %p479
    %p481 = scmp.ne.s32.totalorder %s472, %s473
    %p482 = scmp.eq.s32.totalorder %s37, 0
    %p483 = por %p481, %p482
    %p484 = scmp.ne.s32.totalorder %s472, %s473
    %p485 = scmp.eq.s32.totalorder %s38, 1
    %p486 = por %p484, %p485
    %p488 = scmp.ne.s32.totalorder %s473, %s487
    %p489 = scmp.eq.s32.totalorder %s38, 0
    %p490 = por %p488, %p489
    %s492 = sadd.s32 %s491, 1
    %p495 = scmp.eq.s32.totalorder %s32, 1
    %p496 = scmp.ne.s32.totalorder %s491, %s493
    %p497 = scmp.eq.s32.totalorder %s32, 0
    %p498 = por %p496, %p497
    %p499 = scmp.ne.s32.totalorder %s491, %s493
    %p500 = scmp.eq.s32.totalorder %s37, 1
    %p501 = por %p499, %p500
    %p502 = scmp.ne.s32.totalorder %s493, %s494
    %p503 = scmp.eq.s32.totalorder %s37, 0
    %p504 = por %p502, %p503
    %p505 = scmp.ne.s32.totalorder %s493, %s494
    %p506 = scmp.eq.s32.totalorder %s38, 1
    %p507 = por %p505, %p506
    %p509 = scmp.ne.s32.totalorder %s494, %s508
    %p510 = scmp.eq.s32.totalorder %s38, 0
    %p511 = por %p509, %p510
    %s513 = sadd.s32 %s512, 1
    %p516 = scmp.eq.s32.totalorder %s32, 1
    %p517 = scmp.ne.s32.totalorder %s512, %s514
    %p518 = scmp.eq.s32.totalorder %s32, 0
    %p519 = por %p517, %p518
    %p520 = scmp.ne.s32.totalorder %s512, %s514
    %p521 = scmp.eq.s32.totalorder %s37, 1
    %p522 = por %p520, %p521
    %p523 = scmp.ne.s32.totalorder %s514, %s515
    %p524 = scmp.eq.s32.totalorder %s37, 0
    %p525 = por %p523, %p524
    %p526 = scmp.ne.s32.totalorder %s514, %s515
    %p527 = scmp.eq.s32.totalorder %s38, 1
    %p528 = por %p526, %p527
    %p530 = scmp.ne.s32.totalorder %s515, %s529
    %p531 = scmp.eq.s32.totalorder %s38, 0
    %p532 = por %p530, %p531
    %s534 = sadd.s32 %s533, 1
    %p537 = scmp.eq.s32.totalorder %s32, 1
    %p538 = scmp.ne.s32.totalorder %s533, %s535
    %p539 = scmp.eq.s32.totalorder %s32, 0
    %p540 = por %p538, %p539
    %p541 = scmp.ne.s32.totalorder %s533, %s535
    %p542 = scmp.eq.s32.totalorder %s37, 1
    %p543 = por %p541, %p542
    %p544 = scmp.ne.s32.totalorder %s535, %s536
    %p545 = scmp.eq.s32.totalorder %s37, 0
    %p546 = por %p544, %p545
    %p547 = scmp.ne.s32.totalorder %s535, %s536
    %p548 = scmp.eq.s32.totalorder %s38, 1
    %p549 = por %p547, %p548
    %p551 = scmp.ne.s32.totalorder %s536, %s550
    %p552 = scmp.eq.s32.totalorder %s38, 0
    %p553 = por %p551, %p552
    %s554 = ssub.s32 %s32, %s39
    %p555 = scmp.eq.s32.totalorder %s554, 0
    %s557 = sadd.s32 %s556, 1
    %s558 = scalar_select %p555, %s556, %s557
    %p561 = pneg %p555
    %p562 = scmp.eq.s32.totalorder %s32, 1
    %p563 = por %p561, %p562
    %p564 = scmp.ne.s32.totalorder %s556, %s559
    %p565 = scmp.eq.s32.totalorder %s32, 0
    %p566 = por %p564, %p565
    %p567 = scmp.ne.s32.totalorder %s556, %s559
    %p568 = scmp.eq.s32.totalorder %s37, 1
    %p569 = por %p567, %p568
    %p570 = scmp.ne.s32.totalorder %s559, %s560
    %p571 = scmp.eq.s32.totalorder %s37, 0
    %p572 = por %p570, %p571
    %p573 = scmp.ne.s32.totalorder %s559, %s560
    %p574 = scmp.eq.s32.totalorder %s38, 1
    %p575 = por %p573, %p574
    %p577 = scmp.ne.s32.totalorder %s560, %s576
    %p578 = scmp.eq.s32.totalorder %s38, 0
    %p579 = por %p577, %p578
    %p580 = scmp.le.s32.totalorder 1, %s32
    %p581 = scmp.lt.s32.totalorder %s32, 3
    %p582 = pnand %p580, %p581
    %p583 = pneg %p582
    // Predicated region
    $region9: #{dag_tabular2_forward.1} parent=5 // pred_check
      _
    $region10: #{dag_tabular2_forward.1} parent=5 // pred_check_branch
      %585 = sbr.rel (%p582) target = $region12
    $region11: #{dag_tabular2_forward.1} parent=5 // pred_region
      %s586 = ssub.s32 %s32, 1
      // Predicated region
      $region13: #{dag_tabular2_forward.1} parent=11 // pred_check
        %p587 = pneg %p105
      $region14: #{dag_tabular2_forward.1} parent=11 // pred_check_branch
        %589 = sbr.rel (%p587) target = $region16
      $region15: #{dag_tabular2_forward.1} parent=11 // pred_region
        _
      $region16: #{dag_tabular2_forward.1} parent=11 // pred_fallthru
        _
      // Predicated region
      $region17: #{dag_tabular2_forward.1} parent=11 // pred_check
        %p590 = pneg %p126
      $region18: #{dag_tabular2_forward.1} parent=11 // pred_check_branch
        %592 = sbr.rel (%p590) target = $region20
      $region19: #{dag_tabular2_forward.1} parent=11 // pred_region
        _
      $region20: #{dag_tabular2_forward.1} parent=11 // pred_fallthru
        _
      // Predicated region
      $region21: #{dag_tabular2_forward.1} parent=11 // pred_check
        %p593 = pneg %p147
      $region22: #{dag_tabular2_forward.1} parent=11 // pred_check_branch
        %595 = sbr.rel (%p593) target = $region24
      $region23: #{dag_tabular2_forward.1} parent=11 // pred_region
        _
      $region24: #{dag_tabular2_forward.1} parent=11 // pred_fallthru
        _
      // Predicated region
      $region25: #{dag_tabular2_forward.1} parent=11 // pred_check
        %p596 = pneg %p168
      $region26: #{dag_tabular2_forward.1} parent=11 // pred_check_branch
        %598 = sbr.rel (%p596) target = $region28
      $region27: #{dag_tabular2_forward.1} parent=11 // pred_region
        _
      $region28: #{dag_tabular2_forward.1} parent=11 // pred_fallthru
        _
      // Predicated region
      $region29: #{dag_tabular2_forward.1} parent=11 // pred_check
        %p599 = pneg %p189
      $region30: #{dag_tabular2_forward.1} parent=11 // pred_check_branch
        %601 = sbr.rel (%p599) target = $region32
      $region31: #{dag_tabular2_forward.1} parent=11 // pred_region
        _
      $region32: #{dag_tabular2_forward.1} parent=11 // pred_fallthru
        _
      // Predicated region
      $region33: #{dag_tabular2_forward.1} parent=11 // pred_check
        %p602 = pneg %p210
      $region34: #{dag_tabular2_forward.1} parent=11 // pred_check_branch
        %604 = sbr.rel (%p602) target = $region36
      $region35: #{dag_tabular2_forward.1} parent=11 // pred_region
        _
      $region36: #{dag_tabular2_forward.1} parent=11 // pred_fallthru
        _
      // Predicated region
      $region37: #{dag_tabular2_forward.1} parent=11 // pred_check
        %p605 = pneg %p231
      $region38: #{dag_tabular2_forward.1} parent=11 // pred_check_branch
        %607 = sbr.rel (%p605) target = $region40
      $region39: #{dag_tabular2_forward.1} parent=11 // pred_region
        _
      $region40: #{dag_tabular2_forward.1} parent=11 // pred_fallthru
        _
      // Predicated region
      $region41: #{dag_tabular2_forward.1} parent=11 // pred_check
        %p608 = pneg %p252
      $region42: #{dag_tabular2_forward.1} parent=11 // pred_check_branch
        %610 = sbr.rel (%p608) target = $region44
      $region43: #{dag_tabular2_forward.1} parent=11 // pred_region
        _
      $region44: #{dag_tabular2_forward.1} parent=11 // pred_fallthru
        _
      // Predicated region
      $region45: #{dag_tabular2_forward.1} parent=11 // pred_check
        %p611 = pneg %p273
      $region46: #{dag_tabular2_forward.1} parent=11 // pred_check_branch
        %613 = sbr.rel (%p611) target = $region48
      $region47: #{dag_tabular2_forward.1} parent=11 // pred_region
        _
      $region48: #{dag_tabular2_forward.1} parent=11 // pred_fallthru
        _
      // Predicated region
      $region49: #{dag_tabular2_forward.1} parent=11 // pred_check
        %p614 = pneg %p294
      $region50: #{dag_tabular2_forward.1} parent=11 // pred_check_branch
        %616 = sbr.rel (%p614) target = $region52
      $region51: #{dag_tabular2_forward.1} parent=11 // pred_region
        _
      $region52: #{dag_tabular2_forward.1} parent=11 // pred_fallthru
        _
      // Predicated region
      $region53: #{dag_tabular2_forward.1} parent=11 // pred_check
        %p617 = pneg %p315
      $region54: #{dag_tabular2_forward.1} parent=11 // pred_check_branch
        %619 = sbr.rel (%p617) target = $region56
      $region55: #{dag_tabular2_forward.1} parent=11 // pred_region
        _
      $region56: #{dag_tabular2_forward.1} parent=11 // pred_fallthru
        _
      // Predicated region
      $region57: #{dag_tabular2_forward.1} parent=11 // pred_check
        %p620 = pneg %p336
      $region58: #{dag_tabular2_forward.1} parent=11 // pred_check_branch
        %622 = sbr.rel (%p620) target = $region60
      $region59: #{dag_tabular2_forward.1} parent=11 // pred_region
        _
      $region60: #{dag_tabular2_forward.1} parent=11 // pred_fallthru
        _
      // Predicated region
      $region61: #{dag_tabular2_forward.1} parent=11 // pred_check
        %p623 = pneg %p357
      $region62: #{dag_tabular2_forward.1} parent=11 // pred_check_branch
        %625 = sbr.rel (%p623) target = $region64
      $region63: #{dag_tabular2_forward.1} parent=11 // pred_region
        _
      $region64: #{dag_tabular2_forward.1} parent=11 // pred_fallthru
        _
      // Predicated region
      $region65: #{dag_tabular2_forward.1} parent=11 // pred_check
        %p626 = pneg %p378
      $region66: #{dag_tabular2_forward.1} parent=11 // pred_check_branch
        %628 = sbr.rel (%p626) target = $region68
      $region67: #{dag_tabular2_forward.1} parent=11 // pred_region
        _
      $region68: #{dag_tabular2_forward.1} parent=11 // pred_fallthru
        _
      // Predicated region
      $region69: #{dag_tabular2_forward.1} parent=11 // pred_check
        %p629 = pneg %p399
      $region70: #{dag_tabular2_forward.1} parent=11 // pred_check_branch
        %631 = sbr.rel (%p629) target = $region72
      $region71: #{dag_tabular2_forward.1} parent=11 // pred_region
        _
      $region72: #{dag_tabular2_forward.1} parent=11 // pred_fallthru
        _
      // Predicated region
      $region73: #{dag_tabular2_forward.1} parent=11 // pred_check
        %p632 = pneg %p420
      $region74: #{dag_tabular2_forward.1} parent=11 // pred_check_branch
        %634 = sbr.rel (%p632) target = $region76
      $region75: #{dag_tabular2_forward.1} parent=11 // pred_region
        _
      $region76: #{dag_tabular2_forward.1} parent=11 // pred_fallthru
        _
      // Predicated region
      $region77: #{dag_tabular2_forward.1} parent=11 // pred_check
        %p635 = pneg %p441
      $region78: #{dag_tabular2_forward.1} parent=11 // pred_check_branch
        %637 = sbr.rel (%p635) target = $region80
      $region79: #{dag_tabular2_forward.1} parent=11 // pred_region
        _
      $region80: #{dag_tabular2_forward.1} parent=11 // pred_fallthru
        _
      // Predicated region
      $region81: #{dag_tabular2_forward.1} parent=11 // pred_check
        %p638 = pneg %p462
      $region82: #{dag_tabular2_forward.1} parent=11 // pred_check_branch
        %640 = sbr.rel (%p638) target = $region84
      $region83: #{dag_tabular2_forward.1} parent=11 // pred_region
        _
      $region84: #{dag_tabular2_forward.1} parent=11 // pred_fallthru
        _
      // Predicated region
      $region85: #{dag_tabular2_forward.1} parent=11 // pred_check
        %p641 = pneg %p483
      $region86: #{dag_tabular2_forward.1} parent=11 // pred_check_branch
        %643 = sbr.rel (%p641) target = $region88
      $region87: #{dag_tabular2_forward.1} parent=11 // pred_region
        _
      $region88: #{dag_tabular2_forward.1} parent=11 // pred_fallthru
        _
      // Predicated region
      $region89: #{dag_tabular2_forward.1} parent=11 // pred_check
        %p644 = pneg %p504
      $region90: #{dag_tabular2_forward.1} parent=11 // pred_check_branch
        %646 = sbr.rel (%p644) target = $region92
      $region91: #{dag_tabular2_forward.1} parent=11 // pred_region
        _
      $region92: #{dag_tabular2_forward.1} parent=11 // pred_fallthru
        _
      // Predicated region
      $region93: #{dag_tabular2_forward.1} parent=11 // pred_check
        %p647 = pneg %p525
      $region94: #{dag_tabular2_forward.1} parent=11 // pred_check_branch
        %649 = sbr.rel (%p647) target = $region96
      $region95: #{dag_tabular2_forward.1} parent=11 // pred_region
        _
      $region96: #{dag_tabular2_forward.1} parent=11 // pred_fallthru
        _
      // Predicated region
      $region97: #{dag_tabular2_forward.1} parent=11 // pred_check
        %p650 = pneg %p546
      $region98: #{dag_tabular2_forward.1} parent=11 // pred_check_branch
        %652 = sbr.rel (%p650) target = $region100
      $region99: #{dag_tabular2_forward.1} parent=11 // pred_region
        _
      $region100: #{dag_tabular2_forward.1} parent=11 // pred_fallthru
        _
    $region12: #{dag_tabular2_forward.1} parent=5 // pred_fallthru
      _
    %p653 = scmp.lt.s32.totalorder %s32, 2
    // Predicated region
    $region101: #{dag_tabular2_forward.1} parent=5 // pred_check
      %p654 = pneg %p653
    $region102: #{dag_tabular2_forward.1} parent=5 // pred_check_branch
      %656 = sbr.rel (%p654) target = $region104
    $region103: #{dag_tabular2_forward.1} parent=5 // pred_region
      // Predicated region
      $region105: #{dag_tabular2_forward.1} parent=103 // pred_check
        %p657 = pneg %p52
      $region106: #{dag_tabular2_forward.1} parent=103 // pred_check_branch
        %659 = sbr.rel (%p657) target = $region108
      $region107: #{dag_tabular2_forward.1} parent=103 // pred_region
        %s660 = smul.u32 2, %s32
        %p661 = scmp.lt.s32.totalorder %s660, 3
        %s662 = scalar_select %p661, %s660, 3
        %s663 = smul.addr %s662, 8
        %s664 = scalar_lea.vmem %s0, %s663
        %s665 = smul.u32 2, %s32
      $region108: #{dag_tabular2_forward.1} parent=103 // pred_fallthru
        _
      // Predicated region
      $region109: #{dag_tabular2_forward.1} parent=103 // pred_check
        %p666 = pneg %p78
      $region110: #{dag_tabular2_forward.1} parent=103 // pred_check_branch
        %668 = sbr.rel (%p666) target = $region112
      $region111: #{dag_tabular2_forward.1} parent=103 // pred_region
        %s669 = smul.u32 2, %s32
        %p670 = scmp.lt.s32.totalorder %s669, 3
        %s671 = scalar_select %p670, %s669, 3
        %s672 = smul.addr %s671, 8
        %s673 = scalar_lea.vmem %s1, %s672
        %s674 = smul.u32 2, %s32
      $region112: #{dag_tabular2_forward.1} parent=103 // pred_fallthru
        _
    $region104: #{dag_tabular2_forward.1} parent=5 // pred_fallthru
      _
    %p675 = scmp.le.s32.totalorder 1, %s32
    %p676 = scmp.lt.s32.totalorder %s32, 3
    %p677 = pnand %p675, %p676
    %p678 = pneg %p677
    // Predicated region
    $region113: #{dag_tabular2_forward.1} parent=5 // pred_check
      _
    $region114: #{dag_tabular2_forward.1} parent=5 // pred_check_branch
      %680 = sbr.rel (%p677) target = $region116
    $region115: #{dag_tabular2_forward.1} parent=5 // pred_region
      %s681 = ssub.s32 %s32, 1
      %s682 = smul.u32 2, %s37
      %p683 = scmp.lt.s32.totalorder %s682, 3
      %s684 = scalar_select %p683, %s682, 3
      %s685 = smul.addr %s684, 8
      %s686 = scalar_lea.vmem %s0, %s685
      %p687 = pneg %p58
      %p688 = pneg %p55
      %s689 = smul.u32 2, %s37
      %p690 = scmp.lt.s32.totalorder %s689, 3
      %s691 = scalar_select %p690, %s689, 3
      %s692 = smul.addr %s691, 8
      %s693 = scalar_lea.vmem %s1, %s692
      %p694 = pneg %p84
      %p695 = pneg %p81
      %p696 = pneg %p105
      %p697 = pneg %p102
      %p698 = pneg %p126
      %p699 = pneg %p123
      %p700 = pneg %p147
      %p701 = pneg %p144
      %p702 = pneg %p168
      %p703 = pneg %p165
      %p704 = pneg %p189
      %p705 = pneg %p186
      %p706 = pneg %p210
      %p707 = pneg %p207
      %p708 = pneg %p231
      %p709 = pneg %p228
      %p710 = pneg %p252
      %p711 = pneg %p249
      %p712 = pneg %p273
      %p713 = pneg %p270
      %p714 = pneg %p294
      %p715 = pneg %p291
      %p716 = pneg %p315
      %p717 = pneg %p312
      %p718 = pneg %p336
      %p719 = pneg %p333
      %p720 = pneg %p357
      %p721 = pneg %p354
      %p722 = pneg %p378
      %p723 = pneg %p375
      %p724 = pneg %p399
      %p725 = pneg %p396
      %p726 = pneg %p420
      %p727 = pneg %p417
      %p728 = pneg %p441
      %p729 = pneg %p438
      %p730 = pneg %p462
      %p731 = pneg %p459
      %p732 = pneg %p483
      %p733 = pneg %p480
      %p734 = pneg %p504
      %p735 = pneg %p501
      %p736 = pneg %p525
      %p737 = pneg %p522
      %p738 = pneg %p546
      %p739 = pneg %p543
      %p740 = pneg %p572
      %p741 = pneg %p569
      %s742 = smul.u32 2, %s37
      %p743 = scmp.lt.s32.totalorder %s742, 3
      %s744 = scalar_select %p743, %s742, 3
      %s745 = smul.addr %s744, 8
      %s746 = scalar_lea.vmem %s24, %s745
      %s747 = smul.u32 2, %s37
      %p748 = scmp.lt.s32.totalorder %s747, 3
      %s749 = scalar_select %p748, %s747, 3
      %s750 = smul.addr %s749, 8
      %s751 = scalar_lea.vmem %s0, %s750
      %s752 = smul.u32 2, %s37
      %s753 = smul.u32 2, %s37
      %p754 = scmp.lt.s32.totalorder %s753, 3
      %s755 = scalar_select %p754, %s753, 3
      %s756 = smul.addr %s755, 8
      %s757 = scalar_lea.vmem %s1, %s756
      %s758 = smul.u32 2, %s37
      %s759 = smul.u32 2, %s37
      %p760 = scmp.lt.s32.totalorder %s759, 3
      %s761 = scalar_select %p760, %s759, 3
      %s762 = smul.addr %s761, 8
      %s763 = scalar_lea.vmem %s24, %s762
      %s764 = smul.u32 2, %s37
      %v766 = vld [vmem:[%s2] sm:$0xf]
      %v767 = vld [vmem:[%s2 + $0x4] sm:$0xf]
      %v768 = vld [vmem:[%s2 + $0x8] sm:$0xf]
      %v769 = vld [vmem:[%s2 + $0xc] sm:$0xf]
      %v770 = vld [vmem:[%s2 + $0x10] sm:$0xf]
      %v771 = vld [vmem:[%s2 + $0x14] sm:$0xf]
      %v772 = vld [vmem:[%s2 + $0x18] sm:$0xf]
      %v773 = vld [vmem:[%s2 + $0x1c] sm:$0xf]
      %v774 = vld [vmem:[%s2 + $0x20] sm:$0xf]
      %v775 = vld [vmem:[%s2 + $0x24] sm:$0xf]
      %v776 = vld [vmem:[%s2 + $0x28] sm:$0xf]
      %v777 = vld [vmem:[%s2 + $0x2c] sm:$0xf]
      %v778 = vld [vmem:[%s2 + $0x30] sm:$0xf]
      %v779 = vld [vmem:[%s2 + $0x34] sm:$0xf]
      %v780 = vld [vmem:[%s2 + $0x38] sm:$0xf]
      %v781 = vld [vmem:[%s2 + $0x3c] sm:$0xf]
      %v782 = vlaneseq
      %v783 = vand.u32 %v782, 127
      %v784 = vand.u32 %v783, 1
      %vm785 = vcmp.eq.s32.totalorder %v784, 0
      %v786 = vand.u32 %v783, 2
      %vm787 = vcmp.eq.s32.totalorder %v786, 0
      %v788 = vand.u32 %v783, 4
      %vm789 = vcmp.eq.s32.totalorder %v788, 0
      %v790 = vld [vmem:[%s751] sm:$0xff]
      %v791 = vld [vmem:[%s751 + $0x8] sm:$0xff]
      %792 = vset.pattern.permute.xlu0 0
      %793 = vperm.xlu0 %792, %v790
      %v794 = vpop.permute.xlu0 %793
      %795 = vset.pattern.permute.xlu0 0
      %796 = vperm.xlu0 %795, %v791
      %v797 = vpop.permute.xlu0 %796
      %vm798 = vcmp.eq.s32.totalorder %v783, %v794
      %vm799 = vcmp.eq.s32.totalorder %v783, %v797
      %v800 = vsel %vm798, 1.0, 0.0
      %v801 = vsel %vm799, 1.0, 0.0
      %v802 = vadd.s32 %v790, 32
      %v803 = vadd.s32 %v791, 32
      %804 = vset.pattern.permute.xlu0 1
      %805 = vperm.xlu0 %804, %v802
      %v806 = vpop.permute.xlu0 %805
      %807 = vset.pattern.permute.xlu0 1
      %808 = vperm.xlu0 %807, %v803
      %v809 = vpop.permute.xlu0 %808
      %vm810 = vcmp.eq.s32.totalorder %v783, %v806
      %vm811 = vcmp.eq.s32.totalorder %v783, %v809
      %v812 = vsel %vm810, 1.0, 0.0
      %v813 = vsel %vm811, 1.0, 0.0
      %v814 = vadd.f32 %v800, %v812
      %v815 = vadd.f32 %v801, %v813
      %v816 = vadd.s32 %v790, 64
      %v817 = vadd.s32 %v791, 64
      %818 = vset.pattern.permute.xlu0 2
      %819 = vperm.xlu0 %818, %v816
      %v820 = vpop.permute.xlu0 %819
      %821 = vset.pattern.permute.xlu0 2
      %822 = vperm.xlu0 %821, %v817
      %v823 = vpop.permute.xlu0 %822
      %vm824 = vcmp.eq.s32.totalorder %v783, %v820
      %vm825 = vcmp.eq.s32.totalorder %v783, %v823
      %v826 = vsel %vm824, 1.0, 0.0
      %v827 = vsel %vm825, 1.0, 0.0
      %v828 = vadd.f32 %v814, %v826
      %v829 = vadd.f32 %v815, %v827
      %v830 = vadd.s32 %v790, 96
      %v831 = vadd.s32 %v791, 96
      %832 = vset.pattern.permute.xlu0 3
      %833 = vperm.xlu0 %832, %v830
      %v834 = vpop.permute.xlu0 %833
      %835 = vset.pattern.permute.xlu0 3
      %836 = vperm.xlu0 %835, %v831
      %v837 = vpop.permute.xlu0 %836
      %vm838 = vcmp.eq.s32.totalorder %v783, %v834
      %vm839 = vcmp.eq.s32.totalorder %v783, %v837
      %v840 = vsel %vm838, 1.0, 0.0
      %v841 = vsel %vm839, 1.0, 0.0
      %v842 = vadd.f32 %v828, %v840
      %v843 = vadd.f32 %v829, %v841
      %v844 = vpack.c.bf16 %v843, %v842
      %v845 = vld [vmem:[%s11] sm:$0xf]
      %v846 = vld [vmem:[%s11 + $0x4] sm:$0xf]
      %v847 = vld [vmem:[%s11 + $0x8] sm:$0xf]
      %v848 = vld [vmem:[%s11 + $0xc] sm:$0xf]
      %v849 = vld [vmem:[%s11 + $0x10] sm:$0xf]
      %v850 = vld [vmem:[%s11 + $0x14] sm:$0xf]
      %v851 = vld [vmem:[%s11 + $0x18] sm:$0xf]
      %v852 = vld [vmem:[%s11 + $0x1c] sm:$0xf]
      %v853 = vld [vmem:[%s11 + $0x20] sm:$0xf]
      %v854 = vld [vmem:[%s11 + $0x24] sm:$0xf]
      %v855 = vld [vmem:[%s11 + $0x28] sm:$0xf]
      %v856 = vld [vmem:[%s11 + $0x2c] sm:$0xf]
      %v857 = vld [vmem:[%s11 + $0x30] sm:$0xf]
      %v858 = vld [vmem:[%s11 + $0x34] sm:$0xf]
      %v859 = vld [vmem:[%s11 + $0x38] sm:$0xf]
      %v860 = vld [vmem:[%s11 + $0x3c] sm:$0xf]
      %v877 = vunpack.c.l.b16 %v845
      %v878 = vunpack.c.l.b16 %v846
      %v879 = vunpack.c.l.b16 %v847
      %v880 = vunpack.c.l.b16 %v848
      %v881 = vunpack.c.l.b16 %v849
      %v882 = vunpack.c.l.b16 %v850
      %v883 = vunpack.c.l.b16 %v851
      %v884 = vunpack.c.l.b16 %v852
      %v885 = vunpack.c.l.b16 %v853
      %v886 = vunpack.c.l.b16 %v854
      %v887 = vunpack.c.l.b16 %v855
      %v888 = vunpack.c.l.b16 %v856
      %v889 = vunpack.c.l.b16 %v857
      %v890 = vunpack.c.l.b16 %v858
      %v891 = vunpack.c.l.b16 %v859
      %v892 = vunpack.c.l.b16 %v860
      %v893 = vpack.c.b16 %v878, %v877
      %v894 = vpack.c.b16 %v880, %v879
      %v895 = vpack.c.b16 %v882, %v881
      %v896 = vpack.c.b16 %v884, %v883
      %v897 = vpack.c.b16 %v886, %v885
      %v898 = vpack.c.b16 %v888, %v887
      %v899 = vpack.c.b16 %v890, %v889
      %v900 = vpack.c.b16 %v892, %v891
      %909 = vmatprep.subr.bf16.mxu0 0
      %910 = vmatpush1.bf16.msra.mxu0 %v900
      %911 = vmatprep.subr.bf16.mxu0 0
      %912 = vmatpush1.bf16.msra.mxu0 %v899
      %913 = vmatprep.subr.bf16.mxu0 0
      %914 = vmatpush1.bf16.msra.mxu0 %v898
      %915 = vmatprep.subr.bf16.mxu0 0
      %916 = vmatpush1.bf16.msra.mxu0 %v897
      %917 = vmatprep.subr.bf16.mxu0 0
      %918 = vmatpush1.bf16.msra.mxu0 %v896
      %919 = vmatprep.subr.bf16.mxu0 0
      %920 = vmatpush1.bf16.msra.mxu0 %v895
      %921 = vmatprep.subr.bf16.mxu0 0
      %922 = vmatpush1.bf16.msra.mxu0 %v894
      %923 = vmatprep.subr.bf16.mxu0 0
      %924 = vmatpush1.bf16.msra.mxu0 %v893
      %925 = vmatprep.subr.bf16.mxu0 0
      %926 = vmatpush2.bf16.msra.mxu0 0
      %927 = vmatprep.subr.bf16.mxu0 0
      %928 = vmatpush2.bf16.msra.mxu0 0
      %929 = vmatprep.subr.bf16.mxu0 0
      %930 = vmatpush2.bf16.msra.mxu0 0
      %931 = vmatprep.subr.bf16.mxu0 0
      %932 = vmatpush2.bf16.msra.mxu0 0
      %933 = vmatprep.subr.bf16.mxu0 0
      %934 = vmatpush2.bf16.msra.mxu0 0
      %935 = vmatprep.subr.bf16.mxu0 0
      %936 = vmatpush2.bf16.msra.mxu0 0
      %937 = vmatprep.subr.bf16.mxu0 0
      %938 = vmatpush2.bf16.msra.mxu0 0
      %939 = vmatprep.subr.bf16.mxu0 0
      %940 = vmatpush2.bf16.msra.mxu0 0
      %941 = vmatprep.mubr.bf16.mxu0 0
      %942 = vmatmul.mubr.bf16.gmra.mxu0 %v844
      %v943 = vpop.f32.mrf.mxu0
      %v944 = vadd.f32 0.0, %v943
      %v945 = vpop.f32.mrf.mxu0
      %v946 = vpop.f32.mrf.mxu0
      %v947 = vadd.f32 0.0, %v946
      %v948 = vpop.f32.mrf.mxu0
      %949 = vdwg.mxu0
      %v950 = vmul.f32 %v944, %v944
      %v951 = vmul.f32 %v947, %v947
      %954 = vrot.lane.b32.xlu0 %v950, 64
      %v955 = vpop.permute.xlu0 %954
      %956 = vrot.lane.b32.xlu0 %v951, 64
      %v957 = vpop.permute.xlu0 %956
      %vm960 = vcmask 523264
      %v961 = vsel %vm960, %v944, %v955
      %v962 = vsel %vm960, %v947, %v957
      %v963 = vpack.c.bf16 %v962, %v961
      %v980 = vunpack.c.l.b16 %v766
      %v981 = vunpack.c.l.b16 %v767
      %v982 = vunpack.c.l.b16 %v768
      %v983 = vunpack.c.l.b16 %v769
      %v984 = vunpack.c.l.b16 %v770
      %v985 = vunpack.c.l.b16 %v771
      %v986 = vunpack.c.l.b16 %v772
      %v987 = vunpack.c.l.b16 %v773
      %v988 = vunpack.c.l.b16 %v774
      %v989 = vunpack.c.l.b16 %v775
      %v990 = vunpack.c.l.b16 %v776
      %v991 = vunpack.c.l.b16 %v777
      %v992 = vunpack.c.l.b16 %v778
      %v993 = vunpack.c.l.b16 %v779
      %v994 = vunpack.c.l.b16 %v780
      %v995 = vunpack.c.l.b16 %v781
      %v996 = vpack.c.b16 %v981, %v980
      %v997 = vpack.c.b16 %v983, %v982
      %v998 = vpack.c.b16 %v985, %v984
      %v999 = vpack.c.b16 %v987, %v986
      %v1000 = vpack.c.b16 %v989, %v988
      %v1001 = vpack.c.b16 %v991, %v990
      %v1002 = vpack.c.b16 %v993, %v992
      %v1003 = vpack.c.b16 %v995, %v994
      %1012 = vmatprep.subr.bf16.mxu0 0
      %1013 = vmatpush1.bf16.msra.mxu0 %v1003
      %1014 = vmatprep.subr.bf16.mxu0 0
      %1015 = vmatpush1.bf16.msra.mxu0 %v1002
      %1016 = vmatprep.subr.bf16.mxu0 0
      %1017 = vmatpush1.bf16.msra.mxu0 %v1001
      %1018 = vmatprep.subr.bf16.mxu0 0
      %1019 = vmatpush1.bf16.msra.mxu0 %v1000
      %1020 = vmatprep.subr.bf16.mxu0 0
      %1021 = vmatpush1.bf16.msra.mxu0 %v999
      %1022 = vmatprep.subr.bf16.mxu0 0
      %1023 = vmatpush1.bf16.msra.mxu0 %v998
      %1024 = vmatprep.subr.bf16.mxu0 0
      %1025 = vmatpush1.bf16.msra.mxu0 %v997
      %1026 = vmatprep.subr.bf16.mxu0 0
      %1027 = vmatpush1.bf16.msra.mxu0 %v996
      %1028 = vmatprep.subr.bf16.mxu0 0
      %1029 = vmatpush2.bf16.msra.mxu0 0
      %1030 = vmatprep.subr.bf16.mxu0 0
      %1031 = vmatpush2.bf16.msra.mxu0 0
      %1032 = vmatprep.subr.bf16.mxu0 0
      %1033 = vmatpush2.bf16.msra.mxu0 0
      %1034 = vmatprep.subr.bf16.mxu0 0
      %1035 = vmatpush2.bf16.msra.mxu0 0
      %1036 = vmatprep.subr.bf16.mxu0 0
      %1037 = vmatpush2.bf16.msra.mxu0 0
      %1038 = vmatprep.subr.bf16.mxu0 0
      %1039 = vmatpush2.bf16.msra.mxu0 0
      %1040 = vmatprep.subr.bf16.mxu0 0
      %1041 = vmatpush2.bf16.msra.mxu0 0
      %1042 = vmatprep.subr.bf16.mxu0 0
      %1043 = vmatpush2.bf16.msra.mxu0 0
      %1044 = vmatprep.mubr.bf16.mxu0 0
      %1045 = vmatmul.mubr.bf16.gmra.mxu0 %v963
      %v1046 = vpop.f32.mrf.mxu0
      %v1047 = vadd.f32 0.0, %v1046
      %v1048 = vpop.f32.mrf.mxu0
      %v1049 = vpop.f32.mrf.mxu0
      %v1050 = vadd.f32 0.0, %v1049
      %v1051 = vpop.f32.mrf.mxu0
      %1052 = vdwg.mxu0
      %v1053 = vmul.f32 %v1047, %v1047
      %v1054 = vmul.f32 %v1050, %v1050
      %1057 = vrot.lane.b32.xlu0 %v1053, 64
      %v1058 = vpop.permute.xlu0 %1057
      %1059 = vrot.lane.b32.xlu0 %v1054, 64
      %v1060 = vpop.permute.xlu0 %1059
      %v1063 = vsub.f32 %v1047, %v1058
      %v1064 = vsub.f32 %v1050, %v1060
      %v1065 = vmax.f32 %v1063, 0.0
      %v1066 = vmax.f32 %v1064, 0.0
      %v1067 = vsub.f32 %v944, %v1047
      %v1068 = vsub.f32 %v947, %v1050
      %v1069 = vadd.f32 %v1065, 1e-05
      %v1070 = vadd.f32 %v1066, 1e-05
      %v1071 = vrsqrt.pop %v1069
      %v1072 = vrsqrt.pop %v1070
      %1075 = vrot.lane.b32.xlu0 %v1071, 64
      %v1076 = vpop.permute.xlu0 %1075
      %1077 = vrot.lane.b32.xlu0 %v1072, 64
      %v1078 = vpop.permute.xlu0 %1077
      %v1081 = vmul.f32 %v1067, %v1076
      %v1082 = vmul.f32 %v1068, %v1078
      %v1083 = vpack.c.bf16 %v1082, %v1081
      %v1084 = vld [vmem:[%s3] sm:$0xff]
      %v1085 = vld [vmem:[%s3 + $0x8] sm:$0xf]
      %v1086 = vld [vmem:[%s3 + $0xc] sm:$0xff]
      %v1087 = vld [vmem:[%s3 + $0x14] sm:$0xf]
      %v1088 = vld [vmem:[%s3 + $0x18] sm:$0xff]
      %v1089 = vld [vmem:[%s3 + $0x20] sm:$0xf]
      %v1090 = vld [vmem:[%s3 + $0x24] sm:$0xff]
      %v1091 = vld [vmem:[%s3 + $0x2c] sm:$0xf]
      %v1092 = vld [vmem:[%s3 + $0x30] sm:$0xff]
      %v1093 = vld [vmem:[%s3 + $0x38] sm:$0xf]
      %v1094 = vld [vmem:[%s3 + $0x3c] sm:$0xff]
      %v1095 = vld [vmem:[%s3 + $0x44] sm:$0xf]
      %v1096 = vld [vmem:[%s3 + $0x48] sm:$0xff]
      %v1097 = vld [vmem:[%s3 + $0x50] sm:$0xf]
      %v1098 = vld [vmem:[%s3 + $0x54] sm:$0xff]
      %v1099 = vld [vmem:[%s3 + $0x5c] sm:$0xf]
      %v1100 = vld [vmem:[%s4] sm:$0x7]
      %v1102 = vlaneseq
      %v1103 = vshrl.u32 %v1102, 7
      %v1104 = vsub.s32 0, %v1103
      %v1105 = vrot.slane %v1100, %v1104
      %v1106 = vlaneseq
      %v1107 = vshrl.u32 %v1106, 7
      %v1108 = vsub.s32 1, %v1107
      %v1109 = vrot.slane %v1100, %v1108
      %v1110 = vlaneseq
      %v1111 = vshrl.u32 %v1110, 7
      %v1112 = vsub.s32 2, %v1111
      %v1113 = vrot.slane %v1100, %v1112
      %v1133 = vunpack.c.l.b16 %v1084
      %v1134 = vunpack.c.h.b16 %v1084
      %v1135 = vunpack.c.l.b16 %v1085
      %v1136 = vunpack.c.l.b16 %v1086
      %v1137 = vunpack.c.h.b16 %v1086
      %v1138 = vunpack.c.l.b16 %v1087
      %v1139 = vunpack.c.l.b16 %v1088
      %v1140 = vunpack.c.h.b16 %v1088
      %v1141 = vunpack.c.l.b16 %v1089
      %v1142 = vunpack.c.l.b16 %v1090
      %v1143 = vunpack.c.h.b16 %v1090
      %v1144 = vunpack.c.l.b16 %v1091
      %v1145 = vunpack.c.l.b16 %v1092
      %v1146 = vunpack.c.h.b16 %v1092
      %v1147 = vunpack.c.l.b16 %v1093
      %v1148 = vunpack.c.l.b16 %v1094
      %v1149 = vunpack.c.h.b16 %v1094
      %v1150 = vunpack.c.l.b16 %v1095
      %v1151 = vunpack.c.l.b16 %v1096
      %v1152 = vunpack.c.h.b16 %v1096
      %v1153 = vunpack.c.l.b16 %v1097
      %v1154 = vunpack.c.l.b16 %v1098
      %v1155 = vunpack.c.h.b16 %v1098
      %v1156 = vunpack.c.l.b16 %v1099
      %v1157 = vpack.c.b16 %v1136, %v1133
      %v1158 = vpack.c.b16 %v1137, %v1134
      %v1159 = vpack.c.b16 %v1138, %v1135
      %v1160 = vpack.c.b16 %v1142, %v1139
      %v1161 = vpack.c.b16 %v1143, %v1140
      %v1162 = vpack.c.b16 %v1144, %v1141
      %v1163 = vpack.c.b16 %v1148, %v1145
      %v1164 = vpack.c.b16 %v1149, %v1146
      %v1165 = vpack.c.b16 %v1150, %v1147
      %v1166 = vpack.c.b16 %v1154, %v1151
      %v1167 = vpack.c.b16 %v1155, %v1152
      %v1168 = vpack.c.b16 %v1156, %v1153
      %v1182 = vsel %vm960, %v1083, 0
      %1184 = vmatprep.subr.bf16.mxu0 0
      %1185 = vmatpush1.bf16.msra.mxu0 0
      %1186 = vmatprep.subr.bf16.mxu0 0
      %1187 = vmatpush1.bf16.msra.mxu0 0
      %1188 = vmatprep.subr.bf16.mxu0 0
      %1189 = vmatpush1.bf16.msra.mxu0 0
      %1190 = vmatprep.subr.bf16.mxu0 0
      %1191 = vmatpush1.bf16.msra.mxu0 0
      %1192 = vmatprep.subr.bf16.mxu0 %v1167
      %1193 = vmatpush1.bf16.msra.mxu0 %v1166
      %1194 = vmatprep.subr.bf16.mxu0 %v1164
      %1195 = vmatpush1.bf16.msra.mxu0 %v1163
      %1196 = vmatprep.subr.bf16.mxu0 %v1161
      %1197 = vmatpush1.bf16.msra.mxu0 %v1160
      %1198 = vmatprep.subr.bf16.mxu0 %v1158
      %1199 = vmatpush1.bf16.msra.mxu0 %v1157
      %1200 = vmatprep.subr.bf16.mxu0 0
      %1201 = vmatpush2.bf16.msra.mxu0 0
      %1202 = vmatprep.subr.bf16.mxu0 0
      %1203 = vmatpush2.bf16.msra.mxu0 0
      %1204 = vmatprep.subr.bf16.mxu0 0
      %1205 = vmatpush2.bf16.msra.mxu0 0
      %1206 = vmatprep.subr.bf16.mxu0 0
      %1207 = vmatpush2.bf16.msra.mxu0 0
      %1208 = vmatprep.subr.bf16.mxu0 0
      %1209 = vmatpush2.bf16.msra.mxu0 0
      %1210 = vmatprep.subr.bf16.mxu0 0
      %1211 = vmatpush2.bf16.msra.mxu0 0
      %1212 = vmatprep.subr.bf16.mxu0 0
      %1213 = vmatpush2.bf16.msra.mxu0 0
      %1214 = vmatprep.subr.bf16.mxu0 0
      %1215 = vmatpush2.bf16.msra.mxu0 0
      %1216 = vmatprep.mubr.bf16.mxu0 0
      %1217 = vmatmul.mubr.bf16.gmra.mxu0 %v1182
      %v1218 = vpop.f32.mrf.mxu0
      %v1219 = vadd.f32 %v1105, %v1218
      %v1220 = vpop.f32.mrf.mxu0
      %v1221 = vadd.f32 %v1109, %v1220
      %v1222 = vpop.f32.mrf.mxu0
      %v1223 = vadd.f32 %v1105, %v1222
      %v1224 = vpop.f32.mrf.mxu0
      %v1225 = vadd.f32 %v1109, %v1224
      %1226 = vdwg.mxu0
      %1227 = vmatprep.subr.bf16.mxu0 0
      %1228 = vmatpush1.bf16.msra.mxu0 0
      %1229 = vmatprep.subr.bf16.mxu0 0
      %1230 = vmatpush1.bf16.msra.mxu0 0
      %1231 = vmatprep.subr.bf16.mxu0 0
      %1232 = vmatpush1.bf16.msra.mxu0 0
      %1233 = vmatprep.subr.bf16.mxu0 0
      %1234 = vmatpush1.bf16.msra.mxu0 0
      %1235 = vmatprep.subr.bf16.mxu0 0
      %1236 = vmatpush1.bf16.msra.mxu0 %v1168
      %1237 = vmatprep.subr.bf16.mxu0 0
      %1238 = vmatpush1.bf16.msra.mxu0 %v1165
      %1239 = vmatprep.subr.bf16.mxu0 0
      %1240 = vmatpush1.bf16.msra.mxu0 %v1162
      %1241 = vmatprep.subr.bf16.mxu0 0
      %1242 = vmatpush1.bf16.msra.mxu0 %v1159
      %1243 = vmatprep.subr.bf16.mxu0 0
      %1244 = vmatpush2.bf16.msra.mxu0 0
      %1245 = vmatprep.subr.bf16.mxu0 0
      %1246 = vmatpush2.bf16.msra.mxu0 0
      %1247 = vmatprep.subr.bf16.mxu0 0
      %1248 = vmatpush2.bf16.msra.mxu0 0
      %1249 = vmatprep.subr.bf16.mxu0 0
      %1250 = vmatpush2.bf16.msra.mxu0 0
      %1251 = vmatprep.subr.bf16.mxu0 0
      %1252 = vmatpush2.bf16.msra.mxu0 0
      %1253 = vmatprep.subr.bf16.mxu0 0
      %1254 = vmatpush2.bf16.msra.mxu0 0
      %1255 = vmatprep.subr.bf16.mxu0 0
      %1256 = vmatpush2.bf16.msra.mxu0 0
      %1257 = vmatprep.subr.bf16.mxu0 0
      %1258 = vmatpush2.bf16.msra.mxu0 0
      %1259 = vmatprep.mubr.bf16.mxu0 0
      %1260 = vmatmul.mubr.bf16.gmra.mxu0 %v1182
      %v1261 = vpop.f32.mrf.mxu0
      %v1262 = vadd.f32 %v1113, %v1261
      %v1263 = vpop.f32.mrf.mxu0
      %v1264 = vpop.f32.mrf.mxu0
      %v1265 = vadd.f32 %v1113, %v1264
      %v1266 = vpop.f32.mrf.mxu0
      %1267 = vdwg.mxu0
      %v1268 = vmul.f32 %v1219, %v1221
      %v1269 = vmul.f32 %v1223, %v1225
      %1270 = vrot.lane.b32.xlu0 %v1268, 127
      %v1271 = vpop.permute.xlu0 %1270
      %1272 = vrot.lane.b32.xlu0 %v1269, 127
      %v1273 = vpop.permute.xlu0 %1272
      %1274 = vrot.lane.b32.xlu0 %v1268, 1
      %v1275 = vpop.permute.xlu0 %1274
      %1276 = vrot.lane.b32.xlu0 %v1269, 1
      %v1277 = vpop.permute.xlu0 %1276
      %v1278 = vsel %vm785, 1, 0
      %vm1279 = vcmp.eq.s32.totalorder %v1278, 1
      %v1280 = vsel %vm1279, %v1271, %v1275
      %v1281 = vsel %vm1279, %v1273, %v1277
      %v1282 = vadd.f32 %v1268, %v1280
      %v1283 = vadd.f32 %v1269, %v1281
      %1284 = vrot.lane.b32.xlu0 %v1282, 126
      %v1285 = vpop.permute.xlu0 %1284
      %1286 = vrot.lane.b32.xlu0 %v1283, 126
      %v1287 = vpop.permute.xlu0 %1286
      %1288 = vrot.lane.b32.xlu0 %v1282, 2
      %v1289 = vpop.permute.xlu0 %1288
      %1290 = vrot.lane.b32.xlu0 %v1283, 2
      %v1291 = vpop.permute.xlu0 %1290
      %v1292 = vsel %vm787, 1, 0
      %vm1293 = vcmp.eq.s32.totalorder %v1292, 1
      %v1294 = vsel %vm1293, %v1285, %v1289
      %v1295 = vsel %vm1293, %v1287, %v1291
      %v1296 = vadd.f32 %v1282, %v1294
      %v1297 = vadd.f32 %v1283, %v1295
      %1298 = vrot.lane.b32.xlu0 %v1296, 124
      %v1299 = vpop.permute.xlu0 %1298
      %1300 = vrot.lane.b32.xlu0 %v1297, 124
      %v1301 = vpop.permute.xlu0 %1300
      %1302 = vrot.lane.b32.xlu0 %v1296, 4
      %v1303 = vpop.permute.xlu0 %1302
      %1304 = vrot.lane.b32.xlu0 %v1297, 4
      %v1305 = vpop.permute.xlu0 %1304
      %v1306 = vsel %vm789, 1, 0
      %vm1307 = vcmp.eq.s32.totalorder %v1306, 1
      %v1308 = vsel %vm1307, %v1299, %v1303
      %v1309 = vsel %vm1307, %v1301, %v1305
      %v1310 = vadd.f32 %v1296, %v1308
      %v1311 = vadd.f32 %v1297, %v1309
      %1312 = vrot.lane.b32.xlu0 %v1221, 32
      %v1313 = vpop.permute.xlu0 %1312
      %1314 = vrot.lane.b32.xlu0 %v1225, 32
      %v1315 = vpop.permute.xlu0 %1314
      %1316 = vrot.lane.b32.xlu0 %v1262, 32
      %v1317 = vpop.permute.xlu0 %1316
      %1318 = vrot.lane.b32.xlu0 %v1265, 32
      %v1319 = vpop.permute.xlu0 %1318
      %v1320 = vmul.f32 %v1219, %v1313
      %v1321 = vmul.f32 %v1223, %v1315
      %1322 = vrot.lane.b32.xlu0 %v1320, 127
      %v1323 = vpop.permute.xlu0 %1322
      %1324 = vrot.lane.b32.xlu0 %v1321, 127
      %v1325 = vpop.permute.xlu0 %1324
      %1326 = vrot.lane.b32.xlu0 %v1320, 1
      %v1327 = vpop.permute.xlu0 %1326
      %1328 = vrot.lane.b32.xlu0 %v1321, 1
      %v1329 = vpop.permute.xlu0 %1328
      %v1330 = vsel %vm1279, %v1323, %v1327
      %v1331 = vsel %vm1279, %v1325, %v1329
      %v1332 = vadd.f32 %v1320, %v1330
      %v1333 = vadd.f32 %v1321, %v1331
      %1334 = vrot.lane.b32.xlu0 %v1332, 126
      %v1335 = vpop.permute.xlu0 %1334
      %1336 = vrot.lane.b32.xlu0 %v1333, 126
      %v1337 = vpop.permute.xlu0 %1336
      %1338 = vrot.lane.b32.xlu0 %v1332, 2
      %v1339 = vpop.permute.xlu0 %1338
      %1340 = vrot.lane.b32.xlu0 %v1333, 2
      %v1341 = vpop.permute.xlu0 %1340
      %v1342 = vsel %vm1293, %v1335, %v1339
      %v1343 = vsel %vm1293, %v1337, %v1341
      %v1344 = vadd.f32 %v1332, %v1342
      %v1345 = vadd.f32 %v1333, %v1343
      %1346 = vrot.lane.b32.xlu0 %v1344, 124
      %v1347 = vpop.permute.xlu0 %1346
      %1348 = vrot.lane.b32.xlu0 %v1345, 124
      %v1349 = vpop.permute.xlu0 %1348
      %1350 = vrot.lane.b32.xlu0 %v1344, 4
      %v1351 = vpop.permute.xlu0 %1350
      %1352 = vrot.lane.b32.xlu0 %v1345, 4
      %v1353 = vpop.permute.xlu0 %1352
      %v1354 = vsel %vm1307, %v1347, %v1351
      %v1355 = vsel %vm1307, %v1349, %v1353
      %v1356 = vadd.f32 %v1344, %v1354
      %v1357 = vadd.f32 %v1345, %v1355
      %v1358 = vmax.f32 %v1310, %v1356
      %v1359 = vmax.f32 %v1311, %v1357
      %v1360 = vsub.f32 %v1310, %v1358
      %v1361 = vsub.f32 %v1311, %v1359
      %v1362 = vmul.f32 %v1360, 1.442695
      %v1363 = vpow.pop %v1362
      %v1364 = vmul.f32 %v1361, 1.442695
      %v1365 = vpow.pop %v1364
      %v1366 = vsub.f32 %v1356, %v1358
      %v1367 = vsub.f32 %v1357, %v1359
      %v1368 = vmul.f32 %v1366, 1.442695
      %v1369 = vpow.pop %v1368
      %v1370 = vmul.f32 %v1367, 1.442695
      %v1371 = vpow.pop %v1370
      %v1372 = vadd.f32 %v1363, %v1369
      %v1373 = vadd.f32 %v1365, %v1371
      %v1374 = vmul.f32 %v1363, %v1262
      %v1375 = vmul.f32 %v1365, %v1265
      %v1376 = vmul.f32 %v1369, %v1317
      %v1377 = vmul.f32 %v1371, %v1319
      %v1378 = vadd.f32 %v1374, %v1376
      %v1379 = vadd.f32 %v1375, %v1377
      %1380 = vrot.lane.b32.xlu0 %v1221, 64
      %v1381 = vpop.permute.xlu0 %1380
      %1382 = vrot.lane.b32.xlu0 %v1225, 64
      %v1383 = vpop.permute.xlu0 %1382
      %1384 = vrot.lane.b32.xlu0 %v1262, 64
      %v1385 = vpop.permute.xlu0 %1384
      %1386 = vrot.lane.b32.xlu0 %v1265, 64
      %v1387 = vpop.permute.xlu0 %1386
      %v1388 = vmul.f32 %v1219, %v1381
      %v1389 = vmul.f32 %v1223, %v1383
      %1390 = vrot.lane.b32.xlu0 %v1388, 127
      %v1391 = vpop.permute.xlu0 %1390
      %1392 = vrot.lane.b32.xlu0 %v1389, 127
      %v1393 = vpop.permute.xlu0 %1392
      %1394 = vrot.lane.b32.xlu0 %v1388, 1
      %v1395 = vpop.permute.xlu0 %1394
      %1396 = vrot.lane.b32.xlu0 %v1389, 1
      %v1397 = vpop.permute.xlu0 %1396
      %v1398 = vsel %vm1279, %v1391, %v1395
      %v1399 = vsel %vm1279, %v1393, %v1397
      %v1400 = vadd.f32 %v1388, %v1398
      %v1401 = vadd.f32 %v1389, %v1399
      %1402 = vrot.lane.b32.xlu0 %v1400, 126
      %v1403 = vpop.permute.xlu0 %1402
      %1404 = vrot.lane.b32.xlu0 %v1401, 126
      %v1405 = vpop.permute.xlu0 %1404
      %1406 = vrot.lane.b32.xlu0 %v1400, 2
      %v1407 = vpop.permute.xlu0 %1406
      %1408 = vrot.lane.b32.xlu0 %v1401, 2
      %v1409 = vpop.permute.xlu0 %1408
      %v1410 = vsel %vm1293, %v1403, %v1407
      %v1411 = vsel %vm1293, %v1405, %v1409
      %v1412 = vadd.f32 %v1400, %v1410
      %v1413 = vadd.f32 %v1401, %v1411
      %1414 = vrot.lane.b32.xlu0 %v1412, 124
      %v1415 = vpop.permute.xlu0 %1414
      %1416 = vrot.lane.b32.xlu0 %v1413, 124
      %v1417 = vpop.permute.xlu0 %1416
      %1418 = vrot.lane.b32.xlu0 %v1412, 4
      %v1419 = vpop.permute.xlu0 %1418
      %1420 = vrot.lane.b32.xlu0 %v1413, 4
      %v1421 = vpop.permute.xlu0 %1420
      %v1422 = vsel %vm1307, %v1415, %v1419
      %v1423 = vsel %vm1307, %v1417, %v1421
      %v1424 = vadd.f32 %v1412, %v1422
      %v1425 = vadd.f32 %v1413, %v1423
      %v1426 = vmax.f32 %v1358, %v1424
      %v1427 = vmax.f32 %v1359, %v1425
      %v1428 = vsub.f32 %v1358, %v1426
      %v1429 = vsub.f32 %v1359, %v1427
      %v1430 = vmul.f32 %v1428, 1.442695
      %v1431 = vpow.pop %v1430
      %v1432 = vmul.f32 %v1429, 1.442695
      %v1433 = vpow.pop %v1432
      %v1434 = vsub.f32 %v1424, %v1426
      %v1435 = vsub.f32 %v1425, %v1427
      %v1436 = vmul.f32 %v1434, 1.442695
      %v1437 = vpow.pop %v1436
      %v1438 = vmul.f32 %v1435, 1.442695
      %v1439 = vpow.pop %v1438
      %v1440 = vmul.f32 %v1431, %v1372
      %v1441 = vmul.f32 %v1433, %v1373
      %v1442 = vadd.f32 %v1440, %v1437
      %v1443 = vadd.f32 %v1441, %v1439
      %v1444 = vmul.f32 %v1431, %v1378
      %v1445 = vmul.f32 %v1433, %v1379
      %v1446 = vmul.f32 %v1437, %v1385
      %v1447 = vmul.f32 %v1439, %v1387
      %v1448 = vadd.f32 %v1444, %v1446
      %v1449 = vadd.f32 %v1445, %v1447
      %1450 = vrot.lane.b32.xlu0 %v1221, 96
      %v1451 = vpop.permute.xlu0 %1450
      %1452 = vrot.lane.b32.xlu0 %v1225, 96
      %v1453 = vpop.permute.xlu0 %1452
      %1454 = vrot.lane.b32.xlu0 %v1262, 96
      %v1455 = vpop.permute.xlu0 %1454
      %1456 = vrot.lane.b32.xlu0 %v1265, 96
      %v1457 = vpop.permute.xlu0 %1456
      %v1458 = vmul.f32 %v1219, %v1451
      %v1459 = vmul.f32 %v1223, %v1453
      %1460 = vrot.lane.b32.xlu0 %v1458, 127
      %v1461 = vpop.permute.xlu0 %1460
      %1462 = vrot.lane.b32.xlu0 %v1459, 127
      %v1463 = vpop.permute.xlu0 %1462
      %1464 = vrot.lane.b32.xlu0 %v1458, 1
      %v1465 = vpop.permute.xlu0 %1464
      %1466 = vrot.lane.b32.xlu0 %v1459, 1
      %v1467 = vpop.permute.xlu0 %1466
      %v1468 = vsel %vm1279, %v1461, %v1465
      %v1469 = vsel %vm1279, %v1463, %v1467
      %v1470 = vadd.f32 %v1458, %v1468
      %v1471 = vadd.f32 %v1459, %v1469
      %1472 = vrot.lane.b32.xlu0 %v1470, 126
      %v1473 = vpop.permute.xlu0 %1472
      %1474 = vrot.lane.b32.xlu0 %v1471, 126
      %v1475 = vpop.permute.xlu0 %1474
      %1476 = vrot.lane.b32.xlu0 %v1470, 2
      %v1477 = vpop.permute.xlu0 %1476
      %1478 = vrot.lane.b32.xlu0 %v1471, 2
      %v1479 = vpop.permute.xlu0 %1478
      %v1480 = vsel %vm1293, %v1473, %v1477
      %v1481 = vsel %vm1293, %v1475, %v1479
      %v1482 = vadd.f32 %v1470, %v1480
      %v1483 = vadd.f32 %v1471, %v1481
      %1484 = vrot.lane.b32.xlu0 %v1482, 124
      %v1485 = vpop.permute.xlu0 %1484
      %1486 = vrot.lane.b32.xlu0 %v1483, 124
      %v1487 = vpop.permute.xlu0 %1486
      %1488 = vrot.lane.b32.xlu0 %v1482, 4
      %v1489 = vpop.permute.xlu0 %1488
      %1490 = vrot.lane.b32.xlu0 %v1483, 4
      %v1491 = vpop.permute.xlu0 %1490
      %v1492 = vsel %vm1307, %v1485, %v1489
      %v1493 = vsel %vm1307, %v1487, %v1491
      %v1494 = vadd.f32 %v1482, %v1492
      %v1495 = vadd.f32 %v1483, %v1493
      %v1496 = vmax.f32 %v1426, %v1494
      %v1497 = vmax.f32 %v1427, %v1495
      %v1498 = vsub.f32 %v1426, %v1496
      %v1499 = vsub.f32 %v1427, %v1497
      %v1500 = vmul.f32 %v1498, 1.442695
      %v1501 = vpow.pop %v1500
      %v1502 = vmul.f32 %v1499, 1.442695
      %v1503 = vpow.pop %v1502
      %v1504 = vsub.f32 %v1494, %v1496
      %v1505 = vsub.f32 %v1495, %v1497
      %v1506 = vmul.f32 %v1504, 1.442695
      %v1507 = vpow.pop %v1506
      %v1508 = vmul.f32 %v1505, 1.442695
      %v1509 = vpow.pop %v1508
      %v1510 = vmul.f32 %v1501, %v1442
      %v1511 = vmul.f32 %v1503, %v1443
      %v1512 = vadd.f32 %v1510, %v1507
      %v1513 = vadd.f32 %v1511, %v1509
      %v1514 = vmul.f32 %v1501, %v1448
      %v1515 = vmul.f32 %v1503, %v1449
      %v1516 = vmul.f32 %v1507, %v1455
      %v1517 = vmul.f32 %v1509, %v1457
      %v1518 = vadd.f32 %v1514, %v1516
      %v1519 = vadd.f32 %v1515, %v1517
      %v1520 = vrcp.pop %v1512
      %v1521 = vrcp.pop %v1513
      %v1522 = vmul.f32 %v1518, %v1520
      %v1523 = vmul.f32 %v1519, %v1521
      %v1524 = vpack.c.bf16 %v1523, %v1522
      %v1525 = vld [vmem:[%s5] sm:$0xf]
      %v1526 = vld [vmem:[%s5 + $0x4] sm:$0xf]
      %v1527 = vld [vmem:[%s5 + $0x8] sm:$0xf]
      %v1528 = vld [vmem:[%s5 + $0xc] sm:$0xf]
      %v1529 = vld [vmem:[%s5 + $0x10] sm:$0xf]
      %v1530 = vld [vmem:[%s5 + $0x14] sm:$0xf]
      %v1531 = vld [vmem:[%s5 + $0x18] sm:$0xf]
      %v1532 = vld [vmem:[%s5 + $0x1c] sm:$0xf]
      %v1533 = vld [vmem:[%s5 + $0x20] sm:$0xf]
      %v1534 = vld [vmem:[%s5 + $0x24] sm:$0xf]
      %v1535 = vld [vmem:[%s5 + $0x28] sm:$0xf]
      %v1536 = vld [vmem:[%s5 + $0x2c] sm:$0xf]
      %v1537 = vld [vmem:[%s5 + $0x30] sm:$0xf]
      %v1538 = vld [vmem:[%s5 + $0x34] sm:$0xf]
      %v1539 = vld [vmem:[%s5 + $0x38] sm:$0xf]
      %v1540 = vld [vmem:[%s5 + $0x3c] sm:$0xf]
      %v1557 = vunpack.c.l.b16 %v1525
      %v1558 = vunpack.c.l.b16 %v1526
      %v1559 = vunpack.c.l.b16 %v1527
      %v1560 = vunpack.c.l.b16 %v1528
      %v1561 = vunpack.c.l.b16 %v1529
      %v1562 = vunpack.c.l.b16 %v1530
      %v1563 = vunpack.c.l.b16 %v1531
      %v1564 = vunpack.c.l.b16 %v1532
      %v1565 = vunpack.c.l.b16 %v1533
      %v1566 = vunpack.c.l.b16 %v1534
      %v1567 = vunpack.c.l.b16 %v1535
      %v1568 = vunpack.c.l.b16 %v1536
      %v1569 = vunpack.c.l.b16 %v1537
      %v1570 = vunpack.c.l.b16 %v1538
      %v1571 = vunpack.c.l.b16 %v1539
      %v1572 = vunpack.c.l.b16 %v1540
      %v1573 = vpack.c.b16 %v1558, %v1557
      %v1574 = vpack.c.b16 %v1560, %v1559
      %v1575 = vpack.c.b16 %v1562, %v1561
      %v1576 = vpack.c.b16 %v1564, %v1563
      %v1577 = vpack.c.b16 %v1566, %v1565
      %v1578 = vpack.c.b16 %v1568, %v1567
      %v1579 = vpack.c.b16 %v1570, %v1569
      %v1580 = vpack.c.b16 %v1572, %v1571
      %1589 = vmatprep.subr.bf16.mxu0 0
      %1590 = vmatpush1.bf16.msra.mxu0 %v1580
      %1591 = vmatprep.subr.bf16.mxu0 0
      %1592 = vmatpush1.bf16.msra.mxu0 %v1579
      %1593 = vmatprep.subr.bf16.mxu0 0
      %1594 = vmatpush1.bf16.msra.mxu0 %v1578
      %1595 = vmatprep.subr.bf16.mxu0 0
      %1596 = vmatpush1.bf16.msra.mxu0 %v1577
      %1597 = vmatprep.subr.bf16.mxu0 0
      %1598 = vmatpush1.bf16.msra.mxu0 %v1576
      %1599 = vmatprep.subr.bf16.mxu0 0
      %1600 = vmatpush1.bf16.msra.mxu0 %v1575
      %1601 = vmatprep.subr.bf16.mxu0 0
      %1602 = vmatpush1.bf16.msra.mxu0 %v1574
      %1603 = vmatprep.subr.bf16.mxu0 0
      %1604 = vmatpush1.bf16.msra.mxu0 %v1573
      %1605 = vmatprep.subr.bf16.mxu0 0
      %1606 = vmatpush2.bf16.msra.mxu0 0
      %1607 = vmatprep.subr.bf16.mxu0 0
      %1608 = vmatpush2.bf16.msra.mxu0 0
      %1609 = vmatprep.subr.bf16.mxu0 0
      %1610 = vmatpush2.bf16.msra.mxu0 0
      %1611 = vmatprep.subr.bf16.mxu0 0
      %1612 = vmatpush2.bf16.msra.mxu0 0
      %1613 = vmatprep.subr.bf16.mxu0 0
      %1614 = vmatpush2.bf16.msra.mxu0 0
      %1615 = vmatprep.subr.bf16.mxu0 0
      %1616 = vmatpush2.bf16.msra.mxu0 0
      %1617 = vmatprep.subr.bf16.mxu0 0
      %1618 = vmatpush2.bf16.msra.mxu0 0
      %1619 = vmatprep.subr.bf16.mxu0 0
      %1620 = vmatpush2.bf16.msra.mxu0 0
      %1621 = vmatprep.mubr.bf16.mxu0 0
      %1622 = vmatmul.mubr.bf16.gmra.mxu0 %v1524
      %v1623 = vpop.f32.mrf.mxu0
      %v1624 = vadd.f32 0.0, %v1623
      %v1625 = vpop.f32.mrf.mxu0
      %v1626 = vpop.f32.mrf.mxu0
      %v1627 = vadd.f32 0.0, %v1626
      %v1628 = vpop.f32.mrf.mxu0
      %1629 = vdwg.mxu0
      %v1630 = vadd.f32 %v944, %v1624
      %v1631 = vadd.f32 %v947, %v1627
      %v1632 = vld [vmem:[%s6] sm:$0x1]
      %v1634 = vlaneseq
      %v1635 = vshrl.u32 %v1634, 7
      %v1636 = vsub.s32 0, %v1635
      %v1637 = vrot.slane %v1632, %v1636
      %v1639 = vadd.f32 %v1630, %v1637
      %v1640 = vadd.f32 %v1631, %v1637
      %v1641 = vmul.f32 %v1639, %v1639
      %v1642 = vmul.f32 %v1640, %v1640
      %1645 = vrot.lane.b32.xlu0 %v1641, 64
      %v1646 = vpop.permute.xlu0 %1645
      %1647 = vrot.lane.b32.xlu0 %v1642, 64
      %v1648 = vpop.permute.xlu0 %1647
      %v1651 = vsel %vm960, %v1639, %v1646
      %v1652 = vsel %vm960, %v1640, %v1648
      %v1653 = vpack.c.bf16 %v1652, %v1651
      %1654 = vmatprep.subr.bf16.mxu0 0
      %1655 = vmatpush1.bf16.msra.mxu0 %v1003
      %1656 = vmatprep.subr.bf16.mxu0 0
      %1657 = vmatpush1.bf16.msra.mxu0 %v1002
      %1658 = vmatprep.subr.bf16.mxu0 0
      %1659 = vmatpush1.bf16.msra.mxu0 %v1001
      %1660 = vmatprep.subr.bf16.mxu0 0
      %1661 = vmatpush1.bf16.msra.mxu0 %v1000
      %1662 = vmatprep.subr.bf16.mxu0 0
      %1663 = vmatpush1.bf16.msra.mxu0 %v999
      %1664 = vmatprep.subr.bf16.mxu0 0
      %1665 = vmatpush1.bf16.msra.mxu0 %v998
      %1666 = vmatprep.subr.bf16.mxu0 0
      %1667 = vmatpush1.bf16.msra.mxu0 %v997
      %1668 = vmatprep.subr.bf16.mxu0 0
      %1669 = vmatpush1.bf16.msra.mxu0 %v996
      %1670 = vmatprep.subr.bf16.mxu0 0
      %1671 = vmatpush2.bf16.msra.mxu0 0
      %1672 = vmatprep.subr.bf16.mxu0 0
      %1673 = vmatpush2.bf16.msra.mxu0 0
      %1674 = vmatprep.subr.bf16.mxu0 0
      %1675 = vmatpush2.bf16.msra.mxu0 0
      %1676 = vmatprep.subr.bf16.mxu0 0
      %1677 = vmatpush2.bf16.msra.mxu0 0
      %1678 = vmatprep.subr.bf16.mxu0 0
      %1679 = vmatpush2.bf16.msra.mxu0 0
      %1680 = vmatprep.subr.bf16.mxu0 0
      %1681 = vmatpush2.bf16.msra.mxu0 0
      %1682 = vmatprep.subr.bf16.mxu0 0
      %1683 = vmatpush2.bf16.msra.mxu0 0
      %1684 = vmatprep.subr.bf16.mxu0 0
      %1685 = vmatpush2.bf16.msra.mxu0 0
      %1686 = vmatprep.mubr.bf16.mxu0 0
      %1687 = vmatmul.mubr.bf16.gmra.mxu0 %v1653
      %v1688 = vpop.f32.mrf.mxu0
      %v1689 = vadd.f32 0.0, %v1688
      %v1690 = vpop.f32.mrf.mxu0
      %v1691 = vpop.f32.mrf.mxu0
      %v1692 = vadd.f32 0.0, %v1691
      %v1693 = vpop.f32.mrf.mxu0
      %1694 = vdwg.mxu0
      %v1695 = vmul.f32 %v1689, %v1689
      %v1696 = vmul.f32 %v1692, %v1692
      %1699 = vrot.lane.b32.xlu0 %v1695, 64
      %v1700 = vpop.permute.xlu0 %1699
      %1701 = vrot.lane.b32.xlu0 %v1696, 64
      %v1702 = vpop.permute.xlu0 %1701
      %v1705 = vsub.f32 %v1689, %v1700
      %v1706 = vsub.f32 %v1692, %v1702
      %v1707 = vmax.f32 %v1705, 0.0
      %v1708 = vmax.f32 %v1706, 0.0
      %v1709 = vsub.f32 %v1639, %v1689
      %v1710 = vsub.f32 %v1640, %v1692
      %v1711 = vadd.f32 %v1707, 1e-05
      %v1712 = vadd.f32 %v1708, 1e-05
      %v1713 = vrsqrt.pop %v1711
      %v1714 = vrsqrt.pop %v1712
      %1717 = vrot.lane.b32.xlu0 %v1713, 64
      %v1718 = vpop.permute.xlu0 %1717
      %1719 = vrot.lane.b32.xlu0 %v1714, 64
      %v1720 = vpop.permute.xlu0 %1719
      %v1723 = vmul.f32 %v1709, %v1718
      %v1724 = vmul.f32 %v1710, %v1720
      %v1725 = vpack.c.bf16 %v1724, %v1723
      %v1726 = vld [vmem:[%s7] sm:$0xff]
      %v1727 = vld [vmem:[%s7 + $0x8] sm:$0xff]
      %v1728 = vld [vmem:[%s7 + $0x10] sm:$0xff]
      %v1729 = vld [vmem:[%s7 + $0x18] sm:$0xff]
      %v1730 = vld [vmem:[%s7 + $0x20] sm:$0xff]
      %v1731 = vld [vmem:[%s7 + $0x28] sm:$0xff]
      %v1732 = vld [vmem:[%s7 + $0x30] sm:$0xff]
      %v1733 = vld [vmem:[%s7 + $0x38] sm:$0xff]
      %v1734 = vld [vmem:[%s7 + $0x40] sm:$0xff]
      %v1735 = vld [vmem:[%s7 + $0x48] sm:$0xff]
      %v1736 = vld [vmem:[%s7 + $0x50] sm:$0xff]
      %v1737 = vld [vmem:[%s7 + $0x58] sm:$0xff]
      %v1738 = vld [vmem:[%s7 + $0x60] sm:$0xff]
      %v1739 = vld [vmem:[%s7 + $0x68] sm:$0xff]
      %v1740 = vld [vmem:[%s7 + $0x70] sm:$0xff]
      %v1741 = vld [vmem:[%s7 + $0x78] sm:$0xff]
      %v1742 = vld [vmem:[%s8] sm:$0xf]
      %v1744 = vlaneseq
      %v1745 = vshrl.u32 %v1744, 7
      %v1746 = vsub.s32 0, %v1745
      %v1747 = vrot.slane %v1742, %v1746
      %v1748 = vlaneseq
      %v1749 = vshrl.u32 %v1748, 7
      %v1750 = vsub.s32 1, %v1749
      %v1751 = vrot.slane %v1742, %v1750
      %v1752 = vlaneseq
      %v1753 = vshrl.u32 %v1752, 7
      %v1754 = vsub.s32 2, %v1753
      %v1755 = vrot.slane %v1742, %v1754
      %v1756 = vlaneseq
      %v1757 = vshrl.u32 %v1756, 7
      %v1758 = vsub.s32 3, %v1757
      %v1759 = vrot.slane %v1742, %v1758
      %v1780 = vunpack.c.l.b16 %v1726
      %v1781 = vunpack.c.h.b16 %v1726
      %v1782 = vunpack.c.l.b16 %v1727
      %v1783 = vunpack.c.h.b16 %v1727
      %v1784 = vunpack.c.l.b16 %v1728
      %v1785 = vunpack.c.h.b16 %v1728
      %v1786 = vunpack.c.l.b16 %v1729
      %v1787 = vunpack.c.h.b16 %v1729
      %v1788 = vunpack.c.l.b16 %v1730
      %v1789 = vunpack.c.h.b16 %v1730
      %v1790 = vunpack.c.l.b16 %v1731
      %v1791 = vunpack.c.h.b16 %v1731
      %v1792 = vunpack.c.l.b16 %v1732
      %v1793 = vunpack.c.h.b16 %v1732
      %v1794 = vunpack.c.l.b16 %v1733
      %v1795 = vunpack.c.h.b16 %v1733
      %v1796 = vunpack.c.l.b16 %v1734
      %v1797 = vunpack.c.h.b16 %v1734
      %v1798 = vunpack.c.l.b16 %v1735
      %v1799 = vunpack.c.h.b16 %v1735
      %v1800 = vunpack.c.l.b16 %v1736
      %v1801 = vunpack.c.h.b16 %v1736
      %v1802 = vunpack.c.l.b16 %v1737
      %v1803 = vunpack.c.h.b16 %v1737
      %v1804 = vunpack.c.l.b16 %v1738
      %v1805 = vunpack.c.h.b16 %v1738
      %v1806 = vunpack.c.l.b16 %v1739
      %v1807 = vunpack.c.h.b16 %v1739
      %v1808 = vunpack.c.l.b16 %v1740
      %v1809 = vunpack.c.h.b16 %v1740
      %v1810 = vunpack.c.l.b16 %v1741
      %v1811 = vunpack.c.h.b16 %v1741
      %v1812 = vpack.c.b16 %v1784, %v1780
      %v1813 = vpack.c.b16 %v1785, %v1781
      %v1814 = vpack.c.b16 %v1786, %v1782
      %v1815 = vpack.c.b16 %v1787, %v1783
      %v1816 = vpack.c.b16 %v1792, %v1788
      %v1817 = vpack.c.b16 %v1793, %v1789
      %v1818 = vpack.c.b16 %v1794, %v1790
      %v1819 = vpack.c.b16 %v1795, %v1791
      %v1820 = vpack.c.b16 %v1800, %v1796
      %v1821 = vpack.c.b16 %v1801, %v1797
      %v1822 = vpack.c.b16 %v1802, %v1798
      %v1823 = vpack.c.b16 %v1803, %v1799
      %v1824 = vpack.c.b16 %v1808, %v1804
      %v1825 = vpack.c.b16 %v1809, %v1805
      %v1826 = vpack.c.b16 %v1810, %v1806
      %v1827 = vpack.c.b16 %v1811, %v1807
      %v1845 = vsel %vm960, %v1725, 0
      %1847 = vmatprep.subr.bf16.mxu0 0
      %1848 = vmatpush1.bf16.msra.mxu0 0
      %1849 = vmatprep.subr.bf16.mxu0 0
      %1850 = vmatpush1.bf16.msra.mxu0 0
      %1851 = vmatprep.subr.bf16.mxu0 0
      %1852 = vmatpush1.bf16.msra.mxu0 0
      %1853 = vmatprep.subr.bf16.mxu0 0
      %1854 = vmatpush1.bf16.msra.mxu0 0
      %1855 = vmatprep.subr.bf16.mxu0 %v1825
      %1856 = vmatpush1.bf16.msra.mxu0 %v1824
      %1857 = vmatprep.subr.bf16.mxu0 %v1821
      %1858 = vmatpush1.bf16.msra.mxu0 %v1820
      %1859 = vmatprep.subr.bf16.mxu0 %v1817
      %1860 = vmatpush1.bf16.msra.mxu0 %v1816
      %1861 = vmatprep.subr.bf16.mxu0 %v1813
      %1862 = vmatpush1.bf16.msra.mxu0 %v1812
      %1863 = vmatprep.subr.bf16.mxu0 0
      %1864 = vmatpush2.bf16.msra.mxu0 0
      %1865 = vmatprep.subr.bf16.mxu0 0
      %1866 = vmatpush2.bf16.msra.mxu0 0
      %1867 = vmatprep.subr.bf16.mxu0 0
      %1868 = vmatpush2.bf16.msra.mxu0 0
      %1869 = vmatprep.subr.bf16.mxu0 0
      %1870 = vmatpush2.bf16.msra.mxu0 0
      %1871 = vmatprep.subr.bf16.mxu0 0
      %1872 = vmatpush2.bf16.msra.mxu0 0
      %1873 = vmatprep.subr.bf16.mxu0 0
      %1874 = vmatpush2.bf16.msra.mxu0 0
      %1875 = vmatprep.subr.bf16.mxu0 0
      %1876 = vmatpush2.bf16.msra.mxu0 0
      %1877 = vmatprep.subr.bf16.mxu0 0
      %1878 = vmatpush2.bf16.msra.mxu0 0
      %1879 = vmatprep.mubr.bf16.mxu0 0
      %1880 = vmatmul.mubr.bf16.gmra.mxu0 %v1845
      %v1881 = vpop.f32.mrf.mxu0
      %v1882 = vadd.f32 %v1747, %v1881
      %v1883 = vpop.f32.mrf.mxu0
      %v1884 = vadd.f32 %v1751, %v1883
      %v1885 = vpop.f32.mrf.mxu0
      %v1886 = vadd.f32 %v1747, %v1885
      %v1887 = vpop.f32.mrf.mxu0
      %v1888 = vadd.f32 %v1751, %v1887
      %1889 = vdwg.mxu0
      %1890 = vmatprep.subr.bf16.mxu0 0
      %1891 = vmatpush1.bf16.msra.mxu0 0
      %1892 = vmatprep.subr.bf16.mxu0 0
      %1893 = vmatpush1.bf16.msra.mxu0 0
      %1894 = vmatprep.subr.bf16.mxu0 0
      %1895 = vmatpush1.bf16.msra.mxu0 0
      %1896 = vmatprep.subr.bf16.mxu0 0
      %1897 = vmatpush1.bf16.msra.mxu0 0
      %1898 = vmatprep.subr.bf16.mxu0 %v1827
      %1899 = vmatpush1.bf16.msra.mxu0 %v1826
      %1900 = vmatprep.subr.bf16.mxu0 %v1823
      %1901 = vmatpush1.bf16.msra.mxu0 %v1822
      %1902 = vmatprep.subr.bf16.mxu0 %v1819
      %1903 = vmatpush1.bf16.msra.mxu0 %v1818
      %1904 = vmatprep.subr.bf16.mxu0 %v1815
      %1905 = vmatpush1.bf16.msra.mxu0 %v1814
      %1906 = vmatprep.subr.bf16.mxu0 0
      %1907 = vmatpush2.bf16.msra.mxu0 0
      %1908 = vmatprep.subr.bf16.mxu0 0
      %1909 = vmatpush2.bf16.msra.mxu0 0
      %1910 = vmatprep.subr.bf16.mxu0 0
      %1911 = vmatpush2.bf16.msra.mxu0 0
      %1912 = vmatprep.subr.bf16.mxu0 0
      %1913 = vmatpush2.bf16.msra.mxu0 0
      %1914 = vmatprep.subr.bf16.mxu0 0
      %1915 = vmatpush2.bf16.msra.mxu0 0
      %1916 = vmatprep.subr.bf16.mxu0 0
      %1917 = vmatpush2.bf16.msra.mxu0 0
      %1918 = vmatprep.subr.bf16.mxu0 0
      %1919 = vmatpush2.bf16.msra.mxu0 0
      %1920 = vmatprep.subr.bf16.mxu0 0
      %1921 = vmatpush2.bf16.msra.mxu0 0
      %1922 = vmatprep.mubr.bf16.mxu0 0
      %1923 = vmatmul.mubr.bf16.gmra.mxu0 %v1845
      %v1924 = vpop.f32.mrf.mxu0
      %v1925 = vadd.f32 %v1755, %v1924
      %v1926 = vpop.f32.mrf.mxu0
      %v1927 = vadd.f32 %v1759, %v1926
      %v1928 = vpop.f32.mrf.mxu0
      %v1929 = vadd.f32 %v1755, %v1928
      %v1930 = vpop.f32.mrf.mxu0
      %v1931 = vadd.f32 %v1759, %v1930
      %1932 = vdwg.mxu0
      %v1933 = vmul.f32 %v1925, 0.5
      %v1934 = vmul.f32 %v1927, 0.5
      %v1935 = vmul.f32 %v1929, 0.5
      %v1936 = vmul.f32 %v1931, 0.5
      %v1937 = vmul.f32 %v1925, 0.044715
      %v1938 = vmul.f32 %v1927, 0.044715
      %v1939 = vmul.f32 %v1929, 0.044715
      %v1940 = vmul.f32 %v1931, 0.044715
      %v1941 = vmul.f32 %v1937, %v1925
      %v1942 = vmul.f32 %v1938, %v1927
      %v1943 = vmul.f32 %v1939, %v1929
      %v1944 = vmul.f32 %v1940, %v1931
      %v1945 = vmul.f32 %v1941, %v1925
      %v1946 = vmul.f32 %v1942, %v1927
      %v1947 = vmul.f32 %v1943, %v1929
      %v1948 = vmul.f32 %v1944, %v1931
      %v1949 = vadd.f32 %v1925, %v1945
      %v1950 = vadd.f32 %v1927, %v1946
      %v1951 = vadd.f32 %v1929, %v1947
      %v1952 = vadd.f32 %v1931, %v1948
      %v1953 = vmul.f32 %v1949, 0.7978846
      %v1954 = vmul.f32 %v1950, 0.7978846
      %v1955 = vmul.f32 %v1951, 0.7978846
      %v1956 = vmul.f32 %v1952, 0.7978846
      %v1957 = vtanh.pop %v1953
      %v1958 = vtanh.pop %v1954
      %v1959 = vtanh.pop %v1955
      %v1960 = vtanh.pop %v1956
      %v1961 = vadd.f32 %v1957, 1.0
      %v1962 = vadd.f32 %v1958, 1.0
      %v1963 = vadd.f32 %v1959, 1.0
      %v1964 = vadd.f32 %v1960, 1.0
      %v1965 = vmul.f32 %v1933, %v1961
      %v1966 = vmul.f32 %v1934, %v1962
      %v1967 = vmul.f32 %v1935, %v1963
      %v1968 = vmul.f32 %v1936, %v1964
      %v1969 = vmul.f32 %v1882, %v1965
      %v1970 = vmul.f32 %v1884, %v1966
      %v1971 = vmul.f32 %v1886, %v1967
      %v1972 = vmul.f32 %v1888, %v1968
      %v1973 = vpack.c.bf16 %v1971, %v1969
      %v1974 = vpack.c.bf16 %v1972, %v1970
      %v1975 = vld [vmem:[%s9] sm:$0xf]
      %v1976 = vld [vmem:[%s9 + $0x4] sm:$0xf]
      %v1977 = vld [vmem:[%s9 + $0x8] sm:$0xf]
      %v1978 = vld [vmem:[%s9 + $0xc] sm:$0xf]
      %v1979 = vld [vmem:[%s9 + $0x10] sm:$0xf]
      %v1980 = vld [vmem:[%s9 + $0x14] sm:$0xf]
      %v1981 = vld [vmem:[%s9 + $0x18] sm:$0xf]
      %v1982 = vld [vmem:[%s9 + $0x1c] sm:$0xf]
      %v1983 = vld [vmem:[%s9 + $0x20] sm:$0xf]
      %v1984 = vld [vmem:[%s9 + $0x24] sm:$0xf]
      %v1985 = vld [vmem:[%s9 + $0x28] sm:$0xf]
      %v1986 = vld [vmem:[%s9 + $0x2c] sm:$0xf]
      %v1987 = vld [vmem:[%s9 + $0x30] sm:$0xf]
      %v1988 = vld [vmem:[%s9 + $0x34] sm:$0xf]
      %v1989 = vld [vmem:[%s9 + $0x38] sm:$0xf]
      %v1990 = vld [vmem:[%s9 + $0x3c] sm:$0xf]
      %v1991 = vld [vmem:[%s9 + $0x40] sm:$0xf]
      %v1992 = vld [vmem:[%s9 + $0x44] sm:$0xf]
      %v1993 = vld [vmem:[%s9 + $0x48] sm:$0xf]
      %v1994 = vld [vmem:[%s9 + $0x4c] sm:$0xf]
      %v1995 = vld [vmem:[%s9 + $0x50] sm:$0xf]
      %v1996 = vld [vmem:[%s9 + $0x54] sm:$0xf]
      %v1997 = vld [vmem:[%s9 + $0x58] sm:$0xf]
      %v1998 = vld [vmem:[%s9 + $0x5c] sm:$0xf]
      %v1999 = vld [vmem:[%s9 + $0x60] sm:$0xf]
      %v2000 = vld [vmem:[%s9 + $0x64] sm:$0xf]
      %v2001 = vld [vmem:[%s9 + $0x68] sm:$0xf]
      %v2002 = vld [vmem:[%s9 + $0x6c] sm:$0xf]
      %v2003 = vld [vmem:[%s9 + $0x70] sm:$0xf]
      %v2004 = vld [vmem:[%s9 + $0x74] sm:$0xf]
      %v2005 = vld [vmem:[%s9 + $0x78] sm:$0xf]
      %v2006 = vld [vmem:[%s9 + $0x7c] sm:$0xf]
      %v2039 = vunpack.c.l.b16 %v1975
      %v2040 = vunpack.c.l.b16 %v1976
      %v2041 = vunpack.c.l.b16 %v1977
      %v2042 = vunpack.c.l.b16 %v1978
      %v2043 = vunpack.c.l.b16 %v1979
      %v2044 = vunpack.c.l.b16 %v1980
      %v2045 = vunpack.c.l.b16 %v1981
      %v2046 = vunpack.c.l.b16 %v1982
      %v2047 = vunpack.c.l.b16 %v1983
      %v2048 = vunpack.c.l.b16 %v1984
      %v2049 = vunpack.c.l.b16 %v1985
      %v2050 = vunpack.c.l.b16 %v1986
      %v2051 = vunpack.c.l.b16 %v1987
      %v2052 = vunpack.c.l.b16 %v1988
      %v2053 = vunpack.c.l.b16 %v1989
      %v2054 = vunpack.c.l.b16 %v1990
      %v2055 = vunpack.c.l.b16 %v1991
      %v2056 = vunpack.c.l.b16 %v1992
      %v2057 = vunpack.c.l.b16 %v1993
      %v2058 = vunpack.c.l.b16 %v1994
      %v2059 = vunpack.c.l.b16 %v1995
      %v2060 = vunpack.c.l.b16 %v1996
      %v2061 = vunpack.c.l.b16 %v1997
      %v2062 = vunpack.c.l.b16 %v1998
      %v2063 = vunpack.c.l.b16 %v1999
      %v2064 = vunpack.c.l.b16 %v2000
      %v2065 = vunpack.c.l.b16 %v2001
      %v2066 = vunpack.c.l.b16 %v2002
      %v2067 = vunpack.c.l.b16 %v2003
      %v2068 = vunpack.c.l.b16 %v2004
      %v2069 = vunpack.c.l.b16 %v2005
      %v2070 = vunpack.c.l.b16 %v2006
      %v2071 = vpack.c.b16 %v2040, %v2039
      %v2072 = vpack.c.b16 %v2042, %v2041
      %v2073 = vpack.c.b16 %v2044, %v2043
      %v2074 = vpack.c.b16 %v2046, %v2045
      %v2075 = vpack.c.b16 %v2048, %v2047
      %v2076 = vpack.c.b16 %v2050, %v2049
      %v2077 = vpack.c.b16 %v2052, %v2051
      %v2078 = vpack.c.b16 %v2054, %v2053
      %v2079 = vpack.c.b16 %v2056, %v2055
      %v2080 = vpack.c.b16 %v2058, %v2057
      %v2081 = vpack.c.b16 %v2060, %v2059
      %v2082 = vpack.c.b16 %v2062, %v2061
      %v2083 = vpack.c.b16 %v2064, %v2063
      %v2084 = vpack.c.b16 %v2066, %v2065
      %v2085 = vpack.c.b16 %v2068, %v2067
      %v2086 = vpack.c.b16 %v2070, %v2069
      %2103 = vmatprep.subr.bf16.mxu0 0
      %2104 = vmatpush1.bf16.msra.mxu0 %v2078
      %2105 = vmatprep.subr.bf16.mxu0 0
      %2106 = vmatpush1.bf16.msra.mxu0 %v2077
      %2107 = vmatprep.subr.bf16.mxu0 0
      %2108 = vmatpush1.bf16.msra.mxu0 %v2076
      %2109 = vmatprep.subr.bf16.mxu0 0
      %2110 = vmatpush1.bf16.msra.mxu0 %v2075
      %2111 = vmatprep.subr.bf16.mxu0 0
      %2112 = vmatpush1.bf16.msra.mxu0 %v2074
      %2113 = vmatprep.subr.bf16.mxu0 0
      %2114 = vmatpush1.bf16.msra.mxu0 %v2073
      %2115 = vmatprep.subr.bf16.mxu0 0
      %2116 = vmatpush1.bf16.msra.mxu0 %v2072
      %2117 = vmatprep.subr.bf16.mxu0 0
      %2118 = vmatpush1.bf16.msra.mxu0 %v2071
      %2119 = vmatprep.subr.bf16.mxu0 0
      %2120 = vmatpush2.bf16.msra.mxu0 %v2086
      %2121 = vmatprep.subr.bf16.mxu0 0
      %2122 = vmatpush2.bf16.msra.mxu0 %v2085
      %2123 = vmatprep.subr.bf16.mxu0 0
      %2124 = vmatpush2.bf16.msra.mxu0 %v2084
      %2125 = vmatprep.subr.bf16.mxu0 0
      %2126 = vmatpush2.bf16.msra.mxu0 %v2083
      %2127 = vmatprep.subr.bf16.mxu0 0
      %2128 = vmatpush2.bf16.msra.mxu0 %v2082
      %2129 = vmatprep.subr.bf16.mxu0 0
      %2130 = vmatpush2.bf16.msra.mxu0 %v2081
      %2131 = vmatprep.subr.bf16.mxu0 0
      %2132 = vmatpush2.bf16.msra.mxu0 %v2080
      %2133 = vmatprep.subr.bf16.mxu0 0
      %2134 = vmatpush2.bf16.msra.mxu0 %v2079
      %2135 = vmatprep.mubr.bf16.mxu0 %v1974
      %2136 = vmatmul.mubr.bf16.gmra.mxu0 %v1973
      %v2137 = vpop.f32.mrf.mxu0
      %v2138 = vadd.f32 0.0, %v2137
      %v2139 = vpop.f32.mrf.mxu0
      %v2140 = vpop.f32.mrf.mxu0
      %v2141 = vadd.f32 0.0, %v2140
      %v2142 = vpop.f32.mrf.mxu0
      %2143 = vdwg.mxu0
      %v2144 = vadd.f32 %v1639, %v2138
      %v2145 = vadd.f32 %v1640, %v2141
      %v2146 = vld [vmem:[%s10] sm:$0x1]
      %v2148 = vlaneseq
      %v2149 = vshrl.u32 %v2148, 7
      %v2150 = vsub.s32 0, %v2149
      %v2151 = vrot.slane %v2146, %v2150
      %v2153 = vadd.f32 %v2144, %v2151
      %v2154 = vadd.f32 %v2145, %v2151
      %v2155 = vmul.f32 %v2153, %v2153
      %v2156 = vmul.f32 %v2154, %v2154
      %2159 = vrot.lane.b32.xlu0 %v2155, 64
      %v2160 = vpop.permute.xlu0 %2159
      %2161 = vrot.lane.b32.xlu0 %v2156, 64
      %v2162 = vpop.permute.xlu0 %2161
      %v2165 = vsel %vm960, %v2153, %v2160
      %v2166 = vsel %vm960, %v2154, %v2162
      %v2167 = vpack.c.bf16 %v2166, %v2165
      %2168 = vmatprep.subr.bf16.mxu0 0
      %2169 = vmatpush1.bf16.msra.mxu0 %v1003
      %2170 = vmatprep.subr.bf16.mxu0 0
      %2171 = vmatpush1.bf16.msra.mxu0 %v1002
      %2172 = vmatprep.subr.bf16.mxu0 0
      %2173 = vmatpush1.bf16.msra.mxu0 %v1001
      %2174 = vmatprep.subr.bf16.mxu0 0
      %2175 = vmatpush1.bf16.msra.mxu0 %v1000
      %2176 = vmatprep.subr.bf16.mxu0 0
      %2177 = vmatpush1.bf16.msra.mxu0 %v999
      %2178 = vmatprep.subr.bf16.mxu0 0
      %2179 = vmatpush1.bf16.msra.mxu0 %v998
      %2180 = vmatprep.subr.bf16.mxu0 0
      %2181 = vmatpush1.bf16.msra.mxu0 %v997
      %2182 = vmatprep.subr.bf16.mxu0 0
      %2183 = vmatpush1.bf16.msra.mxu0 %v996
      %2184 = vmatprep.subr.bf16.mxu0 0
      %2185 = vmatpush2.bf16.msra.mxu0 0
      %2186 = vmatprep.subr.bf16.mxu0 0
      %2187 = vmatpush2.bf16.msra.mxu0 0
      %2188 = vmatprep.subr.bf16.mxu0 0
      %2189 = vmatpush2.bf16.msra.mxu0 0
      %2190 = vmatprep.subr.bf16.mxu0 0
      %2191 = vmatpush2.bf16.msra.mxu0 0
      %2192 = vmatprep.subr.bf16.mxu0 0
      %2193 = vmatpush2.bf16.msra.mxu0 0
      %2194 = vmatprep.subr.bf16.mxu0 0
      %2195 = vmatpush2.bf16.msra.mxu0 0
      %2196 = vmatprep.subr.bf16.mxu0 0
      %2197 = vmatpush2.bf16.msra.mxu0 0
      %2198 = vmatprep.subr.bf16.mxu0 0
      %2199 = vmatpush2.bf16.msra.mxu0 0
      %2200 = vmatprep.mubr.bf16.mxu0 0
      %2201 = vmatmul.mubr.bf16.gmra.mxu0 %v2167
      %v2202 = vpop.f32.mrf.mxu0
      %v2203 = vadd.f32 0.0, %v2202
      %v2204 = vpop.f32.mrf.mxu0
      %v2205 = vpop.f32.mrf.mxu0
      %v2206 = vadd.f32 0.0, %v2205
      %v2207 = vpop.f32.mrf.mxu0
      %2208 = vdwg.mxu0
      %v2209 = vmul.f32 %v2203, %v2203
      %v2210 = vmul.f32 %v2206, %v2206
      %2213 = vrot.lane.b32.xlu0 %v2209, 64
      %v2214 = vpop.permute.xlu0 %2213
      %2215 = vrot.lane.b32.xlu0 %v2210, 64
      %v2216 = vpop.permute.xlu0 %2215
      %v2219 = vsub.f32 %v2203, %v2214
      %v2220 = vsub.f32 %v2206, %v2216
      %v2221 = vmax.f32 %v2219, 0.0
      %v2222 = vmax.f32 %v2220, 0.0
      %v2223 = vsub.f32 %v2153, %v2203
      %v2224 = vsub.f32 %v2154, %v2206
      %v2225 = vadd.f32 %v2221, 1e-05
      %v2226 = vadd.f32 %v2222, 1e-05
      %v2227 = vrsqrt.pop %v2225
      %v2228 = vrsqrt.pop %v2226
      %2231 = vrot.lane.b32.xlu0 %v2227, 64
      %v2232 = vpop.permute.xlu0 %2231
      %2233 = vrot.lane.b32.xlu0 %v2228, 64
      %v2234 = vpop.permute.xlu0 %2233
      %v2237 = vmul.f32 %v2223, %v2232
      %v2238 = vmul.f32 %v2224, %v2234
      %v2239 = vpack.c.bf16 %v2238, %v2237
      %s2240 = scalar_lea.vmem %s3, 96
      %v2241 = vld [vmem:[%s2240] sm:$0xff]
      %v2242 = vld [vmem:[%s2240 + $0x8] sm:$0xf]
      %v2243 = vld [vmem:[%s2240 + $0xc] sm:$0xff]
      %v2244 = vld [vmem:[%s2240 + $0x14] sm:$0xf]
      %v2245 = vld [vmem:[%s2240 + $0x18] sm:$0xff]
      %v2246 = vld [vmem:[%s2240 + $0x20] sm:$0xf]
      %v2247 = vld [vmem:[%s2240 + $0x24] sm:$0xff]
      %v2248 = vld [vmem:[%s2240 + $0x2c] sm:$0xf]
      %v2249 = vld [vmem:[%s2240 + $0x30] sm:$0xff]
      %v2250 = vld [vmem:[%s2240 + $0x38] sm:$0xf]
      %v2251 = vld [vmem:[%s2240 + $0x3c] sm:$0xff]
      %v2252 = vld [vmem:[%s2240 + $0x44] sm:$0xf]
      %v2253 = vld [vmem:[%s2240 + $0x48] sm:$0xff]
      %v2254 = vld [vmem:[%s2240 + $0x50] sm:$0xf]
      %v2255 = vld [vmem:[%s2240 + $0x54] sm:$0xff]
      %v2256 = vld [vmem:[%s2240 + $0x5c] sm:$0xf]
      %s2257 = scalar_lea.vmem %s4, 3
      %v2258 = vld [vmem:[%s2257] sm:$0x7]
      %v2260 = vlaneseq
      %v2261 = vshrl.u32 %v2260, 7
      %v2262 = vsub.s32 0, %v2261
      %v2263 = vrot.slane %v2258, %v2262
      %v2264 = vlaneseq
      %v2265 = vshrl.u32 %v2264, 7
      %v2266 = vsub.s32 1, %v2265
      %v2267 = vrot.slane %v2258, %v2266
      %v2268 = vlaneseq
      %v2269 = vshrl.u32 %v2268, 7
      %v2270 = vsub.s32 2, %v2269
      %v2271 = vrot.slane %v2258, %v2270
      %v2291 = vunpack.c.l.b16 %v2241
      %v2292 = vunpack.c.h.b16 %v2241
      %v2293 = vunpack.c.l.b16 %v2242
      %v2294 = vunpack.c.l.b16 %v2243
      %v2295 = vunpack.c.h.b16 %v2243
      %v2296 = vunpack.c.l.b16 %v2244
      %v2297 = vunpack.c.l.b16 %v2245
      %v2298 = vunpack.c.h.b16 %v2245
      %v2299 = vunpack.c.l.b16 %v2246
      %v2300 = vunpack.c.l.b16 %v2247
      %v2301 = vunpack.c.h.b16 %v2247
      %v2302 = vunpack.c.l.b16 %v2248
      %v2303 = vunpack.c.l.b16 %v2249
      %v2304 = vunpack.c.h.b16 %v2249
      %v2305 = vunpack.c.l.b16 %v2250
      %v2306 = vunpack.c.l.b16 %v2251
      %v2307 = vunpack.c.h.b16 %v2251
      %v2308 = vunpack.c.l.b16 %v2252
      %v2309 = vunpack.c.l.b16 %v2253
      %v2310 = vunpack.c.h.b16 %v2253
      %v2311 = vunpack.c.l.b16 %v2254
      %v2312 = vunpack.c.l.b16 %v2255
      %v2313 = vunpack.c.h.b16 %v2255
      %v2314 = vunpack.c.l.b16 %v2256
      %v2315 = vpack.c.b16 %v2294, %v2291
      %v2316 = vpack.c.b16 %v2295, %v2292
      %v2317 = vpack.c.b16 %v2296, %v2293
      %v2318 = vpack.c.b16 %v2300, %v2297
      %v2319 = vpack.c.b16 %v2301, %v2298
      %v2320 = vpack.c.b16 %v2302, %v2299
      %v2321 = vpack.c.b16 %v2306, %v2303
      %v2322 = vpack.c.b16 %v2307, %v2304
      %v2323 = vpack.c.b16 %v2308, %v2305
      %v2324 = vpack.c.b16 %v2312, %v2309
      %v2325 = vpack.c.b16 %v2313, %v2310
      %v2326 = vpack.c.b16 %v2314, %v2311
      %v2340 = vsel %vm960, %v2239, 0
      %2342 = vmatprep.subr.bf16.mxu0 0
      %2343 = vmatpush1.bf16.msra.mxu0 0
      %2344 = vmatprep.subr.bf16.mxu0 0
      %2345 = vmatpush1.bf16.msra.mxu0 0
      %2346 = vmatprep.subr.bf16.mxu0 0
      %2347 = vmatpush1.bf16.msra.mxu0 0
      %2348 = vmatprep.subr.bf16.mxu0 0
      %2349 = vmatpush1.bf16.msra.mxu0 0
      %2350 = vmatprep.subr.bf16.mxu0 %v2325
      %2351 = vmatpush1.bf16.msra.mxu0 %v2324
      %2352 = vmatprep.subr.bf16.mxu0 %v2322
      %2353 = vmatpush1.bf16.msra.mxu0 %v2321
      %2354 = vmatprep.subr.bf16.mxu0 %v2319
      %2355 = vmatpush1.bf16.msra.mxu0 %v2318
      %2356 = vmatprep.subr.bf16.mxu0 %v2316
      %2357 = vmatpush1.bf16.msra.mxu0 %v2315
      %2358 = vmatprep.subr.bf16.mxu0 0
      %2359 = vmatpush2.bf16.msra.mxu0 0
      %2360 = vmatprep.subr.bf16.mxu0 0
      %2361 = vmatpush2.bf16.msra.mxu0 0
      %2362 = vmatprep.subr.bf16.mxu0 0
      %2363 = vmatpush2.bf16.msra.mxu0 0
      %2364 = vmatprep.subr.bf16.mxu0 0
      %2365 = vmatpush2.bf16.msra.mxu0 0
      %2366 = vmatprep.subr.bf16.mxu0 0
      %2367 = vmatpush2.bf16.msra.mxu0 0
      %2368 = vmatprep.subr.bf16.mxu0 0
      %2369 = vmatpush2.bf16.msra.mxu0 0
      %2370 = vmatprep.subr.bf16.mxu0 0
      %2371 = vmatpush2.bf16.msra.mxu0 0
      %2372 = vmatprep.subr.bf16.mxu0 0
      %2373 = vmatpush2.bf16.msra.mxu0 0
      %2374 = vmatprep.mubr.bf16.mxu0 0
      %2375 = vmatmul.mubr.bf16.gmra.mxu0 %v2340
      %v2376 = vpop.f32.mrf.mxu0
      %v2377 = vadd.f32 %v2263, %v2376
      %v2378 = vpop.f32.mrf.mxu0
      %v2379 = vadd.f32 %v2267, %v2378
      %v2380 = vpop.f32.mrf.mxu0
      %v2381 = vadd.f32 %v2263, %v2380
      %v2382 = vpop.f32.mrf.mxu0
      %v2383 = vadd.f32 %v2267, %v2382
      %2384 = vdwg.mxu0
      %2385 = vmatprep.subr.bf16.mxu0 0
      %2386 = vmatpush1.bf16.msra.mxu0 0
      %2387 = vmatprep.subr.bf16.mxu0 0
      %2388 = vmatpush1.bf16.msra.mxu0 0
      %2389 = vmatprep.subr.bf16.mxu0 0
      %2390 = vmatpush1.bf16.msra.mxu0 0
      %2391 = vmatprep.subr.bf16.mxu0 0
      %2392 = vmatpush1.bf16.msra.mxu0 0
      %2393 = vmatprep.subr.bf16.mxu0 0
      %2394 = vmatpush1.bf16.msra.mxu0 %v2326
      %2395 = vmatprep.subr.bf16.mxu0 0
      %2396 = vmatpush1.bf16.msra.mxu0 %v2323
      %2397 = vmatprep.subr.bf16.mxu0 0
      %2398 = vmatpush1.bf16.msra.mxu0 %v2320
      %2399 = vmatprep.subr.bf16.mxu0 0
      %2400 = vmatpush1.bf16.msra.mxu0 %v2317
      %2401 = vmatprep.subr.bf16.mxu0 0
      %2402 = vmatpush2.bf16.msra.mxu0 0
      %2403 = vmatprep.subr.bf16.mxu0 0
      %2404 = vmatpush2.bf16.msra.mxu0 0
      %2405 = vmatprep.subr.bf16.mxu0 0
      %2406 = vmatpush2.bf16.msra.mxu0 0
      %2407 = vmatprep.subr.bf16.mxu0 0
      %2408 = vmatpush2.bf16.msra.mxu0 0
      %2409 = vmatprep.subr.bf16.mxu0 0
      %2410 = vmatpush2.bf16.msra.mxu0 0
      %2411 = vmatprep.subr.bf16.mxu0 0
      %2412 = vmatpush2.bf16.msra.mxu0 0
      %2413 = vmatprep.subr.bf16.mxu0 0
      %2414 = vmatpush2.bf16.msra.mxu0 0
      %2415 = vmatprep.subr.bf16.mxu0 0
      %2416 = vmatpush2.bf16.msra.mxu0 0
      %2417 = vmatprep.mubr.bf16.mxu0 0
      %2418 = vmatmul.mubr.bf16.gmra.mxu0 %v2340
      %v2419 = vpop.f32.mrf.mxu0
      %v2420 = vadd.f32 %v2271, %v2419
      %v2421 = vpop.f32.mrf.mxu0
      %v2422 = vpop.f32.mrf.mxu0
      %v2423 = vadd.f32 %v2271, %v2422
      %v2424 = vpop.f32.mrf.mxu0
      %2425 = vdwg.mxu0
      %v2426 = vmul.f32 %v2377, %v2379
      %v2427 = vmul.f32 %v2381, %v2383
      %2428 = vrot.lane.b32.xlu0 %v2426, 127
      %v2429 = vpop.permute.xlu0 %2428
      %2430 = vrot.lane.b32.xlu0 %v2427, 127
      %v2431 = vpop.permute.xlu0 %2430
      %2432 = vrot.lane.b32.xlu0 %v2426, 1
      %v2433 = vpop.permute.xlu0 %2432
      %2434 = vrot.lane.b32.xlu0 %v2427, 1
      %v2435 = vpop.permute.xlu0 %2434
      %v2436 = vsel %vm1279, %v2429, %v2433
      %v2437 = vsel %vm1279, %v2431, %v2435
      %v2438 = vadd.f32 %v2426, %v2436
      %v2439 = vadd.f32 %v2427, %v2437
      %2440 = vrot.lane.b32.xlu0 %v2438, 126
      %v2441 = vpop.permute.xlu0 %2440
      %2442 = vrot.lane.b32.xlu0 %v2439, 126
      %v2443 = vpop.permute.xlu0 %2442
      %2444 = vrot.lane.b32.xlu0 %v2438, 2
      %v2445 = vpop.permute.xlu0 %2444
      %2446 = vrot.lane.b32.xlu0 %v2439, 2
      %v2447 = vpop.permute.xlu0 %2446
      %v2448 = vsel %vm1293, %v2441, %v2445
      %v2449 = vsel %vm1293, %v2443, %v2447
      %v2450 = vadd.f32 %v2438, %v2448
      %v2451 = vadd.f32 %v2439, %v2449
      %2452 = vrot.lane.b32.xlu0 %v2450, 124
      %v2453 = vpop.permute.xlu0 %2452
      %2454 = vrot.lane.b32.xlu0 %v2451, 124
      %v2455 = vpop.permute.xlu0 %2454
      %2456 = vrot.lane.b32.xlu0 %v2450, 4
      %v2457 = vpop.permute.xlu0 %2456
      %2458 = vrot.lane.b32.xlu0 %v2451, 4
      %v2459 = vpop.permute.xlu0 %2458
      %v2460 = vsel %vm1307, %v2453, %v2457
      %v2461 = vsel %vm1307, %v2455, %v2459
      %v2462 = vadd.f32 %v2450, %v2460
      %v2463 = vadd.f32 %v2451, %v2461
      %2464 = vrot.lane.b32.xlu0 %v2379, 32
      %v2465 = vpop.permute.xlu0 %2464
      %2466 = vrot.lane.b32.xlu0 %v2383, 32
      %v2467 = vpop.permute.xlu0 %2466
      %2468 = vrot.lane.b32.xlu0 %v2420, 32
      %v2469 = vpop.permute.xlu0 %2468
      %2470 = vrot.lane.b32.xlu0 %v2423, 32
      %v2471 = vpop.permute.xlu0 %2470
      %v2472 = vmul.f32 %v2377, %v2465
      %v2473 = vmul.f32 %v2381, %v2467
      %2474 = vrot.lane.b32.xlu0 %v2472, 127
      %v2475 = vpop.permute.xlu0 %2474
      %2476 = vrot.lane.b32.xlu0 %v2473, 127
      %v2477 = vpop.permute.xlu0 %2476
      %2478 = vrot.lane.b32.xlu0 %v2472, 1
      %v2479 = vpop.permute.xlu0 %2478
      %2480 = vrot.lane.b32.xlu0 %v2473, 1
      %v2481 = vpop.permute.xlu0 %2480
      %v2482 = vsel %vm1279, %v2475, %v2479
      %v2483 = vsel %vm1279, %v2477, %v2481
      %v2484 = vadd.f32 %v2472, %v2482
      %v2485 = vadd.f32 %v2473, %v2483
      %2486 = vrot.lane.b32.xlu0 %v2484, 126
      %v2487 = vpop.permute.xlu0 %2486
      %2488 = vrot.lane.b32.xlu0 %v2485, 126
      %v2489 = vpop.permute.xlu0 %2488
      %2490 = vrot.lane.b32.xlu0 %v2484, 2
      %v2491 = vpop.permute.xlu0 %2490
      %2492 = vrot.lane.b32.xlu0 %v2485, 2
      %v2493 = vpop.permute.xlu0 %2492
      %v2494 = vsel %vm1293, %v2487, %v2491
      %v2495 = vsel %vm1293, %v2489, %v2493
      %v2496 = vadd.f32 %v2484, %v2494
      %v2497 = vadd.f32 %v2485, %v2495
      %2498 = vrot.lane.b32.xlu0 %v2496, 124
      %v2499 = vpop.permute.xlu0 %2498
      %2500 = vrot.lane.b32.xlu0 %v2497, 124
      %v2501 = vpop.permute.xlu0 %2500
      %2502 = vrot.lane.b32.xlu0 %v2496, 4
      %v2503 = vpop.permute.xlu0 %2502
      %2504 = vrot.lane.b32.xlu0 %v2497, 4
      %v2505 = vpop.permute.xlu0 %2504
      %v2506 = vsel %vm1307, %v2499, %v2503
      %v2507 = vsel %vm1307, %v2501, %v2505
      %v2508 = vadd.f32 %v2496, %v2506
      %v2509 = vadd.f32 %v2497, %v2507
      %v2510 = vmax.f32 %v2462, %v2508
      %v2511 = vmax.f32 %v2463, %v2509
      %v2512 = vsub.f32 %v2462, %v2510
      %v2513 = vsub.f32 %v2463, %v2511
      %v2514 = vmul.f32 %v2512, 1.442695
      %v2515 = vpow.pop %v2514
      %v2516 = vmul.f32 %v2513, 1.442695
      %v2517 = vpow.pop %v2516
      %v2518 = vsub.f32 %v2508, %v2510
      %v2519 = vsub.f32 %v2509, %v2511
      %v2520 = vmul.f32 %v2518, 1.442695
      %v2521 = vpow.pop %v2520
      %v2522 = vmul.f32 %v2519, 1.442695
      %v2523 = vpow.pop %v2522
      %v2524 = vadd.f32 %v2515, %v2521
      %v2525 = vadd.f32 %v2517, %v2523
      %v2526 = vmul.f32 %v2515, %v2420
      %v2527 = vmul.f32 %v2517, %v2423
      %v2528 = vmul.f32 %v2521, %v2469
      %v2529 = vmul.f32 %v2523, %v2471
      %v2530 = vadd.f32 %v2526, %v2528
      %v2531 = vadd.f32 %v2527, %v2529
      %2532 = vrot.lane.b32.xlu0 %v2379, 64
      %v2533 = vpop.permute.xlu0 %2532
      %2534 = vrot.lane.b32.xlu0 %v2383, 64
      %v2535 = vpop.permute.xlu0 %2534
      %2536 = vrot.lane.b32.xlu0 %v2420, 64
      %v2537 = vpop.permute.xlu0 %2536
      %2538 = vrot.lane.b32.xlu0 %v2423, 64
      %v2539 = vpop.permute.xlu0 %2538
      %v2540 = vmul.f32 %v2377, %v2533
      %v2541 = vmul.f32 %v2381, %v2535
      %2542 = vrot.lane.b32.xlu0 %v2540, 127
      %v2543 = vpop.permute.xlu0 %2542
      %2544 = vrot.lane.b32.xlu0 %v2541, 127
      %v2545 = vpop.permute.xlu0 %2544
      %2546 = vrot.lane.b32.xlu0 %v2540, 1
      %v2547 = vpop.permute.xlu0 %2546
      %2548 = vrot.lane.b32.xlu0 %v2541, 1
      %v2549 = vpop.permute.xlu0 %2548
      %v2550 = vsel %vm1279, %v2543, %v2547
      %v2551 = vsel %vm1279, %v2545, %v2549
      %v2552 = vadd.f32 %v2540, %v2550
      %v2553 = vadd.f32 %v2541, %v2551
      %2554 = vrot.lane.b32.xlu0 %v2552, 126
      %v2555 = vpop.permute.xlu0 %2554
      %2556 = vrot.lane.b32.xlu0 %v2553, 126
      %v2557 = vpop.permute.xlu0 %2556
      %2558 = vrot.lane.b32.xlu0 %v2552, 2
      %v2559 = vpop.permute.xlu0 %2558
      %2560 = vrot.lane.b32.xlu0 %v2553, 2
      %v2561 = vpop.permute.xlu0 %2560
      %v2562 = vsel %vm1293, %v2555, %v2559
      %v2563 = vsel %vm1293, %v2557, %v2561
      %v2564 = vadd.f32 %v2552, %v2562
      %v2565 = vadd.f32 %v2553, %v2563
      %2566 = vrot.lane.b32.xlu0 %v2564, 124
      %v2567 = vpop.permute.xlu0 %2566
      %2568 = vrot.lane.b32.xlu0 %v2565, 124
      %v2569 = vpop.permute.xlu0 %2568
      %2570 = vrot.lane.b32.xlu0 %v2564, 4
      %v2571 = vpop.permute.xlu0 %2570
      %2572 = vrot.lane.b32.xlu0 %v2565, 4
      %v2573 = vpop.permute.xlu0 %2572
      %v2574 = vsel %vm1307, %v2567, %v2571
      %v2575 = vsel %vm1307, %v2569, %v2573
      %v2576 = vadd.f32 %v2564, %v2574
      %v2577 = vadd.f32 %v2565, %v2575
      %v2578 = vmax.f32 %v2510, %v2576
      %v2579 = vmax.f32 %v2511, %v2577
      %v2580 = vsub.f32 %v2510, %v2578
      %v2581 = vsub.f32 %v2511, %v2579
      %v2582 = vmul.f32 %v2580, 1.442695
      %v2583 = vpow.pop %v2582
      %v2584 = vmul.f32 %v2581, 1.442695
      %v2585 = vpow.pop %v2584
      %v2586 = vsub.f32 %v2576, %v2578
      %v2587 = vsub.f32 %v2577, %v2579
      %v2588 = vmul.f32 %v2586, 1.442695
      %v2589 = vpow.pop %v2588
      %v2590 = vmul.f32 %v2587, 1.442695
      %v2591 = vpow.pop %v2590
      %v2592 = vmul.f32 %v2583, %v2524
      %v2593 = vmul.f32 %v2585, %v2525
      %v2594 = vadd.f32 %v2592, %v2589
      %v2595 = vadd.f32 %v2593, %v2591
      %v2596 = vmul.f32 %v2583, %v2530
      %v2597 = vmul.f32 %v2585, %v2531
      %v2598 = vmul.f32 %v2589, %v2537
      %v2599 = vmul.f32 %v2591, %v2539
      %v2600 = vadd.f32 %v2596, %v2598
      %v2601 = vadd.f32 %v2597, %v2599
      %2602 = vrot.lane.b32.xlu0 %v2379, 96
      %v2603 = vpop.permute.xlu0 %2602
      %2604 = vrot.lane.b32.xlu0 %v2383, 96
      %v2605 = vpop.permute.xlu0 %2604
      %2606 = vrot.lane.b32.xlu0 %v2420, 96
      %v2607 = vpop.permute.xlu0 %2606
      %2608 = vrot.lane.b32.xlu0 %v2423, 96
      %v2609 = vpop.permute.xlu0 %2608
      %v2610 = vmul.f32 %v2377, %v2603
      %v2611 = vmul.f32 %v2381, %v2605
      %2612 = vrot.lane.b32.xlu0 %v2610, 127
      %v2613 = vpop.permute.xlu0 %2612
      %2614 = vrot.lane.b32.xlu0 %v2611, 127
      %v2615 = vpop.permute.xlu0 %2614
      %2616 = vrot.lane.b32.xlu0 %v2610, 1
      %v2617 = vpop.permute.xlu0 %2616
      %2618 = vrot.lane.b32.xlu0 %v2611, 1
      %v2619 = vpop.permute.xlu0 %2618
      %v2620 = vsel %vm1279, %v2613, %v2617
      %v2621 = vsel %vm1279, %v2615, %v2619
      %v2622 = vadd.f32 %v2610, %v2620
      %v2623 = vadd.f32 %v2611, %v2621
      %2624 = vrot.lane.b32.xlu0 %v2622, 126
      %v2625 = vpop.permute.xlu0 %2624
      %2626 = vrot.lane.b32.xlu0 %v2623, 126
      %v2627 = vpop.permute.xlu0 %2626
      %2628 = vrot.lane.b32.xlu0 %v2622, 2
      %v2629 = vpop.permute.xlu0 %2628
      %2630 = vrot.lane.b32.xlu0 %v2623, 2
      %v2631 = vpop.permute.xlu0 %2630
      %v2632 = vsel %vm1293, %v2625, %v2629
      %v2633 = vsel %vm1293, %v2627, %v2631
      %v2634 = vadd.f32 %v2622, %v2632
      %v2635 = vadd.f32 %v2623, %v2633
      %2636 = vrot.lane.b32.xlu0 %v2634, 124
      %v2637 = vpop.permute.xlu0 %2636
      %2638 = vrot.lane.b32.xlu0 %v2635, 124
      %v2639 = vpop.permute.xlu0 %2638
      %2640 = vrot.lane.b32.xlu0 %v2634, 4
      %v2641 = vpop.permute.xlu0 %2640
      %2642 = vrot.lane.b32.xlu0 %v2635, 4
      %v2643 = vpop.permute.xlu0 %2642
      %v2644 = vsel %vm1307, %v2637, %v2641
      %v2645 = vsel %vm1307, %v2639, %v2643
      %v2646 = vadd.f32 %v2634, %v2644
      %v2647 = vadd.f32 %v2635, %v2645
      %v2648 = vmax.f32 %v2578, %v2646
      %v2649 = vmax.f32 %v2579, %v2647
      %v2650 = vsub.f32 %v2578, %v2648
      %v2651 = vsub.f32 %v2579, %v2649
      %v2652 = vmul.f32 %v2650, 1.442695
      %v2653 = vpow.pop %v2652
      %v2654 = vmul.f32 %v2651, 1.442695
      %v2655 = vpow.pop %v2654
      %v2656 = vsub.f32 %v2646, %v2648
      %v2657 = vsub.f32 %v2647, %v2649
      %v2658 = vmul.f32 %v2656, 1.442695
      %v2659 = vpow.pop %v2658
      %v2660 = vmul.f32 %v2657, 1.442695
      %v2661 = vpow.pop %v2660
      %v2662 = vmul.f32 %v2653, %v2594
      %v2663 = vmul.f32 %v2655, %v2595
      %v2664 = vadd.f32 %v2662, %v2659
      %v2665 = vadd.f32 %v2663, %v2661
      %v2666 = vmul.f32 %v2653, %v2600
      %v2667 = vmul.f32 %v2655, %v2601
      %v2668 = vmul.f32 %v2659, %v2607
      %v2669 = vmul.f32 %v2661, %v2609
      %v2670 = vadd.f32 %v2666, %v2668
      %v2671 = vadd.f32 %v2667, %v2669
      %v2672 = vrcp.pop %v2664
      %v2673 = vrcp.pop %v2665
      %v2674 = vmul.f32 %v2670, %v2672
      %v2675 = vmul.f32 %v2671, %v2673
      %v2676 = vpack.c.bf16 %v2675, %v2674
      %s2677 = scalar_lea.vmem %s5, 64
      %v2678 = vld [vmem:[%s2677] sm:$0xf]
      %v2679 = vld [vmem:[%s2677 + $0x4] sm:$0xf]
      %v2680 = vld [vmem:[%s2677 + $0x8] sm:$0xf]
      %v2681 = vld [vmem:[%s2677 + $0xc] sm:$0xf]
      %v2682 = vld [vmem:[%s2677 + $0x10] sm:$0xf]
      %v2683 = vld [vmem:[%s2677 + $0x14] sm:$0xf]
      %v2684 = vld [vmem:[%s2677 + $0x18] sm:$0xf]
      %v2685 = vld [vmem:[%s2677 + $0x1c] sm:$0xf]
      %v2686 = vld [vmem:[%s2677 + $0x20] sm:$0xf]
      %v2687 = vld [vmem:[%s2677 + $0x24] sm:$0xf]
      %v2688 = vld [vmem:[%s2677 + $0x28] sm:$0xf]
      %v2689 = vld [vmem:[%s2677 + $0x2c] sm:$0xf]
      %v2690 = vld [vmem:[%s2677 + $0x30] sm:$0xf]
      %v2691 = vld [vmem:[%s2677 + $0x34] sm:$0xf]
      %v2692 = vld [vmem:[%s2677 + $0x38] sm:$0xf]
      %v2693 = vld [vmem:[%s2677 + $0x3c] sm:$0xf]
      %v2710 = vunpack.c.l.b16 %v2678
      %v2711 = vunpack.c.l.b16 %v2679
      %v2712 = vunpack.c.l.b16 %v2680
      %v2713 = vunpack.c.l.b16 %v2681
      %v2714 = vunpack.c.l.b16 %v2682
      %v2715 = vunpack.c.l.b16 %v2683
      %v2716 = vunpack.c.l.b16 %v2684
      %v2717 = vunpack.c.l.b16 %v2685
      %v2718 = vunpack.c.l.b16 %v2686
      %v2719 = vunpack.c.l.b16 %v2687
      %v2720 = vunpack.c.l.b16 %v2688
      %v2721 = vunpack.c.l.b16 %v2689
      %v2722 = vunpack.c.l.b16 %v2690
      %v2723 = vunpack.c.l.b16 %v2691
      %v2724 = vunpack.c.l.b16 %v2692
      %v2725 = vunpack.c.l.b16 %v2693
      %v2726 = vpack.c.b16 %v2711, %v2710
      %v2727 = vpack.c.b16 %v2713, %v2712
      %v2728 = vpack.c.b16 %v2715, %v2714
      %v2729 = vpack.c.b16 %v2717, %v2716
      %v2730 = vpack.c.b16 %v2719, %v2718
      %v2731 = vpack.c.b16 %v2721, %v2720
      %v2732 = vpack.c.b16 %v2723, %v2722
      %v2733 = vpack.c.b16 %v2725, %v2724
      %2742 = vmatprep.subr.bf16.mxu0 0
      %2743 = vmatpush1.bf16.msra.mxu0 %v2733
      %2744 = vmatprep.subr.bf16.mxu0 0
      %2745 = vmatpush1.bf16.msra.mxu0 %v2732
      %2746 = vmatprep.subr.bf16.mxu0 0
      %2747 = vmatpush1.bf16.msra.mxu0 %v2731
      %2748 = vmatprep.subr.bf16.mxu0 0
      %2749 = vmatpush1.bf16.msra.mxu0 %v2730
      %2750 = vmatprep.subr.bf16.mxu0 0
      %2751 = vmatpush1.bf16.msra.mxu0 %v2729
      %2752 = vmatprep.subr.bf16.mxu0 0
      %2753 = vmatpush1.bf16.msra.mxu0 %v2728
      %2754 = vmatprep.subr.bf16.mxu0 0
      %2755 = vmatpush1.bf16.msra.mxu0 %v2727
      %2756 = vmatprep.subr.bf16.mxu0 0
      %2757 = vmatpush1.bf16.msra.mxu0 %v2726
      %2758 = vmatprep.subr.bf16.mxu0 0
      %2759 = vmatpush2.bf16.msra.mxu0 0
      %2760 = vmatprep.subr.bf16.mxu0 0
      %2761 = vmatpush2.bf16.msra.mxu0 0
      %2762 = vmatprep.subr.bf16.mxu0 0
      %2763 = vmatpush2.bf16.msra.mxu0 0
      %2764 = vmatprep.subr.bf16.mxu0 0
      %2765 = vmatpush2.bf16.msra.mxu0 0
      %2766 = vmatprep.subr.bf16.mxu0 0
      %2767 = vmatpush2.bf16.msra.mxu0 0
      %2768 = vmatprep.subr.bf16.mxu0 0
      %2769 = vmatpush2.bf16.msra.mxu0 0
      %2770 = vmatprep.subr.bf16.mxu0 0
      %2771 = vmatpush2.bf16.msra.mxu0 0
      %2772 = vmatprep.subr.bf16.mxu0 0
      %2773 = vmatpush2.bf16.msra.mxu0 0
      %2774 = vmatprep.mubr.bf16.mxu0 0
      %2775 = vmatmul.mubr.bf16.gmra.mxu0 %v2676
      %v2776 = vpop.f32.mrf.mxu0
      %v2777 = vadd.f32 0.0, %v2776
      %v2778 = vpop.f32.mrf.mxu0
      %v2779 = vpop.f32.mrf.mxu0
      %v2780 = vadd.f32 0.0, %v2779
      %v2781 = vpop.f32.mrf.mxu0
      %2782 = vdwg.mxu0
      %v2783 = vadd.f32 %v2153, %v2777
      %v2784 = vadd.f32 %v2154, %v2780
      %s2785 = scalar_lea.vmem %s6, 1
      %v2786 = vld [vmem:[%s2785] sm:$0x1]
      %v2788 = vlaneseq
      %v2789 = vshrl.u32 %v2788, 7
      %v2790 = vsub.s32 0, %v2789
      %v2791 = vrot.slane %v2786, %v2790
      %v2793 = vadd.f32 %v2783, %v2791
      %v2794 = vadd.f32 %v2784, %v2791
      %v2795 = vmul.f32 %v2793, %v2793
      %v2796 = vmul.f32 %v2794, %v2794
      %2799 = vrot.lane.b32.xlu0 %v2795, 64
      %v2800 = vpop.permute.xlu0 %2799
      %2801 = vrot.lane.b32.xlu0 %v2796, 64
      %v2802 = vpop.permute.xlu0 %2801
      %v2805 = vsel %vm960, %v2793, %v2800
      %v2806 = vsel %vm960, %v2794, %v2802
      %v2807 = vpack.c.bf16 %v2806, %v2805
      %2808 = vmatprep.subr.bf16.mxu0 0
      %2809 = vmatpush1.bf16.msra.mxu0 %v1003
      %2810 = vmatprep.subr.bf16.mxu0 0
      %2811 = vmatpush1.bf16.msra.mxu0 %v1002
      %2812 = vmatprep.subr.bf16.mxu0 0
      %2813 = vmatpush1.bf16.msra.mxu0 %v1001
      %2814 = vmatprep.subr.bf16.mxu0 0
      %2815 = vmatpush1.bf16.msra.mxu0 %v1000
      %2816 = vmatprep.subr.bf16.mxu0 0
      %2817 = vmatpush1.bf16.msra.mxu0 %v999
      %2818 = vmatprep.subr.bf16.mxu0 0
      %2819 = vmatpush1.bf16.msra.mxu0 %v998
      %2820 = vmatprep.subr.bf16.mxu0 0
      %2821 = vmatpush1.bf16.msra.mxu0 %v997
      %2822 = vmatprep.subr.bf16.mxu0 0
      %2823 = vmatpush1.bf16.msra.mxu0 %v996
      %2824 = vmatprep.subr.bf16.mxu0 0
      %2825 = vmatpush2.bf16.msra.mxu0 0
      %2826 = vmatprep.subr.bf16.mxu0 0
      %2827 = vmatpush2.bf16.msra.mxu0 0
      %2828 = vmatprep.subr.bf16.mxu0 0
      %2829 = vmatpush2.bf16.msra.mxu0 0
      %2830 = vmatprep.subr.bf16.mxu0 0
      %2831 = vmatpush2.bf16.msra.mxu0 0
      %2832 = vmatprep.subr.bf16.mxu0 0
      %2833 = vmatpush2.bf16.msra.mxu0 0
      %2834 = vmatprep.subr.bf16.mxu0 0
      %2835 = vmatpush2.bf16.msra.mxu0 0
      %2836 = vmatprep.subr.bf16.mxu0 0
      %2837 = vmatpush2.bf16.msra.mxu0 0
      %2838 = vmatprep.subr.bf16.mxu0 0
      %2839 = vmatpush2.bf16.msra.mxu0 0
      %2840 = vmatprep.mubr.bf16.mxu0 0
      %2841 = vmatmul.mubr.bf16.gmra.mxu0 %v2807
      %v2842 = vpop.f32.mrf.mxu0
      %v2843 = vadd.f32 0.0, %v2842
      %v2844 = vpop.f32.mrf.mxu0
      %v2845 = vpop.f32.mrf.mxu0
      %v2846 = vadd.f32 0.0, %v2845
      %v2847 = vpop.f32.mrf.mxu0
      %2848 = vdwg.mxu0
      %v2849 = vmul.f32 %v2843, %v2843
      %v2850 = vmul.f32 %v2846, %v2846
      %2853 = vrot.lane.b32.xlu0 %v2849, 64
      %v2854 = vpop.permute.xlu0 %2853
      %2855 = vrot.lane.b32.xlu0 %v2850, 64
      %v2856 = vpop.permute.xlu0 %2855
      %v2859 = vsub.f32 %v2843, %v2854
      %v2860 = vsub.f32 %v2846, %v2856
      %v2861 = vmax.f32 %v2859, 0.0
      %v2862 = vmax.f32 %v2860, 0.0
      %v2863 = vsub.f32 %v2793, %v2843
      %v2864 = vsub.f32 %v2794, %v2846
      %v2865 = vadd.f32 %v2861, 1e-05
      %v2866 = vadd.f32 %v2862, 1e-05
      %v2867 = vrsqrt.pop %v2865
      %v2868 = vrsqrt.pop %v2866
      %2871 = vrot.lane.b32.xlu0 %v2867, 64
      %v2872 = vpop.permute.xlu0 %2871
      %2873 = vrot.lane.b32.xlu0 %v2868, 64
      %v2874 = vpop.permute.xlu0 %2873
      %v2877 = vmul.f32 %v2863, %v2872
      %v2878 = vmul.f32 %v2864, %v2874
      %v2879 = vpack.c.bf16 %v2878, %v2877
      %s2880 = scalar_lea.vmem %s7, 128
      %v2881 = vld [vmem:[%s2880] sm:$0xff]
      %v2882 = vld [vmem:[%s2880 + $0x8] sm:$0xff]
      %v2883 = vld [vmem:[%s2880 + $0x10] sm:$0xff]
      %v2884 = vld [vmem:[%s2880 + $0x18] sm:$0xff]
      %v2885 = vld [vmem:[%s2880 + $0x20] sm:$0xff]
      %v2886 = vld [vmem:[%s2880 + $0x28] sm:$0xff]
      %v2887 = vld [vmem:[%s2880 + $0x30] sm:$0xff]
      %v2888 = vld [vmem:[%s2880 + $0x38] sm:$0xff]
      %v2889 = vld [vmem:[%s2880 + $0x40] sm:$0xff]
      %v2890 = vld [vmem:[%s2880 + $0x48] sm:$0xff]
      %v2891 = vld [vmem:[%s2880 + $0x50] sm:$0xff]
      %v2892 = vld [vmem:[%s2880 + $0x58] sm:$0xff]
      %v2893 = vld [vmem:[%s2880 + $0x60] sm:$0xff]
      %v2894 = vld [vmem:[%s2880 + $0x68] sm:$0xff]
      %v2895 = vld [vmem:[%s2880 + $0x70] sm:$0xff]
      %v2896 = vld [vmem:[%s2880 + $0x78] sm:$0xff]
      %s2897 = scalar_lea.vmem %s8, 4
      %v2898 = vld [vmem:[%s2897] sm:$0xf]
      %v2900 = vlaneseq
      %v2901 = vshrl.u32 %v2900, 7
      %v2902 = vsub.s32 0, %v2901
      %v2903 = vrot.slane %v2898, %v2902
      %v2904 = vlaneseq
      %v2905 = vshrl.u32 %v2904, 7
      %v2906 = vsub.s32 1, %v2905
      %v2907 = vrot.slane %v2898, %v2906
      %v2908 = vlaneseq
      %v2909 = vshrl.u32 %v2908, 7
      %v2910 = vsub.s32 2, %v2909
      %v2911 = vrot.slane %v2898, %v2910
      %v2912 = vlaneseq
      %v2913 = vshrl.u32 %v2912, 7
      %v2914 = vsub.s32 3, %v2913
      %v2915 = vrot.slane %v2898, %v2914
      %v2936 = vunpack.c.l.b16 %v2881
      %v2937 = vunpack.c.h.b16 %v2881
      %v2938 = vunpack.c.l.b16 %v2882
      %v2939 = vunpack.c.h.b16 %v2882
      %v2940 = vunpack.c.l.b16 %v2883
      %v2941 = vunpack.c.h.b16 %v2883
      %v2942 = vunpack.c.l.b16 %v2884
      %v2943 = vunpack.c.h.b16 %v2884
      %v2944 = vunpack.c.l.b16 %v2885
      %v2945 = vunpack.c.h.b16 %v2885
      %v2946 = vunpack.c.l.b16 %v2886
      %v2947 = vunpack.c.h.b16 %v2886
      %v2948 = vunpack.c.l.b16 %v2887
      %v2949 = vunpack.c.h.b16 %v2887
      %v2950 = vunpack.c.l.b16 %v2888
      %v2951 = vunpack.c.h.b16 %v2888
      %v2952 = vunpack.c.l.b16 %v2889
      %v2953 = vunpack.c.h.b16 %v2889
      %v2954 = vunpack.c.l.b16 %v2890
      %v2955 = vunpack.c.h.b16 %v2890
      %v2956 = vunpack.c.l.b16 %v2891
      %v2957 = vunpack.c.h.b16 %v2891
      %v2958 = vunpack.c.l.b16 %v2892
      %v2959 = vunpack.c.h.b16 %v2892
      %v2960 = vunpack.c.l.b16 %v2893
      %v2961 = vunpack.c.h.b16 %v2893
      %v2962 = vunpack.c.l.b16 %v2894
      %v2963 = vunpack.c.h.b16 %v2894
      %v2964 = vunpack.c.l.b16 %v2895
      %v2965 = vunpack.c.h.b16 %v2895
      %v2966 = vunpack.c.l.b16 %v2896
      %v2967 = vunpack.c.h.b16 %v2896
      %v2968 = vpack.c.b16 %v2940, %v2936
      %v2969 = vpack.c.b16 %v2941, %v2937
      %v2970 = vpack.c.b16 %v2942, %v2938
      %v2971 = vpack.c.b16 %v2943, %v2939
      %v2972 = vpack.c.b16 %v2948, %v2944
      %v2973 = vpack.c.b16 %v2949, %v2945
      %v2974 = vpack.c.b16 %v2950, %v2946
      %v2975 = vpack.c.b16 %v2951, %v2947
      %v2976 = vpack.c.b16 %v2956, %v2952
      %v2977 = vpack.c.b16 %v2957, %v2953
      %v2978 = vpack.c.b16 %v2958, %v2954
      %v2979 = vpack.c.b16 %v2959, %v2955
      %v2980 = vpack.c.b16 %v2964, %v2960
      %v2981 = vpack.c.b16 %v2965, %v2961
      %v2982 = vpack.c.b16 %v2966, %v2962
      %v2983 = vpack.c.b16 %v2967, %v2963
      %v3001 = vsel %vm960, %v2879, 0
      %3003 = vmatprep.subr.bf16.mxu0 0
      %3004 = vmatpush1.bf16.msra.mxu0 0
      %3005 = vmatprep.subr.bf16.mxu0 0
      %3006 = vmatpush1.bf16.msra.mxu0 0
      %3007 = vmatprep.subr.bf16.mxu0 0
      %3008 = vmatpush1.bf16.msra.mxu0 0
      %3009 = vmatprep.subr.bf16.mxu0 0
      %3010 = vmatpush1.bf16.msra.mxu0 0
      %3011 = vmatprep.subr.bf16.mxu0 %v2981
      %3012 = vmatpush1.bf16.msra.mxu0 %v2980
      %3013 = vmatprep.subr.bf16.mxu0 %v2977
      %3014 = vmatpush1.bf16.msra.mxu0 %v2976
      %3015 = vmatprep.subr.bf16.mxu0 %v2973
      %3016 = vmatpush1.bf16.msra.mxu0 %v2972
      %3017 = vmatprep.subr.bf16.mxu0 %v2969
      %3018 = vmatpush1.bf16.msra.mxu0 %v2968
      %3019 = vmatprep.subr.bf16.mxu0 0
      %3020 = vmatpush2.bf16.msra.mxu0 0
      %3021 = vmatprep.subr.bf16.mxu0 0
      %3022 = vmatpush2.bf16.msra.mxu0 0
      %3023 = vmatprep.subr.bf16.mxu0 0
      %3024 = vmatpush2.bf16.msra.mxu0 0
      %3025 = vmatprep.subr.bf16.mxu0 0
      %3026 = vmatpush2.bf16.msra.mxu0 0
      %3027 = vmatprep.subr.bf16.mxu0 0
      %3028 = vmatpush2.bf16.msra.mxu0 0
      %3029 = vmatprep.subr.bf16.mxu0 0
      %3030 = vmatpush2.bf16.msra.mxu0 0
      %3031 = vmatprep.subr.bf16.mxu0 0
      %3032 = vmatpush2.bf16.msra.mxu0 0
      %3033 = vmatprep.subr.bf16.mxu0 0
      %3034 = vmatpush2.bf16.msra.mxu0 0
      %3035 = vmatprep.mubr.bf16.mxu0 0
      %3036 = vmatmul.mubr.bf16.gmra.mxu0 %v3001
      %v3037 = vpop.f32.mrf.mxu0
      %v3038 = vadd.f32 %v2903, %v3037
      %v3039 = vpop.f32.mrf.mxu0
      %v3040 = vadd.f32 %v2907, %v3039
      %v3041 = vpop.f32.mrf.mxu0
      %v3042 = vadd.f32 %v2903, %v3041
      %v3043 = vpop.f32.mrf.mxu0
      %v3044 = vadd.f32 %v2907, %v3043
      %3045 = vdwg.mxu0
      %3046 = vmatprep.subr.bf16.mxu0 0
      %3047 = vmatpush1.bf16.msra.mxu0 0
      %3048 = vmatprep.subr.bf16.mxu0 0
      %3049 = vmatpush1.bf16.msra.mxu0 0
      %3050 = vmatprep.subr.bf16.mxu0 0
      %3051 = vmatpush1.bf16.msra.mxu0 0
      %3052 = vmatprep.subr.bf16.mxu0 0
      %3053 = vmatpush1.bf16.msra.mxu0 0
      %3054 = vmatprep.subr.bf16.mxu0 %v2983
      %3055 = vmatpush1.bf16.msra.mxu0 %v2982
      %3056 = vmatprep.subr.bf16.mxu0 %v2979
      %3057 = vmatpush1.bf16.msra.mxu0 %v2978
      %3058 = vmatprep.subr.bf16.mxu0 %v2975
      %3059 = vmatpush1.bf16.msra.mxu0 %v2974
      %3060 = vmatprep.subr.bf16.mxu0 %v2971
      %3061 = vmatpush1.bf16.msra.mxu0 %v2970
      %3062 = vmatprep.subr.bf16.mxu0 0
      %3063 = vmatpush2.bf16.msra.mxu0 0
      %3064 = vmatprep.subr.bf16.mxu0 0
      %3065 = vmatpush2.bf16.msra.mxu0 0
      %3066 = vmatprep.subr.bf16.mxu0 0
      %3067 = vmatpush2.bf16.msra.mxu0 0
      %3068 = vmatprep.subr.bf16.mxu0 0
      %3069 = vmatpush2.bf16.msra.mxu0 0
      %3070 = vmatprep.subr.bf16.mxu0 0
      %3071 = vmatpush2.bf16.msra.mxu0 0
      %3072 = vmatprep.subr.bf16.mxu0 0
      %3073 = vmatpush2.bf16.msra.mxu0 0
      %3074 = vmatprep.subr.bf16.mxu0 0
      %3075 = vmatpush2.bf16.msra.mxu0 0
      %3076 = vmatprep.subr.bf16.mxu0 0
      %3077 = vmatpush2.bf16.msra.mxu0 0
      %3078 = vmatprep.mubr.bf16.mxu0 0
      %3079 = vmatmul.mubr.bf16.gmra.mxu0 %v3001
      %v3080 = vpop.f32.mrf.mxu0
      %v3081 = vadd.f32 %v2911, %v3080
      %v3082 = vpop.f32.mrf.mxu0
      %v3083 = vadd.f32 %v2915, %v3082
      %v3084 = vpop.f32.mrf.mxu0
      %v3085 = vadd.f32 %v2911, %v3084
      %v3086 = vpop.f32.mrf.mxu0
      %v3087 = vadd.f32 %v2915, %v3086
      %3088 = vdwg.mxu0
      %v3089 = vmul.f32 %v3081, 0.5
      %v3090 = vmul.f32 %v3083, 0.5
      %v3091 = vmul.f32 %v3085, 0.5
      %v3092 = vmul.f32 %v3087, 0.5
      %v3093 = vmul.f32 %v3081, 0.044715
      %v3094 = vmul.f32 %v3083, 0.044715
      %v3095 = vmul.f32 %v3085, 0.044715
      %v3096 = vmul.f32 %v3087, 0.044715
      %v3097 = vmul.f32 %v3093, %v3081
      %v3098 = vmul.f32 %v3094, %v3083
      %v3099 = vmul.f32 %v3095, %v3085
      %v3100 = vmul.f32 %v3096, %v3087
      %v3101 = vmul.f32 %v3097, %v3081
      %v3102 = vmul.f32 %v3098, %v3083
      %v3103 = vmul.f32 %v3099, %v3085
      %v3104 = vmul.f32 %v3100, %v3087
      %v3105 = vadd.f32 %v3081, %v3101
      %v3106 = vadd.f32 %v3083, %v3102
      %v3107 = vadd.f32 %v3085, %v3103
      %v3108 = vadd.f32 %v3087, %v3104
      %v3109 = vmul.f32 %v3105, 0.7978846
      %v3110 = vmul.f32 %v3106, 0.7978846
      %v3111 = vmul.f32 %v3107, 0.7978846
      %v3112 = vmul.f32 %v3108, 0.7978846
      %v3113 = vtanh.pop %v3109
      %v3114 = vtanh.pop %v3110
      %v3115 = vtanh.pop %v3111
      %v3116 = vtanh.pop %v3112
      %v3117 = vadd.f32 %v3113, 1.0
      %v3118 = vadd.f32 %v3114, 1.0
      %v3119 = vadd.f32 %v3115, 1.0
      %v3120 = vadd.f32 %v3116, 1.0
      %v3121 = vmul.f32 %v3089, %v3117
      %v3122 = vmul.f32 %v3090, %v3118
      %v3123 = vmul.f32 %v3091, %v3119
      %v3124 = vmul.f32 %v3092, %v3120
      %v3125 = vmul.f32 %v3038, %v3121
      %v3126 = vmul.f32 %v3040, %v3122
      %v3127 = vmul.f32 %v3042, %v3123
      %v3128 = vmul.f32 %v3044, %v3124
      %v3129 = vpack.c.bf16 %v3127, %v3125
      %v3130 = vpack.c.bf16 %v3128, %v3126
      %s3131 = scalar_lea.vmem %s9, 128
      %v3132 = vld [vmem:[%s3131] sm:$0xf]
      %v3133 = vld [vmem:[%s3131 + $0x4] sm:$0xf]
      %v3134 = vld [vmem:[%s3131 + $0x8] sm:$0xf]
      %v3135 = vld [vmem:[%s3131 + $0xc] sm:$0xf]
      %v3136 = vld [vmem:[%s3131 + $0x10] sm:$0xf]
      %v3137 = vld [vmem:[%s3131 + $0x14] sm:$0xf]
      %v3138 = vld [vmem:[%s3131 + $0x18] sm:$0xf]
      %v3139 = vld [vmem:[%s3131 + $0x1c] sm:$0xf]
      %v3140 = vld [vmem:[%s3131 + $0x20] sm:$0xf]
      %v3141 = vld [vmem:[%s3131 + $0x24] sm:$0xf]
      %v3142 = vld [vmem:[%s3131 + $0x28] sm:$0xf]
      %v3143 = vld [vmem:[%s3131 + $0x2c] sm:$0xf]
      %v3144 = vld [vmem:[%s3131 + $0x30] sm:$0xf]
      %v3145 = vld [vmem:[%s3131 + $0x34] sm:$0xf]
      %v3146 = vld [vmem:[%s3131 + $0x38] sm:$0xf]
      %v3147 = vld [vmem:[%s3131 + $0x3c] sm:$0xf]
      %v3148 = vld [vmem:[%s3131 + $0x40] sm:$0xf]
      %v3149 = vld [vmem:[%s3131 + $0x44] sm:$0xf]
      %v3150 = vld [vmem:[%s3131 + $0x48] sm:$0xf]
      %v3151 = vld [vmem:[%s3131 + $0x4c] sm:$0xf]
      %v3152 = vld [vmem:[%s3131 + $0x50] sm:$0xf]
      %v3153 = vld [vmem:[%s3131 + $0x54] sm:$0xf]
      %v3154 = vld [vmem:[%s3131 + $0x58] sm:$0xf]
      %v3155 = vld [vmem:[%s3131 + $0x5c] sm:$0xf]
      %v3156 = vld [vmem:[%s3131 + $0x60] sm:$0xf]
      %v3157 = vld [vmem:[%s3131 + $0x64] sm:$0xf]
      %v3158 = vld [vmem:[%s3131 + $0x68] sm:$0xf]
      %v3159 = vld [vmem:[%s3131 + $0x6c] sm:$0xf]
      %v3160 = vld [vmem:[%s3131 + $0x70] sm:$0xf]
      %v3161 = vld [vmem:[%s3131 + $0x74] sm:$0xf]
      %v3162 = vld [vmem:[%s3131 + $0x78] sm:$0xf]
      %v3163 = vld [vmem:[%s3131 + $0x7c] sm:$0xf]
      %v3196 = vunpack.c.l.b16 %v3132
      %v3197 = vunpack.c.l.b16 %v3133
      %v3198 = vunpack.c.l.b16 %v3134
      %v3199 = vunpack.c.l.b16 %v3135
      %v3200 = vunpack.c.l.b16 %v3136
      %v3201 = vunpack.c.l.b16 %v3137
      %v3202 = vunpack.c.l.b16 %v3138
      %v3203 = vunpack.c.l.b16 %v3139
      %v3204 = vunpack.c.l.b16 %v3140
      %v3205 = vunpack.c.l.b16 %v3141
      %v3206 = vunpack.c.l.b16 %v3142
      %v3207 = vunpack.c.l.b16 %v3143
      %v3208 = vunpack.c.l.b16 %v3144
      %v3209 = vunpack.c.l.b16 %v3145
      %v3210 = vunpack.c.l.b16 %v3146
      %v3211 = vunpack.c.l.b16 %v3147
      %v3212 = vunpack.c.l.b16 %v3148
      %v3213 = vunpack.c.l.b16 %v3149
      %v3214 = vunpack.c.l.b16 %v3150
      %v3215 = vunpack.c.l.b16 %v3151
      %v3216 = vunpack.c.l.b16 %v3152
      %v3217 = vunpack.c.l.b16 %v3153
      %v3218 = vunpack.c.l.b16 %v3154
      %v3219 = vunpack.c.l.b16 %v3155
      %v3220 = vunpack.c.l.b16 %v3156
      %v3221 = vunpack.c.l.b16 %v3157
      %v3222 = vunpack.c.l.b16 %v3158
      %v3223 = vunpack.c.l.b16 %v3159
      %v3224 = vunpack.c.l.b16 %v3160
      %v3225 = vunpack.c.l.b16 %v3161
      %v3226 = vunpack.c.l.b16 %v3162
      %v3227 = vunpack.c.l.b16 %v3163
      %v3228 = vpack.c.b16 %v3197, %v3196
      %v3229 = vpack.c.b16 %v3199, %v3198
      %v3230 = vpack.c.b16 %v3201, %v3200
      %v3231 = vpack.c.b16 %v3203, %v3202
      %v3232 = vpack.c.b16 %v3205, %v3204
      %v3233 = vpack.c.b16 %v3207, %v3206
      %v3234 = vpack.c.b16 %v3209, %v3208
      %v3235 = vpack.c.b16 %v3211, %v3210
      %v3236 = vpack.c.b16 %v3213, %v3212
      %v3237 = vpack.c.b16 %v3215, %v3214
      %v3238 = vpack.c.b16 %v3217, %v3216
      %v3239 = vpack.c.b16 %v3219, %v3218
      %v3240 = vpack.c.b16 %v3221, %v3220
      %v3241 = vpack.c.b16 %v3223, %v3222
      %v3242 = vpack.c.b16 %v3225, %v3224
      %v3243 = vpack.c.b16 %v3227, %v3226
      %3260 = vmatprep.subr.bf16.mxu0 0
      %3261 = vmatpush1.bf16.msra.mxu0 %v3235
      %3262 = vmatprep.subr.bf16.mxu0 0
      %3263 = vmatpush1.bf16.msra.mxu0 %v3234
      %3264 = vmatprep.subr.bf16.mxu0 0
      %3265 = vmatpush1.bf16.msra.mxu0 %v3233
      %3266 = vmatprep.subr.bf16.mxu0 0
      %3267 = vmatpush1.bf16.msra.mxu0 %v3232
      %3268 = vmatprep.subr.bf16.mxu0 0
      %3269 = vmatpush1.bf16.msra.mxu0 %v3231
      %3270 = vmatprep.subr.bf16.mxu0 0
      %3271 = vmatpush1.bf16.msra.mxu0 %v3230
      %3272 = vmatprep.subr.bf16.mxu0 0
      %3273 = vmatpush1.bf16.msra.mxu0 %v3229
      %3274 = vmatprep.subr.bf16.mxu0 0
      %3275 = vmatpush1.bf16.msra.mxu0 %v3228
      %3276 = vmatprep.subr.bf16.mxu0 0
      %3277 = vmatpush2.bf16.msra.mxu0 %v3243
      %3278 = vmatprep.subr.bf16.mxu0 0
      %3279 = vmatpush2.bf16.msra.mxu0 %v3242
      %3280 = vmatprep.subr.bf16.mxu0 0
      %3281 = vmatpush2.bf16.msra.mxu0 %v3241
      %3282 = vmatprep.subr.bf16.mxu0 0
      %3283 = vmatpush2.bf16.msra.mxu0 %v3240
      %3284 = vmatprep.subr.bf16.mxu0 0
      %3285 = vmatpush2.bf16.msra.mxu0 %v3239
      %3286 = vmatprep.subr.bf16.mxu0 0
      %3287 = vmatpush2.bf16.msra.mxu0 %v3238
      %3288 = vmatprep.subr.bf16.mxu0 0
      %3289 = vmatpush2.bf16.msra.mxu0 %v3237
      %3290 = vmatprep.subr.bf16.mxu0 0
      %3291 = vmatpush2.bf16.msra.mxu0 %v3236
      %3292 = vmatprep.mubr.bf16.mxu0 %v3130
      %3293 = vmatmul.mubr.bf16.gmra.mxu0 %v3129
      %v3294 = vpop.f32.mrf.mxu0
      %v3295 = vadd.f32 0.0, %v3294
      %v3296 = vpop.f32.mrf.mxu0
      %v3297 = vpop.f32.mrf.mxu0
      %v3298 = vadd.f32 0.0, %v3297
      %v3299 = vpop.f32.mrf.mxu0
      %3300 = vdwg.mxu0
      %v3301 = vadd.f32 %v2793, %v3295
      %v3302 = vadd.f32 %v2794, %v3298
      %s3303 = scalar_lea.vmem %s10, 1
      %v3304 = vld [vmem:[%s3303] sm:$0x1]
      %v3306 = vlaneseq
      %v3307 = vshrl.u32 %v3306, 7
      %v3308 = vsub.s32 0, %v3307
      %v3309 = vrot.slane %v3304, %v3308
      %v3311 = vadd.f32 %v3301, %v3309
      %v3312 = vadd.f32 %v3302, %v3309
      %v3313 = vld [vmem:[%s22] sm:$0xf]
      %v3314 = vld [vmem:[%s757] sm:$0xff]
      %v3315 = vld [vmem:[%s757 + $0x8] sm:$0xff]
      %v3316 = vlaneseq
      %v3317 = vshrl.u32 %v3316, 7
      %v3318 = vsub.s32 0, %v3317
      %v3319 = vrot.slane %v3313, %v3318
      %v3320 = vmul.f32 %v3314, %v3319
      %v3321 = vmul.f32 %v3315, %v3319
      %v3322 = vlaneseq
      %v3323 = vshrl.u32 %v3322, 7
      %v3324 = vsub.s32 1, %v3323
      %v3325 = vrot.slane %v3313, %v3324
      %v3326 = vadd.f32 %v3320, %v3325
      %v3327 = vadd.f32 %v3321, %v3325
      %v3328 = vpack.c.bf16 %v3312, %v3311
      %v3329 = vpack.c.bf16 %v3327, %v3326
      %v3330 = vld [vmem:[%s12] sm:$0xf]
      %v3331 = vld [vmem:[%s12 + $0x4] sm:$0xf]
      %v3332 = vld [vmem:[%s12 + $0x8] sm:$0xf]
      %v3333 = vld [vmem:[%s12 + $0xc] sm:$0xf]
      %v3334 = vld [vmem:[%s12 + $0x10] sm:$0xf]
      %v3335 = vld [vmem:[%s12 + $0x14] sm:$0xf]
      %v3336 = vld [vmem:[%s12 + $0x18] sm:$0xf]
      %v3337 = vld [vmem:[%s12 + $0x1c] sm:$0xf]
      %v3338 = vld [vmem:[%s13] sm:$0x7]
      %vm3339 = vcmask 48128
      %v3341 = vsel %vm3339, %v3329, 0
      %vm3343 = vcmask 1042432
      %v3345 = vsel %vm3343, %v3338, 0
      %3347 = vmatprep.subr.bf16.mxu0 0
      %3348 = vmatpush1.bf16.msra.mxu0 0
      %3349 = vmatprep.subr.bf16.mxu0 0
      %3350 = vmatpush1.bf16.msra.mxu0 0
      %3351 = vmatprep.subr.bf16.mxu0 0
      %3352 = vmatpush1.bf16.msra.mxu0 0
      %3353 = vmatprep.subr.bf16.mxu0 0
      %3354 = vmatpush1.bf16.msra.mxu0 0
      %3355 = vmatprep.subr.bf16.mxu0 0
      %3356 = vmatpush1.bf16.msra.mxu0 0
      %3357 = vmatprep.subr.bf16.mxu0 0
      %3358 = vmatpush1.bf16.msra.mxu0 0
      %3359 = vmatprep.subr.bf16.mxu0 0
      %3360 = vmatpush1.bf16.msra.mxu0 0
      %3361 = vmatprep.subr.bf16.mxu0 0
      %3362 = vmatpush1.bf16.msra.mxu0 %v3345
      %3363 = vmatprep.subr.bf16.mxu0 0
      %3364 = vmatpush2.bf16.msra.mxu0 0
      %3365 = vmatprep.subr.bf16.mxu0 0
      %3366 = vmatpush2.bf16.msra.mxu0 0
      %3367 = vmatprep.subr.bf16.mxu0 0
      %3368 = vmatpush2.bf16.msra.mxu0 0
      %3369 = vmatprep.subr.bf16.mxu0 0
      %3370 = vmatpush2.bf16.msra.mxu0 0
      %3371 = vmatprep.subr.bf16.mxu0 0
      %3372 = vmatpush2.bf16.msra.mxu0 0
      %3373 = vmatprep.subr.bf16.mxu0 0
      %3374 = vmatpush2.bf16.msra.mxu0 0
      %3375 = vmatprep.subr.bf16.mxu0 0
      %3376 = vmatpush2.bf16.msra.mxu0 0
      %3377 = vmatprep.subr.bf16.mxu0 0
      %3378 = vmatpush2.bf16.msra.mxu0 0
      %3379 = vmatprep.mubr.bf16.mxu0 0
      %3380 = vmatmul.mubr.bf16.gmra.mxu0 %v3341
      %v3381 = vpop.f32.mrf.mxu0
      %v3382 = vadd.f32 0.0, %v3381
      %v3383 = vpop.f32.mrf.mxu0
      %v3384 = vpop.f32.mrf.mxu0
      %v3385 = vadd.f32 0.0, %v3384
      %v3386 = vpop.f32.mrf.mxu0
      %3387 = vdwg.mxu0
      %v3396 = vunpack.c.l.b16 %v3330
      %v3397 = vunpack.c.l.b16 %v3331
      %v3398 = vunpack.c.l.b16 %v3332
      %v3399 = vunpack.c.l.b16 %v3333
      %v3400 = vunpack.c.l.b16 %v3334
      %v3401 = vunpack.c.l.b16 %v3335
      %v3402 = vunpack.c.l.b16 %v3336
      %v3403 = vunpack.c.l.b16 %v3337
      %v3404 = vpack.c.b16 %v3397, %v3396
      %v3405 = vpack.c.b16 %v3399, %v3398
      %v3406 = vpack.c.b16 %v3401, %v3400
      %v3407 = vpack.c.b16 %v3403, %v3402
      %v3413 = vsel %vm960, %v3328, 0
      %3415 = vmatprep.subr.bf16.mxu0 0
      %3416 = vmatpush1.bf16.msra.mxu0 0
      %3417 = vmatprep.subr.bf16.mxu0 0
      %3418 = vmatpush1.bf16.msra.mxu0 0
      %3419 = vmatprep.subr.bf16.mxu0 0
      %3420 = vmatpush1.bf16.msra.mxu0 0
      %3421 = vmatprep.subr.bf16.mxu0 0
      %3422 = vmatpush1.bf16.msra.mxu0 0
      %3423 = vmatprep.subr.bf16.mxu0 0
      %3424 = vmatpush1.bf16.msra.mxu0 %v3407
      %3425 = vmatprep.subr.bf16.mxu0 0
      %3426 = vmatpush1.bf16.msra.mxu0 %v3406
      %3427 = vmatprep.subr.bf16.mxu0 0
      %3428 = vmatpush1.bf16.msra.mxu0 %v3405
      %3429 = vmatprep.subr.bf16.mxu0 0
      %3430 = vmatpush1.bf16.msra.mxu0 %v3404
      %3431 = vmatprep.subr.bf16.mxu0 0
      %3432 = vmatpush2.bf16.msra.mxu0 0
      %3433 = vmatprep.subr.bf16.mxu0 0
      %3434 = vmatpush2.bf16.msra.mxu0 0
      %3435 = vmatprep.subr.bf16.mxu0 0
      %3436 = vmatpush2.bf16.msra.mxu0 0
      %3437 = vmatprep.subr.bf16.mxu0 0
      %3438 = vmatpush2.bf16.msra.mxu0 0
      %3439 = vmatprep.subr.bf16.mxu0 0
      %3440 = vmatpush2.bf16.msra.mxu0 0
      %3441 = vmatprep.subr.bf16.mxu0 0
      %3442 = vmatpush2.bf16.msra.mxu0 0
      %3443 = vmatprep.subr.bf16.mxu0 0
      %3444 = vmatpush2.bf16.msra.mxu0 0
      %3445 = vmatprep.subr.bf16.mxu0 0
      %3446 = vmatpush2.bf16.msra.mxu0 0
      %3447 = vmatprep.mubr.bf16.mxu0 0
      %3448 = vmatmul.mubr.bf16.gmra.mxu0 %v3413
      %v3449 = vpop.f32.mrf.mxu0
      %v3450 = vadd.f32 %v3382, %v3449
      %v3451 = vpop.f32.mrf.mxu0
      %v3452 = vpop.f32.mrf.mxu0
      %v3453 = vadd.f32 %v3385, %v3452
      %v3454 = vpop.f32.mrf.mxu0
      %3455 = vdwg.mxu0
      %v3456 = vld [vmem:[%s14] sm:$0x1]
      %v3458 = vlaneseq
      %v3459 = vshrl.u32 %v3458, 7
      %v3460 = vsub.s32 0, %v3459
      %v3461 = vrot.slane %v3456, %v3460
      %v3463 = vadd.f32 %v3450, %v3461
      %v3464 = vadd.f32 %v3453, %v3461
      %v3465 = vmax.f32 %v3463, 0.0
      %v3466 = vmax.f32 %v3464, 0.0
      %v3467 = vld [vmem:[%s15] sm:$0x7]
      %v3469 = vsel %vm3343, %v3467, 0
      %3471 = vmatprep.subr.bf16.mxu0 0
      %3472 = vmatpush1.bf16.msra.mxu0 0
      %3473 = vmatprep.subr.bf16.mxu0 0
      %3474 = vmatpush1.bf16.msra.mxu0 0
      %3475 = vmatprep.subr.bf16.mxu0 0
      %3476 = vmatpush1.bf16.msra.mxu0 0
      %3477 = vmatprep.subr.bf16.mxu0 0
      %3478 = vmatpush1.bf16.msra.mxu0 0
      %3479 = vmatprep.subr.bf16.mxu0 0
      %3480 = vmatpush1.bf16.msra.mxu0 0
      %3481 = vmatprep.subr.bf16.mxu0 0
      %3482 = vmatpush1.bf16.msra.mxu0 0
      %3483 = vmatprep.subr.bf16.mxu0 0
      %3484 = vmatpush1.bf16.msra.mxu0 0
      %3485 = vmatprep.subr.bf16.mxu0 0
      %3486 = vmatpush1.bf16.msra.mxu0 %v3469
      %3487 = vmatprep.subr.bf16.mxu0 0
      %3488 = vmatpush2.bf16.msra.mxu0 0
      %3489 = vmatprep.subr.bf16.mxu0 0
      %3490 = vmatpush2.bf16.msra.mxu0 0
      %3491 = vmatprep.subr.bf16.mxu0 0
      %3492 = vmatpush2.bf16.msra.mxu0 0
      %3493 = vmatprep.subr.bf16.mxu0 0
      %3494 = vmatpush2.bf16.msra.mxu0 0
      %3495 = vmatprep.subr.bf16.mxu0 0
      %3496 = vmatpush2.bf16.msra.mxu0 0
      %3497 = vmatprep.subr.bf16.mxu0 0
      %3498 = vmatpush2.bf16.msra.mxu0 0
      %3499 = vmatprep.subr.bf16.mxu0 0
      %3500 = vmatpush2.bf16.msra.mxu0 0
      %3501 = vmatprep.subr.bf16.mxu0 0
      %3502 = vmatpush2.bf16.msra.mxu0 0
      %3503 = vmatprep.mubr.bf16.mxu0 0
      %3504 = vmatmul.mubr.bf16.gmra.mxu0 %v3341
      %v3505 = vpop.f32.mrf.mxu0
      %v3506 = vadd.f32 0.0, %v3505
      %v3507 = vpop.f32.mrf.mxu0
      %v3508 = vpop.f32.mrf.mxu0
      %v3509 = vadd.f32 0.0, %v3508
      %v3510 = vpop.f32.mrf.mxu0
      %3511 = vdwg.mxu0
      %v3512 = vmul.f32 %v3465, %v3506
      %v3513 = vmul.f32 %v3466, %v3509
      %v3514 = vmul.f32 %v3311, %v3311
      %v3515 = vmul.f32 %v3312, %v3312
      %v3516 = vsel %vm960, %v3514, 0.0
      %3517 = vadd.xlane.f32.xlu0 %v3516
      %v3518 = vpop.xlane.xlu0 %3517
      %v3519 = vsel %vm960, %v3515, 0.0
      %3520 = vadd.xlane.f32.xlu0 %v3519
      %v3521 = vpop.xlane.xlu0 %3520
      %v3522 = vrsqrt.pop %v3518
      %v3523 = vmul.f32 %v3518, %v3522
      %vm3524 = vcmp.eq.f32.partialorder %v3518, inf
      %v3525 = vsel %vm3524, %v3518, %v3523
      %vm3526 = vcmp.eq.f32.partialorder %v3518, 0.0
      %v3527 = vand.u32 %v3518, 2147483648
      %v3528 = vsel %vm3526, %v3527, %v3525
      %v3529 = vrsqrt.pop %v3521
      %v3530 = vmul.f32 %v3521, %v3529
      %vm3531 = vcmp.eq.f32.partialorder %v3521, inf
      %v3532 = vsel %vm3531, %v3521, %v3530
      %vm3533 = vcmp.eq.f32.partialorder %v3521, 0.0
      %v3534 = vand.u32 %v3521, 2147483648
      %v3535 = vsel %vm3533, %v3534, %v3532
      %v3536 = vmul.f32 %v3512, %v3512
      %v3537 = vmul.f32 %v3513, %v3513
      %v3538 = vsel %vm960, %v3536, 0.0
      %3539 = vadd.xlane.f32.xlu0 %v3538
      %v3540 = vpop.xlane.xlu0 %3539
      %v3541 = vsel %vm960, %v3537, 0.0
      %3542 = vadd.xlane.f32.xlu0 %v3541
      %v3543 = vpop.xlane.xlu0 %3542
      %v3544 = vrsqrt.pop %v3540
      %v3545 = vmul.f32 %v3540, %v3544
      %vm3546 = vcmp.eq.f32.partialorder %v3540, inf
      %v3547 = vsel %vm3546, %v3540, %v3545
      %vm3548 = vcmp.eq.f32.partialorder %v3540, 0.0
      %v3549 = vand.u32 %v3540, 2147483648
      %v3550 = vsel %vm3548, %v3549, %v3547
      %v3551 = vrsqrt.pop %v3543
      %v3552 = vmul.f32 %v3543, %v3551
      %vm3553 = vcmp.eq.f32.partialorder %v3543, inf
      %v3554 = vsel %vm3553, %v3543, %v3552
      %vm3555 = vcmp.eq.f32.partialorder %v3543, 0.0
      %v3556 = vand.u32 %v3543, 2147483648
      %v3557 = vsel %vm3555, %v3556, %v3554
      %v3558 = vadd.f32 %v3550, 1e-12
      %v3559 = vadd.f32 %v3557, 1e-12
      %v3560 = vrcp.pop %v3558
      %v3561 = vmul.f32 %v3528, %v3560
      %v3562 = vrcp.pop %v3559
      %v3563 = vmul.f32 %v3535, %v3562
      %v3564 = vmul.f32 %v3561, 0.2
      %v3565 = vmul.f32 %v3563, 0.2
      %v3566 = vmax.f32 %v3564, 0.0
      %v3567 = vmax.f32 %v3565, 0.0
      %v3568 = vmin.f32 %v3566, 1.0
      %v3569 = vmin.f32 %v3567, 1.0
      %v3570 = vmul.f32 %v3568, %v3512
      %v3571 = vmul.f32 %v3569, %v3513
      %v3572 = vadd.f32 %v3311, %v3570
      %v3573 = vadd.f32 %v3312, %v3571
      %v3574 = vld [vmem:[%s16] sm:$0xf]
      %v3575 = vld [vmem:[%s16 + $0x4] sm:$0xf]
      %v3576 = vld [vmem:[%s16 + $0x8] sm:$0xf]
      %v3577 = vld [vmem:[%s16 + $0xc] sm:$0xf]
      %v3578 = vld [vmem:[%s16 + $0x10] sm:$0xf]
      %v3579 = vld [vmem:[%s16 + $0x14] sm:$0xf]
      %v3580 = vld [vmem:[%s16 + $0x18] sm:$0xf]
      %v3581 = vld [vmem:[%s16 + $0x1c] sm:$0xf]
      %v3582 = vlaneseq
      %v3583 = vshrl.u32 %v3582, 7
      %v3584 = vsub.s32 2, %v3583
      %v3585 = vrot.slane %v3313, %v3584
      %v3594 = vunpack.c.l.b16 %v3574
      %v3595 = vunpack.c.l.b16 %v3575
      %v3596 = vunpack.c.l.b16 %v3576
      %v3597 = vunpack.c.l.b16 %v3577
      %v3598 = vunpack.c.l.b16 %v3578
      %v3599 = vunpack.c.l.b16 %v3579
      %v3600 = vunpack.c.l.b16 %v3580
      %v3601 = vunpack.c.l.b16 %v3581
      %v3602 = vpack.c.b16 %v3595, %v3594
      %v3603 = vpack.c.b16 %v3597, %v3596
      %v3604 = vpack.c.b16 %v3599, %v3598
      %v3605 = vpack.c.b16 %v3601, %v3600
      %3610 = vmatprep.subr.bf16.mxu0 0
      %3611 = vmatpush1.bf16.msra.mxu0 0
      %3612 = vmatprep.subr.bf16.mxu0 0
      %3613 = vmatpush1.bf16.msra.mxu0 0
      %3614 = vmatprep.subr.bf16.mxu0 0
      %3615 = vmatpush1.bf16.msra.mxu0 0
      %3616 = vmatprep.subr.bf16.mxu0 0
      %3617 = vmatpush1.bf16.msra.mxu0 0
      %3618 = vmatprep.subr.bf16.mxu0 0
      %3619 = vmatpush1.bf16.msra.mxu0 %v3605
      %3620 = vmatprep.subr.bf16.mxu0 0
      %3621 = vmatpush1.bf16.msra.mxu0 %v3604
      %3622 = vmatprep.subr.bf16.mxu0 0
      %3623 = vmatpush1.bf16.msra.mxu0 %v3603
      %3624 = vmatprep.subr.bf16.mxu0 0
      %3625 = vmatpush1.bf16.msra.mxu0 %v3602
      %3626 = vmatprep.subr.bf16.mxu0 0
      %3627 = vmatpush2.bf16.msra.mxu0 0
      %3628 = vmatprep.subr.bf16.mxu0 0
      %3629 = vmatpush2.bf16.msra.mxu0 0
      %3630 = vmatprep.subr.bf16.mxu0 0
      %3631 = vmatpush2.bf16.msra.mxu0 0
      %3632 = vmatprep.subr.bf16.mxu0 0
      %3633 = vmatpush2.bf16.msra.mxu0 0
      %3634 = vmatprep.subr.bf16.mxu0 0
      %3635 = vmatpush2.bf16.msra.mxu0 0
      %3636 = vmatprep.subr.bf16.mxu0 0
      %3637 = vmatpush2.bf16.msra.mxu0 0
      %3638 = vmatprep.subr.bf16.mxu0 0
      %3639 = vmatpush2.bf16.msra.mxu0 0
      %3640 = vmatprep.subr.bf16.mxu0 0
      %3641 = vmatpush2.bf16.msra.mxu0 0
      %3642 = vmatprep.mubr.bf16.mxu0 0
      %3643 = vmatmul.mubr.bf16.gmra.mxu0 %v3413
      %v3644 = vpop.f32.mrf.mxu0
      %v3645 = vadd.f32 %v3585, %v3644
      %v3646 = vpop.f32.mrf.mxu0
      %v3647 = vpop.f32.mrf.mxu0
      %v3648 = vadd.f32 %v3585, %v3647
      %v3649 = vpop.f32.mrf.mxu0
      %3650 = vdwg.mxu0
      %v3651 = vpack.c.bf16 %v3648, %v3645
      %v3652 = vld [vmem:[%s17] sm:$0x7]
      %v3653 = vld [vmem:[%s18] sm:$0x7]
      %v3655 = vsel %vm3339, %v3651, 0
      %v3658 = vsel %vm3343, %v3653, 0
      %3660 = vmatprep.subr.bf16.mxu0 0
      %3661 = vmatpush1.bf16.msra.mxu0 0
      %3662 = vmatprep.subr.bf16.mxu0 0
      %3663 = vmatpush1.bf16.msra.mxu0 0
      %3664 = vmatprep.subr.bf16.mxu0 0
      %3665 = vmatpush1.bf16.msra.mxu0 0
      %3666 = vmatprep.subr.bf16.mxu0 0
      %3667 = vmatpush1.bf16.msra.mxu0 0
      %3668 = vmatprep.subr.bf16.mxu0 0
      %3669 = vmatpush1.bf16.msra.mxu0 0
      %3670 = vmatprep.subr.bf16.mxu0 0
      %3671 = vmatpush1.bf16.msra.mxu0 0
      %3672 = vmatprep.subr.bf16.mxu0 0
      %3673 = vmatpush1.bf16.msra.mxu0 0
      %3674 = vmatprep.subr.bf16.mxu0 0
      %3675 = vmatpush1.bf16.msra.mxu0 %v3658
      %3676 = vmatprep.subr.bf16.mxu0 0
      %3677 = vmatpush2.bf16.msra.mxu0 0
      %3678 = vmatprep.subr.bf16.mxu0 0
      %3679 = vmatpush2.bf16.msra.mxu0 0
      %3680 = vmatprep.subr.bf16.mxu0 0
      %3681 = vmatpush2.bf16.msra.mxu0 0
      %3682 = vmatprep.subr.bf16.mxu0 0
      %3683 = vmatpush2.bf16.msra.mxu0 0
      %3684 = vmatprep.subr.bf16.mxu0 0
      %3685 = vmatpush2.bf16.msra.mxu0 0
      %3686 = vmatprep.subr.bf16.mxu0 0
      %3687 = vmatpush2.bf16.msra.mxu0 0
      %3688 = vmatprep.subr.bf16.mxu0 0
      %3689 = vmatpush2.bf16.msra.mxu0 0
      %3690 = vmatprep.subr.bf16.mxu0 0
      %3691 = vmatpush2.bf16.msra.mxu0 0
      %3692 = vmatprep.mubr.bf16.mxu0 0
      %3693 = vmatmul.mubr.bf16.gmra.mxu0 %v3655
      %v3694 = vpop.f32.mrf.mxu0
      %v3695 = vadd.f32 0.0, %v3694
      %v3696 = vpop.f32.mrf.mxu0
      %v3697 = vpop.f32.mrf.mxu0
      %v3698 = vadd.f32 0.0, %v3697
      %v3699 = vpop.f32.mrf.mxu0
      %3700 = vdwg.mxu0
      %v3702 = vsel %vm3343, %v3652, 0
      %3704 = vmatprep.subr.bf16.mxu0 0
      %3705 = vmatpush1.bf16.msra.mxu0 0
      %3706 = vmatprep.subr.bf16.mxu0 0
      %3707 = vmatpush1.bf16.msra.mxu0 0
      %3708 = vmatprep.subr.bf16.mxu0 0
      %3709 = vmatpush1.bf16.msra.mxu0 0
      %3710 = vmatprep.subr.bf16.mxu0 0
      %3711 = vmatpush1.bf16.msra.mxu0 0
      %3712 = vmatprep.subr.bf16.mxu0 0
      %3713 = vmatpush1.bf16.msra.mxu0 0
      %3714 = vmatprep.subr.bf16.mxu0 0
      %3715 = vmatpush1.bf16.msra.mxu0 0
      %3716 = vmatprep.subr.bf16.mxu0 0
      %3717 = vmatpush1.bf16.msra.mxu0 0
      %3718 = vmatprep.subr.bf16.mxu0 0
      %3719 = vmatpush1.bf16.msra.mxu0 %v3702
      %3720 = vmatprep.subr.bf16.mxu0 0
      %3721 = vmatpush2.bf16.msra.mxu0 0
      %3722 = vmatprep.subr.bf16.mxu0 0
      %3723 = vmatpush2.bf16.msra.mxu0 0
      %3724 = vmatprep.subr.bf16.mxu0 0
      %3725 = vmatpush2.bf16.msra.mxu0 0
      %3726 = vmatprep.subr.bf16.mxu0 0
      %3727 = vmatpush2.bf16.msra.mxu0 0
      %3728 = vmatprep.subr.bf16.mxu0 0
      %3729 = vmatpush2.bf16.msra.mxu0 0
      %3730 = vmatprep.subr.bf16.mxu0 0
      %3731 = vmatpush2.bf16.msra.mxu0 0
      %3732 = vmatprep.subr.bf16.mxu0 0
      %3733 = vmatpush2.bf16.msra.mxu0 0
      %3734 = vmatprep.subr.bf16.mxu0 0
      %3735 = vmatpush2.bf16.msra.mxu0 0
      %3736 = vmatprep.mubr.bf16.mxu0 0
      %3737 = vmatmul.mubr.bf16.gmra.mxu0 %v3341
      %v3738 = vpop.f32.mrf.mxu0
      %v3739 = vadd.f32 %v3695, %v3738
      %v3740 = vpop.f32.mrf.mxu0
      %v3741 = vpop.f32.mrf.mxu0
      %v3742 = vadd.f32 %v3698, %v3741
      %v3743 = vpop.f32.mrf.mxu0
      %3744 = vdwg.mxu0
      %v3745 = vlaneseq
      %v3746 = vshrl.u32 %v3745, 7
      %v3747 = vsub.s32 3, %v3746
      %v3748 = vrot.slane %v3313, %v3747
      %v3749 = vadd.f32 %v3739, %v3748
      %v3750 = vadd.f32 %v3742, %v3748
      %v3751 = vmax.f32 %v3749, 0.0
      %v3752 = vmax.f32 %v3750, 0.0
      %v3753 = vld [vmem:[%s19] sm:$0x7]
      %v3755 = vsel %vm3343, %v3753, 0
      %3757 = vmatprep.subr.bf16.mxu0 0
      %3758 = vmatpush1.bf16.msra.mxu0 0
      %3759 = vmatprep.subr.bf16.mxu0 0
      %3760 = vmatpush1.bf16.msra.mxu0 0
      %3761 = vmatprep.subr.bf16.mxu0 0
      %3762 = vmatpush1.bf16.msra.mxu0 0
      %3763 = vmatprep.subr.bf16.mxu0 0
      %3764 = vmatpush1.bf16.msra.mxu0 0
      %3765 = vmatprep.subr.bf16.mxu0 0
      %3766 = vmatpush1.bf16.msra.mxu0 0
      %3767 = vmatprep.subr.bf16.mxu0 0
      %3768 = vmatpush1.bf16.msra.mxu0 0
      %3769 = vmatprep.subr.bf16.mxu0 0
      %3770 = vmatpush1.bf16.msra.mxu0 0
      %3771 = vmatprep.subr.bf16.mxu0 0
      %3772 = vmatpush1.bf16.msra.mxu0 %v3755
      %3773 = vmatprep.subr.bf16.mxu0 0
      %3774 = vmatpush2.bf16.msra.mxu0 0
      %3775 = vmatprep.subr.bf16.mxu0 0
      %3776 = vmatpush2.bf16.msra.mxu0 0
      %3777 = vmatprep.subr.bf16.mxu0 0
      %3778 = vmatpush2.bf16.msra.mxu0 0
      %3779 = vmatprep.subr.bf16.mxu0 0
      %3780 = vmatpush2.bf16.msra.mxu0 0
      %3781 = vmatprep.subr.bf16.mxu0 0
      %3782 = vmatpush2.bf16.msra.mxu0 0
      %3783 = vmatprep.subr.bf16.mxu0 0
      %3784 = vmatpush2.bf16.msra.mxu0 0
      %3785 = vmatprep.subr.bf16.mxu0 0
      %3786 = vmatpush2.bf16.msra.mxu0 0
      %3787 = vmatprep.subr.bf16.mxu0 0
      %3788 = vmatpush2.bf16.msra.mxu0 0
      %3789 = vmatprep.mubr.bf16.mxu0 0
      %3790 = vmatmul.mubr.bf16.gmra.mxu0 %v3655
      %v3791 = vpop.f32.mrf.mxu0
      %v3792 = vadd.f32 0.0, %v3791
      %v3793 = vpop.f32.mrf.mxu0
      %v3794 = vpop.f32.mrf.mxu0
      %v3795 = vadd.f32 0.0, %v3794
      %v3796 = vpop.f32.mrf.mxu0
      %3797 = vdwg.mxu0
      %v3798 = vmul.f32 %v3751, %v3792
      %v3799 = vmul.f32 %v3752, %v3795
      %v3800 = vmul.f32 %v3326, %v3326
      %v3801 = vmul.f32 %v3327, %v3327
      %v3802 = vsel %vm3339, %v3800, 0.0
      %3803 = vadd.xlane.f32.xlu0 %v3802
      %v3804 = vpop.xlane.xlu0 %3803
      %v3805 = vsel %vm3339, %v3801, 0.0
      %3806 = vadd.xlane.f32.xlu0 %v3805
      %v3807 = vpop.xlane.xlu0 %3806
      %v3808 = vrsqrt.pop %v3804
      %v3809 = vmul.f32 %v3804, %v3808
      %vm3810 = vcmp.eq.f32.partialorder %v3804, inf
      %v3811 = vsel %vm3810, %v3804, %v3809
      %vm3812 = vcmp.eq.f32.partialorder %v3804, 0.0
      %v3813 = vand.u32 %v3804, 2147483648
      %v3814 = vsel %vm3812, %v3813, %v3811
      %v3815 = vrsqrt.pop %v3807
      %v3816 = vmul.f32 %v3807, %v3815
      %vm3817 = vcmp.eq.f32.partialorder %v3807, inf
      %v3818 = vsel %vm3817, %v3807, %v3816
      %vm3819 = vcmp.eq.f32.partialorder %v3807, 0.0
      %v3820 = vand.u32 %v3807, 2147483648
      %v3821 = vsel %vm3819, %v3820, %v3818
      %v3822 = vmul.f32 %v3798, %v3798
      %v3823 = vmul.f32 %v3799, %v3799
      %v3824 = vsel %vm3339, %v3822, 0.0
      %3825 = vadd.xlane.f32.xlu0 %v3824
      %v3826 = vpop.xlane.xlu0 %3825
      %v3827 = vsel %vm3339, %v3823, 0.0
      %3828 = vadd.xlane.f32.xlu0 %v3827
      %v3829 = vpop.xlane.xlu0 %3828
      %v3830 = vrsqrt.pop %v3826
      %v3831 = vmul.f32 %v3826, %v3830
      %vm3832 = vcmp.eq.f32.partialorder %v3826, inf
      %v3833 = vsel %vm3832, %v3826, %v3831
      %vm3834 = vcmp.eq.f32.partialorder %v3826, 0.0
      %v3835 = vand.u32 %v3826, 2147483648
      %v3836 = vsel %vm3834, %v3835, %v3833
      %v3837 = vrsqrt.pop %v3829
      %v3838 = vmul.f32 %v3829, %v3837
      %vm3839 = vcmp.eq.f32.partialorder %v3829, inf
      %v3840 = vsel %vm3839, %v3829, %v3838
      %vm3841 = vcmp.eq.f32.partialorder %v3829, 0.0
      %v3842 = vand.u32 %v3829, 2147483648
      %v3843 = vsel %vm3841, %v3842, %v3840
      %v3844 = vadd.f32 %v3836, 1e-12
      %v3845 = vadd.f32 %v3843, 1e-12
      %v3846 = vrcp.pop %v3844
      %v3847 = vmul.f32 %v3814, %v3846
      %v3848 = vrcp.pop %v3845
      %v3849 = vmul.f32 %v3821, %v3848
      %v3850 = vmul.f32 %v3847, 0.2
      %v3851 = vmul.f32 %v3849, 0.2
      %v3852 = vmax.f32 %v3850, 0.0
      %v3853 = vmax.f32 %v3851, 0.0
      %v3854 = vmin.f32 %v3852, 1.0
      %v3855 = vmin.f32 %v3853, 1.0
      %v3856 = vmul.f32 %v3854, %v3798
      %v3857 = vmul.f32 %v3855, %v3799
      %v3858 = vadd.f32 %v3326, %v3856
      %v3859 = vadd.f32 %v3327, %v3857
      %v3860 = vld [vmem:[%s20] sm:$0x1]
      %v3862 = vlaneseq
      %v3863 = vshrl.u32 %v3862, 7
      %v3864 = vsub.s32 0, %v3863
      %v3865 = vrot.slane %v3860, %v3864
      %v3867 = vmul.f32 %v3572, %v3865
      %v3868 = vmul.f32 %v3573, %v3865
      %v3869 = vsel %vm960, %v3867, 0.0
      %3870 = vadd.xlane.f32.xlu0 %v3869
      %v3871 = vpop.xlane.xlu0 %3870
      %v3872 = vsel %vm960, %v3868, 0.0
      %3873 = vadd.xlane.f32.xlu0 %v3872
      %v3874 = vpop.xlane.xlu0 %3873
      %v3875 = vld [vmem:[%s21] sm:$0x1]
      %v3877 = vlaneseq
      %v3878 = vshrl.u32 %v3877, 7
      %v3879 = vsub.s32 0, %v3878
      %v3880 = vrot.slane %v3875, %v3879
      %v3882 = vmul.f32 %v3858, %v3880
      %v3883 = vmul.f32 %v3859, %v3880
      %v3884 = vsel %vm3339, %v3882, 0.0
      %3885 = vadd.xlane.f32.xlu0 %v3884
      %v3886 = vpop.xlane.xlu0 %3885
      %v3887 = vsel %vm3339, %v3883, 0.0
      %3888 = vadd.xlane.f32.xlu0 %v3887
      %v3889 = vpop.xlane.xlu0 %3888
      %v3890 = vadd.f32 %v3871, %v3886
      %v3891 = vadd.f32 %v3874, %v3889
      %v3892 = vld [vmem:[#allocation2] sm:$0x1]
      %v3894 = vlaneseq
      %v3895 = vshrl.u32 %v3894, 7
      %v3896 = vsub.s32 0, %v3895
      %v3897 = vrot.slane %v3892, %v3896
      %v3899 = vadd.f32 %v3890, %v3897
      %v3900 = vadd.f32 %v3891, %v3897
      %v3901 = vxor.u32 %v3899, 2147483648
      %v3902 = vxor.u32 %v3900, 2147483648
      %v3903 = vmul.f32 %v3901, 1.442695
      %v3904 = vpow.pop %v3903
      %v3905 = vmul.f32 %v3902, 1.442695
      %v3906 = vpow.pop %v3905
      %v3907 = vadd.f32 %v3904, 1.0
      %v3908 = vadd.f32 %v3906, 1.0
      %v3909 = vrcp.pop %v3907
      %v3910 = vmul.f32 1.0, %v3909
      %v3911 = vrcp.pop %v3908
      %v3912 = vmul.f32 1.0, %v3911
      %vm3913 = vcmask 7168
      %3914 = vst.msk [vmem:[%s763] sm:$0xff] %vm3913, %v3910
      %3915 = vst.msk [vmem:[%s763 + $0x8] sm:$0xff] %vm3913, %v3912
      %s3916 = smul.u32 2, %s37
      %p3917 = scmp.lt.s32.totalorder %s3916, 3
      %s3918 = scalar_select %p3917, %s3916, 3
      %s3919 = smul.addr %s3918, 8
      %s3920 = scalar_lea.vmem %s24, %s3919
      // Predicated region
      $region117: #{dag_tabular2_forward.1} parent=115 // pred_check
        %p3921 = pneg %p569
      $region118: #{dag_tabular2_forward.1} parent=115 // pred_check_branch
        %3923 = sbr.rel (%p3921) target = $region120
      $region119: #{dag_tabular2_forward.1} parent=115 // pred_region
        %s3924 = smul.u32 2, %s37
      $region120: #{dag_tabular2_forward.1} parent=115 // pred_fallthru
        _
    $region116: #{dag_tabular2_forward.1} parent=5 // pred_fallthru
      _
    %p3925 = scmp.le.s32.totalorder 2, %s32
    // Predicated region
    $region121: #{dag_tabular2_forward.1} parent=5 // pred_check
      %p3926 = pneg %p3925
    $region122: #{dag_tabular2_forward.1} parent=5 // pred_check_branch
      %3928 = sbr.rel (%p3926) target = $region124
    $region123: #{dag_tabular2_forward.1} parent=5 // pred_region
      %s3929 = ssub.s32 %s32, 2
      // Predicated region
      $region125: #{dag_tabular2_forward.1} parent=123 // pred_check
        %p3930 = pneg %p575
      $region126: #{dag_tabular2_forward.1} parent=123 // pred_check_branch
        %3932 = sbr.rel (%p3930) target = $region128
      $region127: #{dag_tabular2_forward.1} parent=123 // pred_region
        %s3933 = smul.u32 2, %s38
        %p3934 = scmp.lt.s32.totalorder %s3933, 3
        %s3935 = scalar_select %p3934, %s3933, 3
        %s3936 = smul.addr %s3935, 8
        %s3937 = scalar_lea.vmem %s24, %s3936
      $region128: #{dag_tabular2_forward.1} parent=123 // pred_fallthru
        _
    $region124: #{dag_tabular2_forward.1} parent=5 // pred_fallthru
      _
  $region6: #{dag_tabular2_forward.1} parent=0 // loop_footer
    %s36 = sadd.s32 1, %s32
  $region7: #{dag_tabular2_forward.1} parent=0 // loop_footer_branch
    %31 = sbr.rel target = $region3
  $region8: #{dag_tabular2_forward.1} parent=0 // loop_exit
    _

</llo_original>
